<compile_context>
chip_gen: v7x
topology: tpu7x:2x2x1
jax: 0.10.0
libtpu: 0.0.40
codegen_flags: <defaults>
</compile_context>

<pallas_src>
import jax
import jax.numpy as jnp
from jax.experimental import pallas as pl
from jax.experimental.pallas import tpu as pltpu

LATENT = 512


def _attention_kernel(kvec_ref, wvc_ref, bvsum_ref, video_ref, o_ref):
    v3 = video_ref[0]                        # (BC, D, E): E on lanes, D on sublanes

    kv = kvec_ref[0]                         # (1, E) folded key/query vector
    wvc = wvc_ref[...]                       # (1, E) colsum of Wv

    # w[b,d] = sum_e video[b,d,e] * kvec[e]   (folded key projection + query dot)
    w = jnp.sum(v3 * kv, axis=-1)            # (BC, D)

    # sum_e value[b,d,e] = video[b,d,:] . colsum(Wv) + sum(bv)
    vsum = jnp.sum(v3 * wvc, axis=-1) + bvsum_ref[...]   # (BC, D)

    # softmax over d (last axis, lane dim)
    m = jnp.max(w, axis=-1, keepdims=True)
    e = jnp.exp(w - m)
    sm = e / jnp.sum(e, axis=-1, keepdims=True)

    o_ref[0] = sm * vsum


def transformer_attention(audio, video, params):
    """audio: (A, E) f32, video: (A, B, C, D, E) f32 -> (A, B, C, D) f32."""
    A, B, C, D, E = video.shape
    BC = B * C
    video_r = video.reshape(A, BC, D, E)

    # O(A*E + E*E) precompute (pure-JAX glue): fold all three Linear layers.
    q = audio @ params["wq"].T + params["bq"]             # (A, E) query projection
    kvec = (q @ params["wk"]).reshape(A, 1, E)            # (A, 1, E) folded k/q vec
    wv_colsum = jnp.sum(params["wv"], axis=0).reshape(1, E)
    bv_sum = jnp.sum(params["bv"]).reshape(1, 1)
    # bk dropped: it only adds the per-batch constant (bk . q_a) to every logit,
    # and softmax over d is invariant to constant shifts.

    out = pl.pallas_call(
        _attention_kernel,
        out_shape=jax.ShapeDtypeStruct((A, BC, D), jnp.float32),
        grid=(A,),
        in_specs=[
            pl.BlockSpec((1, 1, E), lambda a: (a, 0, 0)),         # kvec[a]
            pl.BlockSpec((1, E), lambda a: (0, 0)),               # colsum(Wv)
            pl.BlockSpec((1, 1), lambda a: (0, 0)),               # sum(bv)
            pl.BlockSpec((1, BC, D, E), lambda a: (a, 0, 0, 0)),  # video slab
        ],
        out_specs=pl.BlockSpec((1, BC, D), lambda a: (a, 0, 0)),
        compiler_params=pltpu.CompilerParams(
            dimension_semantics=("parallel",)),
    )(kvec, wv_colsum, bv_sum, video_r)

    return out.reshape(A, B, C, D)


def reference(audio, video, p):
    """Pure-JAX mirror of the PyTorch forward."""
    key = jnp.einsum('...i,oi->...o', video, p["wk"]) + p["bk"]
    query = jnp.einsum('ai,oi->ao', audio, p["wq"]) + p["bq"]
    value = jnp.einsum('...i,oi->...o', video, p["wv"]) + p["bv"]
    weights = jnp.einsum('abcde,ae->abcd', key, query)
    sm = jax.nn.softmax(weights, axis=-1)
    return jnp.einsum('abcde,abcd->abcd', value, sm)


if __name__ == "__main__":
    A, B, C, D, E = 2, 2, 2, 128, LATENT

    root = jax.random.PRNGKey(0)
    ks = jax.random.split(root, 8)
    scale = 0.02
    params = {
        "wq": jax.random.normal(ks[0], (E, E), jnp.float32) * scale,
        "wk": jax.random.normal(ks[1], (E, E), jnp.float32) * scale,
        "wv": jax.random.normal(ks[2], (E, E), jnp.float32) * scale,
        "bq": jax.random.normal(ks[3], (E,), jnp.float32) * scale,
        "bk": jax.random.normal(ks[4], (E,), jnp.float32) * scale,
        "bv": jax.random.normal(ks[5], (E,), jnp.float32) * scale,
    }
    audio = jax.random.normal(ks[6], (A, E), jnp.float32)
    video = jax.random.normal(ks[7], (A, B, C, D, E), jnp.float32)

    out = transformer_attention(audio, video, params)
    out = jax.block_until_ready(out)

    ref = reference(audio, video, params)
    assert out.shape == (A, B, C, D), out.shape
    max_err = float(jnp.max(jnp.abs(out - ref)))
    if not jnp.allclose(out, ref, rtol=2e-2, atol=2e-2):
        raise AssertionError(f"Pallas kernel mismatch, max abs err = {max_err}")

    print("KERNEL_OK")
</pallas_src>

<mosaic_0001>
module attributes {stable_mosaic.version = 11 : i64} {
  func.func @_attention_kernel(%arg0: i32, %arg1: memref<1x1x512xf32, #tpu.memory_space<vmem>>, %arg2: memref<1x512xf32, #tpu.memory_space<vmem>>, %arg3: memref<1x1xf32, #tpu.memory_space<vmem>>, %arg4: memref<1x4x128x512xf32, #tpu.memory_space<vmem>>, %arg5: memref<1x4x128xf32, #tpu.memory_space<vmem>>) attributes {dimension_semantics = [#tpu.dimension_semantics<parallel>], iteration_bounds = array<i64: 2>, scalar_prefetch = 0 : i64, scratch_operands = 0 : i64, tpu.core_type = #tpu.core_type<tc>, window_params = [{transform_indices = @transform_0, window_bounds = array<i64: 1, 1, 512>}, {pipeline_mode = #tpu.pipeline_mode<synchronous>, transform_indices = @transform_1, window_bounds = array<i64: 1, 512>}, {pipeline_mode = #tpu.pipeline_mode<synchronous>, transform_indices = @transform_2, window_bounds = array<i64: 1, 1>}, {transform_indices = @transform_3, window_bounds = array<i64: 1, 4, 128, 512>}, {transform_indices = @transform_4, window_bounds = array<i64: 1, 4, 128>}]} {
    %c0 = arith.constant 0 : index
    %c0_0 = arith.constant 0 : index
    %c0_1 = arith.constant 0 : index
    %c0_2 = arith.constant 0 : index
    %0 = vector.load %arg4[%c0, %c0_0, %c0_1, %c0_2] : memref<1x4x128x512xf32, #tpu.memory_space<vmem>>, vector<1x4x128x512xf32>
    %1 = vector.shape_cast %0 : vector<1x4x128x512xf32> to vector<4x128x512xf32>
    %c0_3 = arith.constant 0 : index
    %c0_4 = arith.constant 0 : index
    %c0_5 = arith.constant 0 : index
    %2 = vector.load %arg1[%c0_3, %c0_4, %c0_5] : memref<1x1x512xf32, #tpu.memory_space<vmem>>, vector<1x1x512xf32>
    %3 = vector.shape_cast %2 : vector<1x1x512xf32> to vector<1x512xf32>
    %c0_6 = arith.constant 0 : index
    %c0_7 = arith.constant 0 : index
    %4 = vector.load %arg2[%c0_6, %c0_7] : memref<1x512xf32, #tpu.memory_space<vmem>>, vector<1x512xf32>
    %5 = vector.shape_cast %3 : vector<1x512xf32> to vector<1x1x512xf32>
    %6 = vector.broadcast %5 : vector<1x1x512xf32> to vector<4x128x512xf32>
    %7 = arith.mulf %1, %6 : vector<4x128x512xf32>
    %cst = arith.constant dense<0.000000e+00> : vector<4x128xf32>
    %8 = vector.multi_reduction <add>, %7, %cst [2] : vector<4x128x512xf32> to vector<4x128xf32>
    %9 = vector.shape_cast %4 : vector<1x512xf32> to vector<1x1x512xf32>
    %10 = vector.broadcast %9 : vector<1x1x512xf32> to vector<4x128x512xf32>
    %11 = arith.mulf %1, %10 : vector<4x128x512xf32>
    %cst_8 = arith.constant dense<0.000000e+00> : vector<4x128xf32>
    %12 = vector.multi_reduction <add>, %11, %cst_8 [2] : vector<4x128x512xf32> to vector<4x128xf32>
    %c0_9 = arith.constant 0 : index
    %c0_10 = arith.constant 0 : index
    %13 = vector.load %arg3[%c0_9, %c0_10] : memref<1x1xf32, #tpu.memory_space<vmem>>, vector<1x1xf32>
    %14 = vector.broadcast %13 : vector<1x1xf32> to vector<4x128xf32>
    %15 = arith.addf %12, %14 : vector<4x128xf32>
    %cst_11 = arith.constant dense<0xFF800000> : vector<4xf32>
    %16 = vector.multi_reduction <maximumf>, %8, %cst_11 [1] : vector<4x128xf32> to vector<4xf32>
    %17 = vector.shape_cast %16 : vector<4xf32> to vector<4x1xf32>
    %18 = vector.broadcast %17 : vector<4x1xf32> to vector<4x128xf32>
    %19 = arith.subf %8, %18 : vector<4x128xf32>
    %20 = math.exp %19 : vector<4x128xf32>
    %cst_12 = arith.constant dense<0.000000e+00> : vector<4xf32>
    %21 = vector.multi_reduction <add>, %20, %cst_12 [1] : vector<4x128xf32> to vector<4xf32>
    %22 = vector.shape_cast %21 : vector<4xf32> to vector<4x1xf32>
    %23 = vector.broadcast %22 : vector<4x1xf32> to vector<4x128xf32>
    %24 = arith.divf %20, %23 : vector<4x128xf32>
    %25 = arith.mulf %24, %15 : vector<4x128xf32>
    %c0_13 = arith.constant 0 : index
    %c0_14 = arith.constant 0 : index
    %c0_15 = arith.constant 0 : index
    %26 = vector.load %arg5[%c0_13, %c0_14, %c0_15] : memref<1x4x128xf32, #tpu.memory_space<vmem>>, vector<1x4x128xf32>
    %27 = vector.shape_cast %26 : vector<1x4x128xf32> to vector<4x128xf32>
    %28 = vector.shape_cast %25 : vector<4x128xf32> to vector<1x4x128xf32>
    tpu.vector_store %arg5[%c0_13, %c0_14, %c0_15], %28 {strides = array<i32>} : memref<1x4x128xf32, #tpu.memory_space<vmem>>, vector<1x4x128xf32>,
    return
  }
  func.func @transform_0(%arg0: i32) -> (i32, i32, i32) {
    %c0_i32 = arith.constant 0 : i32
    %c0_i32_0 = arith.constant 0 : i32
    %c0_i32_1 = arith.constant 0 : i32
    return %arg0, %c0_i32, %c0_i32_0 : i32, i32, i32
  }
  func.func @transform_1(%arg0: i32) -> (i32, i32) {
    %c0_i32 = arith.constant 0 : i32
    %c0_i32_0 = arith.constant 0 : i32
    %c0_i32_1 = arith.constant 0 : i32
    return %c0_i32, %c0_i32_0 : i32, i32
  }
  func.func @transform_2(%arg0: i32) -> (i32, i32) {
    %c0_i32 = arith.constant 0 : i32
    %c0_i32_0 = arith.constant 0 : i32
    %c0_i32_1 = arith.constant 0 : i32
    return %c0_i32, %c0_i32_0 : i32, i32
  }
  func.func @transform_3(%arg0: i32) -> (i32, i32, i32, i32) {
    %c0_i32 = arith.constant 0 : i32
    %c0_i32_0 = arith.constant 0 : i32
    %c0_i32_1 = arith.constant 0 : i32
    %c0_i32_2 = arith.constant 0 : i32
    return %arg0, %c0_i32, %c0_i32_0, %c0_i32_1 : i32, i32, i32, i32
  }
  func.func @transform_4(%arg0: i32) -> (i32, i32, i32) {
    %c0_i32 = arith.constant 0 : i32
    %c0_i32_0 = arith.constant 0 : i32
    %c0_i32_1 = arith.constant 0 : i32
    return %arg0, %c0_i32, %c0_i32_0 : i32, i32, i32
  }
}

</mosaic_0001>

<llo_original>
// kernel: tpu_custom_call.1
$region0: #{tpu_custom_call.1}
  #allocation0 [shape = 'u32[]', space=smem, size = 0x4, offset = 0x4, fixed_abs, tag = 'smem constant byte address 0x4 - core index']
  #allocation1 [shape = 'u32[144,128]{1,0:T(1,128)}', space=vmem, size = 0x12000, scoped, tag = 'internal scratch']
  #allocation2 [shape = 'f32[1,1]{1,0:T(1,128)S(1)}', space=vmem, size = 0x200, scoped, tag = 'scoped memory for tpu_custom_call.1']
  %s0 = inlined_call_operand.hbm [shape: f32[2,1,512], index: 0, kind: input, shape index: {}]
  %s1 = inlined_call_operand.hbm [shape: f32[1,512], index: 1, kind: input, shape index: {}]
  %s2 = inlined_call_operand.<no memory space> [shape: f32[1,1], index: 2, kind: input, shape index: {}]
  %s3 = inlined_call_operand.hbm [shape: f32[2,4,128,512], index: 3, kind: input, shape index: {}]
  %s4 = inlined_call_operand.hbm [shape: f32[2,4,128], index: 4, kind: output, shape index: {}]
  %s5 = sld [smem:[#allocation0]]
  $region61: #{tpu_custom_call.1} parent=0
    _
  %s7 = ssub.s32 1, %s5
  %s8 = scalar_select 0, %s7, %s5
  %v9 = vstv %s2
  %10 = vst [vmem:[#allocation2] sm:$0x1] %v9
  $region1: #{tpu_custom_call.1} parent=0
    #allocation3 [shape = 'u8[4096]{0}', space=vmem, size = 0x1000, scoped, tag = 'input window, operand 0']
    #allocation4 [shape = 's32[2]{0}', space=sflag, size = 0x8, scoped, tag = 'scoped memory for tpu_custom_call.1']
    #allocation5 [shape = 's32[2]{0}', space=sflag, size = 0x8, scoped, tag = 'scoped memory for tpu_custom_call.1']
    #allocation6 [shape = 'u8[2048]{0}', space=vmem, size = 0x800, scoped, tag = 'input window, operand 1, single buffered']
    #allocation7 [shape = 's32[1]{0}', space=sflag, size = 0x4, scoped, tag = 'scoped memory for tpu_custom_call.1']
    #allocation8 [shape = 'u8[2097152]{0}', space=vmem, size = 0x200000, scoped, tag = 'input window, operand 3']
    #allocation9 [shape = 'u8[4096]{0}', space=vmem, size = 0x1000, scoped, tag = 'output window, operand 0']
    %11 = vsyncpa [#allocation4], 0
    %s12 = scalar_lea.sflag [#allocation4], 1
    %13 = vsyncpa %s12, 0
    %14 = vsyncpa [#allocation7], 0
    %15 = vsyncpa [#allocation5], 0
    %s16 = scalar_lea.sflag [#allocation5], 1
    %17 = vsyncpa %s16, 0
    loop: start=0, step=1, limit=4
    $region2: #{tpu_custom_call.1} parent=1 // loop_pre_header
      _
    $region3: #{tpu_custom_call.1} parent=1 // loop_header
      %s19 = sphi 0, %s23
      %p20 = scmp.ge.s32.totalorder %s19, 4
      %s29 = sphi 0, %s31
      %s32 = sphi 0, %s29
      %s33 = sphi 0, %s32
      %s49 = sphi 0, %s33
      %s53 = sphi 0, %s53
      %s55 = sphi 0, %s53
      %s56 = sphi 0, %s55
      %s70 = sphi 0, %s56
      %s74 = sphi 0, %s74
      %s76 = sphi 0, %s74
      %s77 = sphi 0, %s76
      %s91 = sphi 0, %s77
      %s97 = sphi 0, %s99
      %s100 = sphi 0, %s97
      %s101 = sphi 0, %s100
      %s117 = sphi 0, %s101
      %s123 = sphi 0, %s125
      %s126 = sphi 0, %s123
      %s127 = sphi 0, %s126
      %s143 = sphi 0, %s127
    $region4: #{tpu_custom_call.1} parent=1 // loop_header_branch
      %22 = sbr.rel (%p20) target = $region8
    $region5: #{tpu_custom_call.1} parent=1 // loop_body
      %s24 = ssub.s32 %s19, 1
      %s25 = ssub.s32 %s19, 2
      %s26 = sadd.s32 %s19, 1
      %s27 = ssub.s32 %s19, %s26
      %p28 = scmp.eq.s32.totalorder %s27, 0
      %s30 = sadd.s32 %s29, 1
      %s31 = scalar_select %p28, %s29, %s30
      %p34 = pneg %p28
      %p35 = scmp.eq.s32.totalorder %s19, 1
      %p36 = por %p34, %p35
      %p37 = scmp.ne.s32.totalorder %s29, %s32
      %p38 = scmp.eq.s32.totalorder %s19, 0
      %p39 = por %p37, %p38
      %p40 = scmp.ne.s32.totalorder %s29, %s32
      %p41 = scmp.eq.s32.totalorder %s24, 1
      %p42 = por %p40, %p41
      %p43 = scmp.ne.s32.totalorder %s32, %s33
      %p44 = scmp.eq.s32.totalorder %s24, 0
      %p45 = por %p43, %p44
      %p46 = scmp.ne.s32.totalorder %s32, %s33
      %p47 = scmp.eq.s32.totalorder %s25, 1
      %p48 = por %p46, %p47
      %p50 = scmp.ne.s32.totalorder %s33, %s49
      %p51 = scmp.eq.s32.totalorder %s25, 0
      %p52 = por %p50, %p51
      %s54 = sadd.s32 %s53, 1
      %p57 = scmp.eq.s32.totalorder %s19, 1
      %p58 = scmp.ne.s32.totalorder %s53, %s55
      %p59 = scmp.eq.s32.totalorder %s19, 0
      %p60 = por %p58, %p59
      %p61 = scmp.ne.s32.totalorder %s53, %s55
      %p62 = scmp.eq.s32.totalorder %s24, 1
      %p63 = por %p61, %p62
      %p64 = scmp.ne.s32.totalorder %s55, %s56
      %p65 = scmp.eq.s32.totalorder %s24, 0
      %p66 = por %p64, %p65
      %p67 = scmp.ne.s32.totalorder %s55, %s56
      %p68 = scmp.eq.s32.totalorder %s25, 1
      %p69 = por %p67, %p68
      %p71 = scmp.ne.s32.totalorder %s56, %s70
      %p72 = scmp.eq.s32.totalorder %s25, 0
      %p73 = por %p71, %p72
      %s75 = sadd.s32 %s74, 1
      %p78 = scmp.eq.s32.totalorder %s19, 1
      %p79 = scmp.ne.s32.totalorder %s74, %s76
      %p80 = scmp.eq.s32.totalorder %s19, 0
      %p81 = por %p79, %p80
      %p82 = scmp.ne.s32.totalorder %s74, %s76
      %p83 = scmp.eq.s32.totalorder %s24, 1
      %p84 = por %p82, %p83
      %p85 = scmp.ne.s32.totalorder %s76, %s77
      %p86 = scmp.eq.s32.totalorder %s24, 0
      %p87 = por %p85, %p86
      %p88 = scmp.ne.s32.totalorder %s76, %s77
      %p89 = scmp.eq.s32.totalorder %s25, 1
      %p90 = por %p88, %p89
      %p92 = scmp.ne.s32.totalorder %s77, %s91
      %p93 = scmp.eq.s32.totalorder %s25, 0
      %p94 = por %p92, %p93
      %s95 = ssub.s32 %s19, %s26
      %p96 = scmp.eq.s32.totalorder %s95, 0
      %s98 = sadd.s32 %s97, 1
      %s99 = scalar_select %p96, %s97, %s98
      %p102 = pneg %p96
      %p103 = scmp.eq.s32.totalorder %s19, 1
      %p104 = por %p102, %p103
      %p105 = scmp.ne.s32.totalorder %s97, %s100
      %p106 = scmp.eq.s32.totalorder %s19, 0
      %p107 = por %p105, %p106
      %p108 = scmp.ne.s32.totalorder %s97, %s100
      %p109 = scmp.eq.s32.totalorder %s24, 1
      %p110 = por %p108, %p109
      %p111 = scmp.ne.s32.totalorder %s100, %s101
      %p112 = scmp.eq.s32.totalorder %s24, 0
      %p113 = por %p111, %p112
      %p114 = scmp.ne.s32.totalorder %s100, %s101
      %p115 = scmp.eq.s32.totalorder %s25, 1
      %p116 = por %p114, %p115
      %p118 = scmp.ne.s32.totalorder %s101, %s117
      %p119 = scmp.eq.s32.totalorder %s25, 0
      %p120 = por %p118, %p119
      %s121 = ssub.s32 %s19, %s26
      %p122 = scmp.eq.s32.totalorder %s121, 0
      %s124 = sadd.s32 %s123, 1
      %s125 = scalar_select %p122, %s123, %s124
      %p128 = pneg %p122
      %p129 = scmp.eq.s32.totalorder %s19, 1
      %p130 = por %p128, %p129
      %p131 = scmp.ne.s32.totalorder %s123, %s126
      %p132 = scmp.eq.s32.totalorder %s19, 0
      %p133 = por %p131, %p132
      %p134 = scmp.ne.s32.totalorder %s123, %s126
      %p135 = scmp.eq.s32.totalorder %s24, 1
      %p136 = por %p134, %p135
      %p137 = scmp.ne.s32.totalorder %s126, %s127
      %p138 = scmp.eq.s32.totalorder %s24, 0
      %p139 = por %p137, %p138
      %p140 = scmp.ne.s32.totalorder %s126, %s127
      %p141 = scmp.eq.s32.totalorder %s25, 1
      %p142 = por %p140, %p141
      %p144 = scmp.ne.s32.totalorder %s127, %s143
      %p145 = scmp.eq.s32.totalorder %s25, 0
      %p146 = por %p144, %p145
      %p147 = scmp.le.s32.totalorder 1, %s19
      %p148 = scmp.lt.s32.totalorder %s19, 3
      %p149 = pnand %p147, %p148
      %p150 = pneg %p149
      // Predicated region
      $region9: #{tpu_custom_call.1} parent=5 // pred_check
        _
      $region10: #{tpu_custom_call.1} parent=5 // pred_check_branch
        %152 = sbr.rel (%p149) target = $region12
      $region11: #{tpu_custom_call.1} parent=5 // pred_region
        %s153 = ssub.s32 %s19, 1
        // Predicated region
        $region13: #{tpu_custom_call.1} parent=11 // pred_check
          %p154 = pneg %p66
        $region14: #{tpu_custom_call.1} parent=11 // pred_check_branch
          %156 = sbr.rel (%p154) target = $region16
        $region15: #{tpu_custom_call.1} parent=11 // pred_region
          %s158 = ssub.s32 64, 64
          %159 = vsyncadd [#allocation7], %s158
          %s161 = sshll.u32 [#allocation6], 4
          %s162 = int_to_ptr.vmem [resolvable:$true] %s161
          %164 = dma.hbm_to_vmem [thread:$0]  %s1, 64, %s162, [#allocation7]
        $region16: #{tpu_custom_call.1} parent=11 // pred_fallthru
          _
        // Predicated region
        $region17: #{tpu_custom_call.1} parent=11 // pred_check
          %p165 = pneg %p87
        $region18: #{tpu_custom_call.1} parent=11 // pred_check_branch
          %167 = sbr.rel (%p165) target = $region20
        $region19: #{tpu_custom_call.1} parent=11 // pred_region
          _
        $region20: #{tpu_custom_call.1} parent=11 // pred_fallthru
          _
      $region12: #{tpu_custom_call.1} parent=5 // pred_fallthru
        _
      %p168 = scmp.lt.s32.totalorder %s19, 2
      // Predicated region
      $region21: #{tpu_custom_call.1} parent=5 // pred_check
        %p169 = pneg %p168
      $region22: #{tpu_custom_call.1} parent=5 // pred_check_branch
        %171 = sbr.rel (%p169) target = $region24
      $region23: #{tpu_custom_call.1} parent=5 // pred_region
        // Predicated region
        $region25: #{tpu_custom_call.1} parent=23 // pred_check
          %p172 = pneg %p39
        $region26: #{tpu_custom_call.1} parent=23 // pred_check_branch
          %174 = sbr.rel (%p172) target = $region28
        $region27: #{tpu_custom_call.1} parent=23 // pred_region
          %s175 = sand.u32 %s19, 1
          %s176 = scalar_lea.sflag [#allocation4], %s175
          %s177 = sand.u32 %s29, 1
          %s178 = smul.addr %s177, 4
          %s179 = scalar_lea.vmem [#allocation3], %s178
          %s181 = ssub.s32 64, 64
          %182 = vsyncadd %s176, %s181
          %s183 = smul.addr %s19, 4
          %s184 = smul.addr %s183, 16
          %s185 = scalar_lea.hbm %s0, %s184
          %s187 = sshll.u32 %s179, 4
          %s188 = int_to_ptr.vmem [resolvable:$true] %s187
          %190 = dma.hbm_to_vmem [thread:$0]  %s185, 64, %s188, %s176
        $region28: #{tpu_custom_call.1} parent=23 // pred_fallthru
          _
        // Predicated region
        $region29: #{tpu_custom_call.1} parent=23 // pred_check
          %p191 = pneg %p107
        $region30: #{tpu_custom_call.1} parent=23 // pred_check_branch
          %193 = sbr.rel (%p191) target = $region32
        $region31: #{tpu_custom_call.1} parent=23 // pred_region
          %s194 = sand.u32 %s19, 1
          %s195 = scalar_lea.sflag [#allocation4], %s194
          %s196 = sand.u32 %s97, 1
          %s197 = smul.addr %s196, 2048
          %s198 = scalar_lea.vmem [#allocation8], %s197
          %s200 = ssub.s32 32768, 32768
          %201 = vsyncadd %s195, %s200
          %s202 = smul.addr %s19, 256
          %s203 = smul.addr %s202, 128
          %s204 = scalar_lea.hbm %s3, %s203
          %s205 = sshll.u32 %s198, 4
          %s206 = int_to_ptr.vmem [resolvable:$true] %s205
          %211 = dma.hbm_to_vmem [thread:$0]  %s204, 32768, %s206, %s195, 512, 512, 32
        $region32: #{tpu_custom_call.1} parent=23 // pred_fallthru
          _
      $region24: #{tpu_custom_call.1} parent=5 // pred_fallthru
        _
      %p212 = scmp.le.s32.totalorder 1, %s19
      %p213 = scmp.lt.s32.totalorder %s19, 3
      %p214 = pnand %p212, %p213
      %p215 = pneg %p214
      // Predicated region
      $region33: #{tpu_custom_call.1} parent=5 // pred_check
        _
      $region34: #{tpu_custom_call.1} parent=5 // pred_check_branch
        %217 = sbr.rel (%p214) target = $region36
      $region35: #{tpu_custom_call.1} parent=5 // pred_region
        %s218 = ssub.s32 %s19, 1
        %s219 = sand.u32 %s24, 1
        %s220 = scalar_lea.sflag [#allocation4], %s219
        %s221 = sand.u32 %s32, 1
        %s222 = smul.addr %s221, 4
        %s223 = scalar_lea.vmem [#allocation3], %s222
        // Predicated region
        $region37: #{tpu_custom_call.1} parent=35 // pred_check
          %p224 = pneg %p45
        $region38: #{tpu_custom_call.1} parent=35 // pred_check_branch
          %226 = sbr.rel (%p224) target = $region40
        $region39: #{tpu_custom_call.1} parent=35 // pred_region
          %227 = dma.done %s220, 64
        $region40: #{tpu_custom_call.1} parent=35 // pred_fallthru
          _
        // Predicated region
        $region41: #{tpu_custom_call.1} parent=35 // pred_check
          %p228 = pneg %p66
        $region42: #{tpu_custom_call.1} parent=35 // pred_check_branch
          %230 = sbr.rel (%p228) target = $region44
        $region43: #{tpu_custom_call.1} parent=35 // pred_region
          %231 = dma.done [#allocation7], 64
        $region44: #{tpu_custom_call.1} parent=35 // pred_fallthru
          _
        %s232 = sand.u32 %s24, 1
        %s233 = scalar_lea.sflag [#allocation4], %s232
        %s234 = sand.u32 %s100, 1
        %s235 = smul.addr %s234, 2048
        %s236 = scalar_lea.vmem [#allocation8], %s235
        // Predicated region
        $region45: #{tpu_custom_call.1} parent=35 // pred_check
          %p237 = pneg %p113
        $region46: #{tpu_custom_call.1} parent=35 // pred_check_branch
          %239 = sbr.rel (%p237) target = $region48
        $region47: #{tpu_custom_call.1} parent=35 // pred_region
          %240 = dma.done %s233, 32768
        $region48: #{tpu_custom_call.1} parent=35 // pred_fallthru
          _
        %s241 = sand.u32 %s24, 1
        %s242 = scalar_lea.sflag [#allocation4], %s241
        %s243 = sand.u32 %s32, 1
        %s244 = smul.addr %s243, 4
        %s245 = scalar_lea.vmem [#allocation3], %s244
        %p246 = pneg %p45
        %p247 = pneg %p42
        %p248 = pneg %p66
        %p249 = pneg %p63
        %p250 = pneg %p87
        %p251 = pneg %p84
        %s252 = sand.u32 %s24, 1
        %s253 = scalar_lea.sflag [#allocation4], %s252
        %s254 = sand.u32 %s100, 1
        %s255 = smul.addr %s254, 2048
        %s256 = scalar_lea.vmem [#allocation8], %s255
        %p257 = pneg %p113
        %p258 = pneg %p110
        %p259 = pneg %p139
        %p260 = pneg %p136
        %s261 = sand.u32 %s126, 1
        %s262 = scalar_lea.sflag [#allocation5], %s261
        %s263 = sand.u32 %s126, 1
        %s264 = smul.addr %s263, 4
        %s265 = scalar_lea.vmem [#allocation9], %s264
        %v266 = vld [vmem:[%s236] sm:$0xff]
        %v267 = vld [vmem:[%s236 + $0x8] sm:$0xff]
        %v268 = vld [vmem:[%s236 + $0x10] sm:$0xff]
        %v269 = vld [vmem:[%s236 + $0x18] sm:$0xff]
        %v270 = vld [vmem:[%s236 + $0x20] sm:$0xff]
        %v271 = vld [vmem:[%s236 + $0x28] sm:$0xff]
        %v272 = vld [vmem:[%s236 + $0x30] sm:$0xff]
        %v273 = vld [vmem:[%s236 + $0x38] sm:$0xff]
        %v274 = vld [vmem:[%s236 + $0x40] sm:$0xff]
        %v275 = vld [vmem:[%s236 + $0x48] sm:$0xff]
        %v276 = vld [vmem:[%s236 + $0x50] sm:$0xff]
        %v277 = vld [vmem:[%s236 + $0x58] sm:$0xff]
        %v278 = vld [vmem:[%s236 + $0x60] sm:$0xff]
        %v279 = vld [vmem:[%s236 + $0x68] sm:$0xff]
        %v280 = vld [vmem:[%s236 + $0x70] sm:$0xff]
        %v281 = vld [vmem:[%s236 + $0x78] sm:$0xff]
        %v282 = vld [vmem:[%s236 + $0x80] sm:$0xff]
        %v283 = vld [vmem:[%s236 + $0x88] sm:$0xff]
        %v284 = vld [vmem:[%s236 + $0x90] sm:$0xff]
        %v285 = vld [vmem:[%s236 + $0x98] sm:$0xff]
        %v286 = vld [vmem:[%s236 + $0xa0] sm:$0xff]
        %v287 = vld [vmem:[%s236 + $0xa8] sm:$0xff]
        %v288 = vld [vmem:[%s236 + $0xb0] sm:$0xff]
        %v289 = vld [vmem:[%s236 + $0xb8] sm:$0xff]
        %v290 = vld [vmem:[%s236 + $0xc0] sm:$0xff]
        %v291 = vld [vmem:[%s236 + $0xc8] sm:$0xff]
        %v292 = vld [vmem:[%s236 + $0xd0] sm:$0xff]
        %v293 = vld [vmem:[%s236 + $0xd8] sm:$0xff]
        %v294 = vld [vmem:[%s236 + $0xe0] sm:$0xff]
        %v295 = vld [vmem:[%s236 + $0xe8] sm:$0xff]
        %v296 = vld [vmem:[%s236 + $0xf0] sm:$0xff]
        %v297 = vld [vmem:[%s236 + $0xf8] sm:$0xff]
        %v298 = vld [vmem:[%s236 + $0x100] sm:$0xff]
        %v299 = vld [vmem:[%s236 + $0x108] sm:$0xff]
        %v300 = vld [vmem:[%s236 + $0x110] sm:$0xff]
        %v301 = vld [vmem:[%s236 + $0x118] sm:$0xff]
        %v302 = vld [vmem:[%s236 + $0x120] sm:$0xff]
        %v303 = vld [vmem:[%s236 + $0x128] sm:$0xff]
        %v304 = vld [vmem:[%s236 + $0x130] sm:$0xff]
        %v305 = vld [vmem:[%s236 + $0x138] sm:$0xff]
        %v306 = vld [vmem:[%s236 + $0x140] sm:$0xff]
        %v307 = vld [vmem:[%s236 + $0x148] sm:$0xff]
        %v308 = vld [vmem:[%s236 + $0x150] sm:$0xff]
        %v309 = vld [vmem:[%s236 + $0x158] sm:$0xff]
        %v310 = vld [vmem:[%s236 + $0x160] sm:$0xff]
        %v311 = vld [vmem:[%s236 + $0x168] sm:$0xff]
        %v312 = vld [vmem:[%s236 + $0x170] sm:$0xff]
        %v313 = vld [vmem:[%s236 + $0x178] sm:$0xff]
        %v314 = vld [vmem:[%s236 + $0x180] sm:$0xff]
        %v315 = vld [vmem:[%s236 + $0x188] sm:$0xff]
        %v316 = vld [vmem:[%s236 + $0x190] sm:$0xff]
        %v317 = vld [vmem:[%s236 + $0x198] sm:$0xff]
        %v318 = vld [vmem:[%s236 + $0x1a0] sm:$0xff]
        %v319 = vld [vmem:[%s236 + $0x1a8] sm:$0xff]
        %v320 = vld [vmem:[%s236 + $0x1b0] sm:$0xff]
        %v321 = vld [vmem:[%s236 + $0x1b8] sm:$0xff]
        %v322 = vld [vmem:[%s236 + $0x1c0] sm:$0xff]
        %v323 = vld [vmem:[%s236 + $0x1c8] sm:$0xff]
        %v324 = vld [vmem:[%s236 + $0x1d0] sm:$0xff]
        %v325 = vld [vmem:[%s236 + $0x1d8] sm:$0xff]
        %v326 = vld [vmem:[%s236 + $0x1e0] sm:$0xff]
        %v327 = vld [vmem:[%s236 + $0x1e8] sm:$0xff]
        %v328 = vld [vmem:[%s236 + $0x1f0] sm:$0xff]
        %v329 = vld [vmem:[%s236 + $0x1f8] sm:$0xff]
        %v330 = vld [vmem:[%s236 + $0x200] sm:$0xff]
        %v331 = vld [vmem:[%s236 + $0x208] sm:$0xff]
        %v332 = vld [vmem:[%s236 + $0x210] sm:$0xff]
        %v333 = vld [vmem:[%s236 + $0x218] sm:$0xff]
        %v334 = vld [vmem:[%s236 + $0x220] sm:$0xff]
        %v335 = vld [vmem:[%s236 + $0x228] sm:$0xff]
        %v336 = vld [vmem:[%s236 + $0x230] sm:$0xff]
        %v337 = vld [vmem:[%s236 + $0x238] sm:$0xff]
        %v338 = vld [vmem:[%s236 + $0x240] sm:$0xff]
        %v339 = vld [vmem:[%s236 + $0x248] sm:$0xff]
        %v340 = vld [vmem:[%s236 + $0x250] sm:$0xff]
        %v341 = vld [vmem:[%s236 + $0x258] sm:$0xff]
        %v342 = vld [vmem:[%s236 + $0x260] sm:$0xff]
        %v343 = vld [vmem:[%s236 + $0x268] sm:$0xff]
        %v344 = vld [vmem:[%s236 + $0x270] sm:$0xff]
        %v345 = vld [vmem:[%s236 + $0x278] sm:$0xff]
        %v346 = vld [vmem:[%s236 + $0x280] sm:$0xff]
        %v347 = vld [vmem:[%s236 + $0x288] sm:$0xff]
        %v348 = vld [vmem:[%s236 + $0x290] sm:$0xff]
        %v349 = vld [vmem:[%s236 + $0x298] sm:$0xff]
        %v350 = vld [vmem:[%s236 + $0x2a0] sm:$0xff]
        %v351 = vld [vmem:[%s236 + $0x2a8] sm:$0xff]
        %v352 = vld [vmem:[%s236 + $0x2b0] sm:$0xff]
        %v353 = vld [vmem:[%s236 + $0x2b8] sm:$0xff]
        %v354 = vld [vmem:[%s236 + $0x2c0] sm:$0xff]
        %v355 = vld [vmem:[%s236 + $0x2c8] sm:$0xff]
        %v356 = vld [vmem:[%s236 + $0x2d0] sm:$0xff]
        %v357 = vld [vmem:[%s236 + $0x2d8] sm:$0xff]
        %v358 = vld [vmem:[%s236 + $0x2e0] sm:$0xff]
        %v359 = vld [vmem:[%s236 + $0x2e8] sm:$0xff]
        %v360 = vld [vmem:[%s236 + $0x2f0] sm:$0xff]
        %v361 = vld [vmem:[%s236 + $0x2f8] sm:$0xff]
        %v362 = vld [vmem:[%s236 + $0x300] sm:$0xff]
        %v363 = vld [vmem:[%s236 + $0x308] sm:$0xff]
        %v364 = vld [vmem:[%s236 + $0x310] sm:$0xff]
        %v365 = vld [vmem:[%s236 + $0x318] sm:$0xff]
        %v366 = vld [vmem:[%s236 + $0x320] sm:$0xff]
        %v367 = vld [vmem:[%s236 + $0x328] sm:$0xff]
        %v368 = vld [vmem:[%s236 + $0x330] sm:$0xff]
        %v369 = vld [vmem:[%s236 + $0x338] sm:$0xff]
        %v370 = vld [vmem:[%s236 + $0x340] sm:$0xff]
        %v371 = vld [vmem:[%s236 + $0x348] sm:$0xff]
        %v372 = vld [vmem:[%s236 + $0x350] sm:$0xff]
        %v373 = vld [vmem:[%s236 + $0x358] sm:$0xff]
        %v374 = vld [vmem:[%s236 + $0x360] sm:$0xff]
        %v375 = vld [vmem:[%s236 + $0x368] sm:$0xff]
        %v376 = vld [vmem:[%s236 + $0x370] sm:$0xff]
        %v377 = vld [vmem:[%s236 + $0x378] sm:$0xff]
        %v378 = vld [vmem:[%s236 + $0x380] sm:$0xff]
        %v379 = vld [vmem:[%s236 + $0x388] sm:$0xff]
        %v380 = vld [vmem:[%s236 + $0x390] sm:$0xff]
        %v381 = vld [vmem:[%s236 + $0x398] sm:$0xff]
        %v382 = vld [vmem:[%s236 + $0x3a0] sm:$0xff]
        %v383 = vld [vmem:[%s236 + $0x3a8] sm:$0xff]
        %v384 = vld [vmem:[%s236 + $0x3b0] sm:$0xff]
        %v385 = vld [vmem:[%s236 + $0x3b8] sm:$0xff]
        %v386 = vld [vmem:[%s236 + $0x3c0] sm:$0xff]
        %v387 = vld [vmem:[%s236 + $0x3c8] sm:$0xff]
        %v388 = vld [vmem:[%s236 + $0x3d0] sm:$0xff]
        %v389 = vld [vmem:[%s236 + $0x3d8] sm:$0xff]
        %v390 = vld [vmem:[%s236 + $0x3e0] sm:$0xff]
        %v391 = vld [vmem:[%s236 + $0x3e8] sm:$0xff]
        %v392 = vld [vmem:[%s236 + $0x3f0] sm:$0xff]
        %v393 = vld [vmem:[%s236 + $0x3f8] sm:$0xff]
        %v394 = vld [vmem:[%s236 + $0x400] sm:$0xff]
        %v395 = vld [vmem:[%s236 + $0x408] sm:$0xff]
        %v396 = vld [vmem:[%s236 + $0x410] sm:$0xff]
        %v397 = vld [vmem:[%s236 + $0x418] sm:$0xff]
        %v398 = vld [vmem:[%s236 + $0x420] sm:$0xff]
        %v399 = vld [vmem:[%s236 + $0x428] sm:$0xff]
        %v400 = vld [vmem:[%s236 + $0x430] sm:$0xff]
        %v401 = vld [vmem:[%s236 + $0x438] sm:$0xff]
        %v402 = vld [vmem:[%s236 + $0x440] sm:$0xff]
        %v403 = vld [vmem:[%s236 + $0x448] sm:$0xff]
        %v404 = vld [vmem:[%s236 + $0x450] sm:$0xff]
        %v405 = vld [vmem:[%s236 + $0x458] sm:$0xff]
        %v406 = vld [vmem:[%s236 + $0x460] sm:$0xff]
        %v407 = vld [vmem:[%s236 + $0x468] sm:$0xff]
        %v408 = vld [vmem:[%s236 + $0x470] sm:$0xff]
        %v409 = vld [vmem:[%s236 + $0x478] sm:$0xff]
        %v410 = vld [vmem:[%s236 + $0x480] sm:$0xff]
        %v411 = vld [vmem:[%s236 + $0x488] sm:$0xff]
        %v412 = vld [vmem:[%s236 + $0x490] sm:$0xff]
        %v413 = vld [vmem:[%s236 + $0x498] sm:$0xff]
        %v414 = vld [vmem:[%s236 + $0x4a0] sm:$0xff]
        %v415 = vld [vmem:[%s236 + $0x4a8] sm:$0xff]
        %v416 = vld [vmem:[%s236 + $0x4b0] sm:$0xff]
        %v417 = vld [vmem:[%s236 + $0x4b8] sm:$0xff]
        %v418 = vld [vmem:[%s236 + $0x4c0] sm:$0xff]
        %v419 = vld [vmem:[%s236 + $0x4c8] sm:$0xff]
        %v420 = vld [vmem:[%s236 + $0x4d0] sm:$0xff]
        %v421 = vld [vmem:[%s236 + $0x4d8] sm:$0xff]
        %v422 = vld [vmem:[%s236 + $0x4e0] sm:$0xff]
        %v423 = vld [vmem:[%s236 + $0x4e8] sm:$0xff]
        %v424 = vld [vmem:[%s236 + $0x4f0] sm:$0xff]
        %v425 = vld [vmem:[%s236 + $0x4f8] sm:$0xff]
        %v426 = vld [vmem:[%s236 + $0x500] sm:$0xff]
        %v427 = vld [vmem:[%s236 + $0x508] sm:$0xff]
        %v428 = vld [vmem:[%s236 + $0x510] sm:$0xff]
        %v429 = vld [vmem:[%s236 + $0x518] sm:$0xff]
        %v430 = vld [vmem:[%s236 + $0x520] sm:$0xff]
        %v431 = vld [vmem:[%s236 + $0x528] sm:$0xff]
        %v432 = vld [vmem:[%s236 + $0x530] sm:$0xff]
        %v433 = vld [vmem:[%s236 + $0x538] sm:$0xff]
        %v434 = vld [vmem:[%s236 + $0x540] sm:$0xff]
        %v435 = vld [vmem:[%s236 + $0x548] sm:$0xff]
        %v436 = vld [vmem:[%s236 + $0x550] sm:$0xff]
        %v437 = vld [vmem:[%s236 + $0x558] sm:$0xff]
        %v438 = vld [vmem:[%s236 + $0x560] sm:$0xff]
        %v439 = vld [vmem:[%s236 + $0x568] sm:$0xff]
        %v440 = vld [vmem:[%s236 + $0x570] sm:$0xff]
        %v441 = vld [vmem:[%s236 + $0x578] sm:$0xff]
        %v442 = vld [vmem:[%s236 + $0x580] sm:$0xff]
        %v443 = vld [vmem:[%s236 + $0x588] sm:$0xff]
        %v444 = vld [vmem:[%s236 + $0x590] sm:$0xff]
        %v445 = vld [vmem:[%s236 + $0x598] sm:$0xff]
        %v446 = vld [vmem:[%s236 + $0x5a0] sm:$0xff]
        %v447 = vld [vmem:[%s236 + $0x5a8] sm:$0xff]
        %v448 = vld [vmem:[%s236 + $0x5b0] sm:$0xff]
        %v449 = vld [vmem:[%s236 + $0x5b8] sm:$0xff]
        %v450 = vld [vmem:[%s236 + $0x5c0] sm:$0xff]
        %v451 = vld [vmem:[%s236 + $0x5c8] sm:$0xff]
        %v452 = vld [vmem:[%s236 + $0x5d0] sm:$0xff]
        %v453 = vld [vmem:[%s236 + $0x5d8] sm:$0xff]
        %v454 = vld [vmem:[%s236 + $0x5e0] sm:$0xff]
        %v455 = vld [vmem:[%s236 + $0x5e8] sm:$0xff]
        %v456 = vld [vmem:[%s236 + $0x5f0] sm:$0xff]
        %v457 = vld [vmem:[%s236 + $0x5f8] sm:$0xff]
        %v458 = vld [vmem:[%s236 + $0x600] sm:$0xff]
        %v459 = vld [vmem:[%s236 + $0x608] sm:$0xff]
        %v460 = vld [vmem:[%s236 + $0x610] sm:$0xff]
        %v461 = vld [vmem:[%s236 + $0x618] sm:$0xff]
        %v462 = vld [vmem:[%s236 + $0x620] sm:$0xff]
        %v463 = vld [vmem:[%s236 + $0x628] sm:$0xff]
        %v464 = vld [vmem:[%s236 + $0x630] sm:$0xff]
        %v465 = vld [vmem:[%s236 + $0x638] sm:$0xff]
        %v466 = vld [vmem:[%s236 + $0x640] sm:$0xff]
        %v467 = vld [vmem:[%s236 + $0x648] sm:$0xff]
        %v468 = vld [vmem:[%s236 + $0x650] sm:$0xff]
        %v469 = vld [vmem:[%s236 + $0x658] sm:$0xff]
        %v470 = vld [vmem:[%s236 + $0x660] sm:$0xff]
        %v471 = vld [vmem:[%s236 + $0x668] sm:$0xff]
        %v472 = vld [vmem:[%s236 + $0x670] sm:$0xff]
        %v473 = vld [vmem:[%s236 + $0x678] sm:$0xff]
        %v474 = vld [vmem:[%s236 + $0x680] sm:$0xff]
        %v475 = vld [vmem:[%s236 + $0x688] sm:$0xff]
        %v476 = vld [vmem:[%s236 + $0x690] sm:$0xff]
        %v477 = vld [vmem:[%s236 + $0x698] sm:$0xff]
        %v478 = vld [vmem:[%s236 + $0x6a0] sm:$0xff]
        %v479 = vld [vmem:[%s236 + $0x6a8] sm:$0xff]
        %v480 = vld [vmem:[%s236 + $0x6b0] sm:$0xff]
        %v481 = vld [vmem:[%s236 + $0x6b8] sm:$0xff]
        %v482 = vld [vmem:[%s236 + $0x6c0] sm:$0xff]
        %v483 = vld [vmem:[%s236 + $0x6c8] sm:$0xff]
        %v484 = vld [vmem:[%s236 + $0x6d0] sm:$0xff]
        %v485 = vld [vmem:[%s236 + $0x6d8] sm:$0xff]
        %v486 = vld [vmem:[%s236 + $0x6e0] sm:$0xff]
        %v487 = vld [vmem:[%s236 + $0x6e8] sm:$0xff]
        %v488 = vld [vmem:[%s236 + $0x6f0] sm:$0xff]
        %v489 = vld [vmem:[%s236 + $0x6f8] sm:$0xff]
        %v490 = vld [vmem:[%s236 + $0x700] sm:$0xff]
        %v491 = vld [vmem:[%s236 + $0x708] sm:$0xff]
        %v492 = vld [vmem:[%s236 + $0x710] sm:$0xff]
        %v493 = vld [vmem:[%s236 + $0x718] sm:$0xff]
        %v494 = vld [vmem:[%s236 + $0x720] sm:$0xff]
        %v495 = vld [vmem:[%s236 + $0x728] sm:$0xff]
        %v496 = vld [vmem:[%s236 + $0x730] sm:$0xff]
        %v497 = vld [vmem:[%s236 + $0x738] sm:$0xff]
        %v498 = vld [vmem:[%s236 + $0x740] sm:$0xff]
        %v499 = vld [vmem:[%s236 + $0x748] sm:$0xff]
        %v500 = vld [vmem:[%s236 + $0x750] sm:$0xff]
        %v501 = vld [vmem:[%s236 + $0x758] sm:$0xff]
        %v502 = vld [vmem:[%s236 + $0x760] sm:$0xff]
        %v503 = vld [vmem:[%s236 + $0x768] sm:$0xff]
        %v504 = vld [vmem:[%s236 + $0x770] sm:$0xff]
        %v505 = vld [vmem:[%s236 + $0x778] sm:$0xff]
        %v506 = vld [vmem:[%s236 + $0x780] sm:$0xff]
        %v507 = vld [vmem:[%s236 + $0x788] sm:$0xff]
        %v508 = vld [vmem:[%s236 + $0x790] sm:$0xff]
        %v509 = vld [vmem:[%s236 + $0x798] sm:$0xff]
        %v510 = vld [vmem:[%s236 + $0x7a0] sm:$0xff]
        %v511 = vld [vmem:[%s236 + $0x7a8] sm:$0xff]
        %v512 = vld [vmem:[%s236 + $0x7b0] sm:$0xff]
        %v513 = vld [vmem:[%s236 + $0x7b8] sm:$0xff]
        %v514 = vld [vmem:[%s236 + $0x7c0] sm:$0xff]
        %v515 = vld [vmem:[%s236 + $0x7c8] sm:$0xff]
        %v516 = vld [vmem:[%s236 + $0x7d0] sm:$0xff]
        %v517 = vld [vmem:[%s236 + $0x7d8] sm:$0xff]
        %v518 = vld [vmem:[%s236 + $0x7e0] sm:$0xff]
        %v519 = vld [vmem:[%s236 + $0x7e8] sm:$0xff]
        %v520 = vld [vmem:[%s236 + $0x7f0] sm:$0xff]
        %v521 = vld [vmem:[%s236 + $0x7f8] sm:$0xff]
        %v522 = vld [vmem:[%s223] sm:$0xf]
        %v523 = vld [vmem:[#allocation6] sm:$0xf]
        %v525 = vlaneseq
        %v526 = vshrl.u32 %v525, 7
        %v527 = vsub.s32 0, %v526
        %v528 = vrot.slane %v522, %v527
        %v529 = vlaneseq
        %v530 = vshrl.u32 %v529, 7
        %v531 = vsub.s32 1, %v530
        %v532 = vrot.slane %v522, %v531
        %v533 = vlaneseq
        %v534 = vshrl.u32 %v533, 7
        %v535 = vsub.s32 2, %v534
        %v536 = vrot.slane %v522, %v535
        %v537 = vlaneseq
        %v538 = vshrl.u32 %v537, 7
        %v539 = vsub.s32 3, %v538
        %v540 = vrot.slane %v522, %v539
        %v545 = vmul.f32 %v266, %v528
        %v546 = vmul.f32 %v267, %v532
        %v547 = vmul.f32 %v268, %v536
        %v548 = vmul.f32 %v269, %v540
        %v549 = vmul.f32 %v270, %v528
        %v550 = vmul.f32 %v271, %v532
        %v551 = vmul.f32 %v272, %v536
        %v552 = vmul.f32 %v273, %v540
        %v553 = vmul.f32 %v274, %v528
        %v554 = vmul.f32 %v275, %v532
        %v555 = vmul.f32 %v276, %v536
        %v556 = vmul.f32 %v277, %v540
        %v557 = vmul.f32 %v278, %v528
        %v558 = vmul.f32 %v279, %v532
        %v559 = vmul.f32 %v280, %v536
        %v560 = vmul.f32 %v281, %v540
        %v561 = vmul.f32 %v282, %v528
        %v562 = vmul.f32 %v283, %v532
        %v563 = vmul.f32 %v284, %v536
        %v564 = vmul.f32 %v285, %v540
        %v565 = vmul.f32 %v286, %v528
        %v566 = vmul.f32 %v287, %v532
        %v567 = vmul.f32 %v288, %v536
        %v568 = vmul.f32 %v289, %v540
        %v569 = vmul.f32 %v290, %v528
        %v570 = vmul.f32 %v291, %v532
        %v571 = vmul.f32 %v292, %v536
        %v572 = vmul.f32 %v293, %v540
        %v573 = vmul.f32 %v294, %v528
        %v574 = vmul.f32 %v295, %v532
        %v575 = vmul.f32 %v296, %v536
        %v576 = vmul.f32 %v297, %v540
        %v577 = vmul.f32 %v298, %v528
        %v578 = vmul.f32 %v299, %v532
        %v579 = vmul.f32 %v300, %v536
        %v580 = vmul.f32 %v301, %v540
        %v581 = vmul.f32 %v302, %v528
        %v582 = vmul.f32 %v303, %v532
        %v583 = vmul.f32 %v304, %v536
        %v584 = vmul.f32 %v305, %v540
        %v585 = vmul.f32 %v306, %v528
        %v586 = vmul.f32 %v307, %v532
        %v587 = vmul.f32 %v308, %v536
        %v588 = vmul.f32 %v309, %v540
        %v589 = vmul.f32 %v310, %v528
        %v590 = vmul.f32 %v311, %v532
        %v591 = vmul.f32 %v312, %v536
        %v592 = vmul.f32 %v313, %v540
        %v593 = vmul.f32 %v314, %v528
        %v594 = vmul.f32 %v315, %v532
        %v595 = vmul.f32 %v316, %v536
        %v596 = vmul.f32 %v317, %v540
        %v597 = vmul.f32 %v318, %v528
        %v598 = vmul.f32 %v319, %v532
        %v599 = vmul.f32 %v320, %v536
        %v600 = vmul.f32 %v321, %v540
        %v601 = vmul.f32 %v322, %v528
        %v602 = vmul.f32 %v323, %v532
        %v603 = vmul.f32 %v324, %v536
        %v604 = vmul.f32 %v325, %v540
        %v605 = vmul.f32 %v326, %v528
        %v606 = vmul.f32 %v327, %v532
        %v607 = vmul.f32 %v328, %v536
        %v608 = vmul.f32 %v329, %v540
        %v609 = vmul.f32 %v330, %v528
        %v610 = vmul.f32 %v331, %v532
        %v611 = vmul.f32 %v332, %v536
        %v612 = vmul.f32 %v333, %v540
        %v613 = vmul.f32 %v334, %v528
        %v614 = vmul.f32 %v335, %v532
        %v615 = vmul.f32 %v336, %v536
        %v616 = vmul.f32 %v337, %v540
        %v617 = vmul.f32 %v338, %v528
        %v618 = vmul.f32 %v339, %v532
        %v619 = vmul.f32 %v340, %v536
        %v620 = vmul.f32 %v341, %v540
        %v621 = vmul.f32 %v342, %v528
        %v622 = vmul.f32 %v343, %v532
        %v623 = vmul.f32 %v344, %v536
        %v624 = vmul.f32 %v345, %v540
        %v625 = vmul.f32 %v346, %v528
        %v626 = vmul.f32 %v347, %v532
        %v627 = vmul.f32 %v348, %v536
        %v628 = vmul.f32 %v349, %v540
        %v629 = vmul.f32 %v350, %v528
        %v630 = vmul.f32 %v351, %v532
        %v631 = vmul.f32 %v352, %v536
        %v632 = vmul.f32 %v353, %v540
        %v633 = vmul.f32 %v354, %v528
        %v634 = vmul.f32 %v355, %v532
        %v635 = vmul.f32 %v356, %v536
        %v636 = vmul.f32 %v357, %v540
        %v637 = vmul.f32 %v358, %v528
        %v638 = vmul.f32 %v359, %v532
        %v639 = vmul.f32 %v360, %v536
        %v640 = vmul.f32 %v361, %v540
        %v641 = vmul.f32 %v362, %v528
        %v642 = vmul.f32 %v363, %v532
        %v643 = vmul.f32 %v364, %v536
        %v644 = vmul.f32 %v365, %v540
        %v645 = vmul.f32 %v366, %v528
        %v646 = vmul.f32 %v367, %v532
        %v647 = vmul.f32 %v368, %v536
        %v648 = vmul.f32 %v369, %v540
        %v649 = vmul.f32 %v370, %v528
        %v650 = vmul.f32 %v371, %v532
        %v651 = vmul.f32 %v372, %v536
        %v652 = vmul.f32 %v373, %v540
        %v653 = vmul.f32 %v374, %v528
        %v654 = vmul.f32 %v375, %v532
        %v655 = vmul.f32 %v376, %v536
        %v656 = vmul.f32 %v377, %v540
        %v657 = vmul.f32 %v378, %v528
        %v658 = vmul.f32 %v379, %v532
        %v659 = vmul.f32 %v380, %v536
        %v660 = vmul.f32 %v381, %v540
        %v661 = vmul.f32 %v382, %v528
        %v662 = vmul.f32 %v383, %v532
        %v663 = vmul.f32 %v384, %v536
        %v664 = vmul.f32 %v385, %v540
        %v665 = vmul.f32 %v386, %v528
        %v666 = vmul.f32 %v387, %v532
        %v667 = vmul.f32 %v388, %v536
        %v668 = vmul.f32 %v389, %v540
        %v669 = vmul.f32 %v390, %v528
        %v670 = vmul.f32 %v391, %v532
        %v671 = vmul.f32 %v392, %v536
        %v672 = vmul.f32 %v393, %v540
        %v673 = vmul.f32 %v394, %v528
        %v674 = vmul.f32 %v395, %v532
        %v675 = vmul.f32 %v396, %v536
        %v676 = vmul.f32 %v397, %v540
        %v677 = vmul.f32 %v398, %v528
        %v678 = vmul.f32 %v399, %v532
        %v679 = vmul.f32 %v400, %v536
        %v680 = vmul.f32 %v401, %v540
        %v681 = vmul.f32 %v402, %v528
        %v682 = vmul.f32 %v403, %v532
        %v683 = vmul.f32 %v404, %v536
        %v684 = vmul.f32 %v405, %v540
        %v685 = vmul.f32 %v406, %v528
        %v686 = vmul.f32 %v407, %v532
        %v687 = vmul.f32 %v408, %v536
        %v688 = vmul.f32 %v409, %v540
        %v689 = vmul.f32 %v410, %v528
        %v690 = vmul.f32 %v411, %v532
        %v691 = vmul.f32 %v412, %v536
        %v692 = vmul.f32 %v413, %v540
        %v693 = vmul.f32 %v414, %v528
        %v694 = vmul.f32 %v415, %v532
        %v695 = vmul.f32 %v416, %v536
        %v696 = vmul.f32 %v417, %v540
        %v697 = vmul.f32 %v418, %v528
        %v698 = vmul.f32 %v419, %v532
        %v699 = vmul.f32 %v420, %v536
        %v700 = vmul.f32 %v421, %v540
        %v701 = vmul.f32 %v422, %v528
        %v702 = vmul.f32 %v423, %v532
        %v703 = vmul.f32 %v424, %v536
        %v704 = vmul.f32 %v425, %v540
        %v705 = vmul.f32 %v426, %v528
        %v706 = vmul.f32 %v427, %v532
        %v707 = vmul.f32 %v428, %v536
        %v708 = vmul.f32 %v429, %v540
        %v709 = vmul.f32 %v430, %v528
        %v710 = vmul.f32 %v431, %v532
        %v711 = vmul.f32 %v432, %v536
        %v712 = vmul.f32 %v433, %v540
        %v713 = vmul.f32 %v434, %v528
        %v714 = vmul.f32 %v435, %v532
        %v715 = vmul.f32 %v436, %v536
        %v716 = vmul.f32 %v437, %v540
        %v717 = vmul.f32 %v438, %v528
        %v718 = vmul.f32 %v439, %v532
        %v719 = vmul.f32 %v440, %v536
        %v720 = vmul.f32 %v441, %v540
        %v721 = vmul.f32 %v442, %v528
        %v722 = vmul.f32 %v443, %v532
        %v723 = vmul.f32 %v444, %v536
        %v724 = vmul.f32 %v445, %v540
        %v725 = vmul.f32 %v446, %v528
        %v726 = vmul.f32 %v447, %v532
        %v727 = vmul.f32 %v448, %v536
        %v728 = vmul.f32 %v449, %v540
        %v729 = vmul.f32 %v450, %v528
        %v730 = vmul.f32 %v451, %v532
        %v731 = vmul.f32 %v452, %v536
        %v732 = vmul.f32 %v453, %v540
        %v733 = vmul.f32 %v454, %v528
        %v734 = vmul.f32 %v455, %v532
        %v735 = vmul.f32 %v456, %v536
        %v736 = vmul.f32 %v457, %v540
        %v737 = vmul.f32 %v458, %v528
        %v738 = vmul.f32 %v459, %v532
        %v739 = vmul.f32 %v460, %v536
        %v740 = vmul.f32 %v461, %v540
        %v741 = vmul.f32 %v462, %v528
        %v742 = vmul.f32 %v463, %v532
        %v743 = vmul.f32 %v464, %v536
        %v744 = vmul.f32 %v465, %v540
        %v745 = vmul.f32 %v466, %v528
        %v746 = vmul.f32 %v467, %v532
        %v747 = vmul.f32 %v468, %v536
        %v748 = vmul.f32 %v469, %v540
        %v749 = vmul.f32 %v470, %v528
        %v750 = vmul.f32 %v471, %v532
        %v751 = vmul.f32 %v472, %v536
        %v752 = vmul.f32 %v473, %v540
        %v753 = vmul.f32 %v474, %v528
        %v754 = vmul.f32 %v475, %v532
        %v755 = vmul.f32 %v476, %v536
        %v756 = vmul.f32 %v477, %v540
        %v757 = vmul.f32 %v478, %v528
        %v758 = vmul.f32 %v479, %v532
        %v759 = vmul.f32 %v480, %v536
        %v760 = vmul.f32 %v481, %v540
        %v761 = vmul.f32 %v482, %v528
        %v762 = vmul.f32 %v483, %v532
        %v763 = vmul.f32 %v484, %v536
        %v764 = vmul.f32 %v485, %v540
        %v765 = vmul.f32 %v486, %v528
        %v766 = vmul.f32 %v487, %v532
        %v767 = vmul.f32 %v488, %v536
        %v768 = vmul.f32 %v489, %v540
        %v769 = vmul.f32 %v490, %v528
        %v770 = vmul.f32 %v491, %v532
        %v771 = vmul.f32 %v492, %v536
        %v772 = vmul.f32 %v493, %v540
        %v773 = vmul.f32 %v494, %v528
        %v774 = vmul.f32 %v495, %v532
        %v775 = vmul.f32 %v496, %v536
        %v776 = vmul.f32 %v497, %v540
        %v777 = vmul.f32 %v498, %v528
        %v778 = vmul.f32 %v499, %v532
        %v779 = vmul.f32 %v500, %v536
        %v780 = vmul.f32 %v501, %v540
        %v781 = vmul.f32 %v502, %v528
        %v782 = vmul.f32 %v503, %v532
        %v783 = vmul.f32 %v504, %v536
        %v784 = vmul.f32 %v505, %v540
        %v785 = vmul.f32 %v506, %v528
        %v786 = vmul.f32 %v507, %v532
        %v787 = vmul.f32 %v508, %v536
        %v788 = vmul.f32 %v509, %v540
        %v789 = vmul.f32 %v510, %v528
        %v790 = vmul.f32 %v511, %v532
        %v791 = vmul.f32 %v512, %v536
        %v792 = vmul.f32 %v513, %v540
        %v793 = vmul.f32 %v514, %v528
        %v794 = vmul.f32 %v515, %v532
        %v795 = vmul.f32 %v516, %v536
        %v796 = vmul.f32 %v517, %v540
        %v797 = vmul.f32 %v518, %v528
        %v798 = vmul.f32 %v519, %v532
        %v799 = vmul.f32 %v520, %v536
        %v800 = vmul.f32 %v521, %v540
        %v801 = vadd.f32 %v545, %v546
        %v802 = vadd.f32 %v801, %v547
        %v803 = vadd.f32 %v802, %v548
        %804 = vadd.xlane.f32.xlu0 %v803
        %v805 = vpop.xlane.xlu0 %804
        %v806 = vadd.f32 %v549, %v550
        %v807 = vadd.f32 %v806, %v551
        %v808 = vadd.f32 %v807, %v552
        %809 = vadd.xlane.f32.xlu0 %v808
        %v810 = vpop.xlane.xlu0 %809
        %v811 = vadd.f32 %v553, %v554
        %v812 = vadd.f32 %v811, %v555
        %v813 = vadd.f32 %v812, %v556
        %814 = vadd.xlane.f32.xlu0 %v813
        %v815 = vpop.xlane.xlu0 %814
        %v816 = vadd.f32 %v557, %v558
        %v817 = vadd.f32 %v816, %v559
        %v818 = vadd.f32 %v817, %v560
        %819 = vadd.xlane.f32.xlu0 %v818
        %v820 = vpop.xlane.xlu0 %819
        %v821 = vadd.f32 %v561, %v562
        %v822 = vadd.f32 %v821, %v563
        %v823 = vadd.f32 %v822, %v564
        %824 = vadd.xlane.f32.xlu0 %v823
        %v825 = vpop.xlane.xlu0 %824
        %v826 = vadd.f32 %v565, %v566
        %v827 = vadd.f32 %v826, %v567
        %v828 = vadd.f32 %v827, %v568
        %829 = vadd.xlane.f32.xlu0 %v828
        %v830 = vpop.xlane.xlu0 %829
        %v831 = vadd.f32 %v569, %v570
        %v832 = vadd.f32 %v831, %v571
        %v833 = vadd.f32 %v832, %v572
        %834 = vadd.xlane.f32.xlu0 %v833
        %v835 = vpop.xlane.xlu0 %834
        %v836 = vadd.f32 %v573, %v574
        %v837 = vadd.f32 %v836, %v575
        %v838 = vadd.f32 %v837, %v576
        %839 = vadd.xlane.f32.xlu0 %v838
        %v840 = vpop.xlane.xlu0 %839
        %v841 = vadd.f32 %v577, %v578
        %v842 = vadd.f32 %v841, %v579
        %v843 = vadd.f32 %v842, %v580
        %844 = vadd.xlane.f32.xlu0 %v843
        %v845 = vpop.xlane.xlu0 %844
        %v846 = vadd.f32 %v581, %v582
        %v847 = vadd.f32 %v846, %v583
        %v848 = vadd.f32 %v847, %v584
        %849 = vadd.xlane.f32.xlu0 %v848
        %v850 = vpop.xlane.xlu0 %849
        %v851 = vadd.f32 %v585, %v586
        %v852 = vadd.f32 %v851, %v587
        %v853 = vadd.f32 %v852, %v588
        %854 = vadd.xlane.f32.xlu0 %v853
        %v855 = vpop.xlane.xlu0 %854
        %v856 = vadd.f32 %v589, %v590
        %v857 = vadd.f32 %v856, %v591
        %v858 = vadd.f32 %v857, %v592
        %859 = vadd.xlane.f32.xlu0 %v858
        %v860 = vpop.xlane.xlu0 %859
        %v861 = vadd.f32 %v593, %v594
        %v862 = vadd.f32 %v861, %v595
        %v863 = vadd.f32 %v862, %v596
        %864 = vadd.xlane.f32.xlu0 %v863
        %v865 = vpop.xlane.xlu0 %864
        %v866 = vadd.f32 %v597, %v598
        %v867 = vadd.f32 %v866, %v599
        %v868 = vadd.f32 %v867, %v600
        %869 = vadd.xlane.f32.xlu0 %v868
        %v870 = vpop.xlane.xlu0 %869
        %v871 = vadd.f32 %v601, %v602
        %v872 = vadd.f32 %v871, %v603
        %v873 = vadd.f32 %v872, %v604
        %874 = vadd.xlane.f32.xlu0 %v873
        %v875 = vpop.xlane.xlu0 %874
        %v876 = vadd.f32 %v605, %v606
        %v877 = vadd.f32 %v876, %v607
        %v878 = vadd.f32 %v877, %v608
        %879 = vadd.xlane.f32.xlu0 %v878
        %v880 = vpop.xlane.xlu0 %879
        %v881 = vadd.f32 %v609, %v610
        %v882 = vadd.f32 %v881, %v611
        %v883 = vadd.f32 %v882, %v612
        %884 = vadd.xlane.f32.xlu0 %v883
        %v885 = vpop.xlane.xlu0 %884
        %v886 = vadd.f32 %v613, %v614
        %v887 = vadd.f32 %v886, %v615
        %v888 = vadd.f32 %v887, %v616
        %889 = vadd.xlane.f32.xlu0 %v888
        %v890 = vpop.xlane.xlu0 %889
        %v891 = vadd.f32 %v617, %v618
        %v892 = vadd.f32 %v891, %v619
        %v893 = vadd.f32 %v892, %v620
        %894 = vadd.xlane.f32.xlu0 %v893
        %v895 = vpop.xlane.xlu0 %894
        %v896 = vadd.f32 %v621, %v622
        %v897 = vadd.f32 %v896, %v623
        %v898 = vadd.f32 %v897, %v624
        %899 = vadd.xlane.f32.xlu0 %v898
        %v900 = vpop.xlane.xlu0 %899
        %v901 = vadd.f32 %v625, %v626
        %v902 = vadd.f32 %v901, %v627
        %v903 = vadd.f32 %v902, %v628
        %904 = vadd.xlane.f32.xlu0 %v903
        %v905 = vpop.xlane.xlu0 %904
        %v906 = vadd.f32 %v629, %v630
        %v907 = vadd.f32 %v906, %v631
        %v908 = vadd.f32 %v907, %v632
        %909 = vadd.xlane.f32.xlu0 %v908
        %v910 = vpop.xlane.xlu0 %909
        %v911 = vadd.f32 %v633, %v634
        %v912 = vadd.f32 %v911, %v635
        %v913 = vadd.f32 %v912, %v636
        %914 = vadd.xlane.f32.xlu0 %v913
        %v915 = vpop.xlane.xlu0 %914
        %v916 = vadd.f32 %v637, %v638
        %v917 = vadd.f32 %v916, %v639
        %v918 = vadd.f32 %v917, %v640
        %919 = vadd.xlane.f32.xlu0 %v918
        %v920 = vpop.xlane.xlu0 %919
        %v921 = vadd.f32 %v641, %v642
        %v922 = vadd.f32 %v921, %v643
        %v923 = vadd.f32 %v922, %v644
        %924 = vadd.xlane.f32.xlu0 %v923
        %v925 = vpop.xlane.xlu0 %924
        %v926 = vadd.f32 %v645, %v646
        %v927 = vadd.f32 %v926, %v647
        %v928 = vadd.f32 %v927, %v648
        %929 = vadd.xlane.f32.xlu0 %v928
        %v930 = vpop.xlane.xlu0 %929
        %v931 = vadd.f32 %v649, %v650
        %v932 = vadd.f32 %v931, %v651
        %v933 = vadd.f32 %v932, %v652
        %934 = vadd.xlane.f32.xlu0 %v933
        %v935 = vpop.xlane.xlu0 %934
        %v936 = vadd.f32 %v653, %v654
        %v937 = vadd.f32 %v936, %v655
        %v938 = vadd.f32 %v937, %v656
        %939 = vadd.xlane.f32.xlu0 %v938
        %v940 = vpop.xlane.xlu0 %939
        %v941 = vadd.f32 %v657, %v658
        %v942 = vadd.f32 %v941, %v659
        %v943 = vadd.f32 %v942, %v660
        %944 = vadd.xlane.f32.xlu0 %v943
        %v945 = vpop.xlane.xlu0 %944
        %v946 = vadd.f32 %v661, %v662
        %v947 = vadd.f32 %v946, %v663
        %v948 = vadd.f32 %v947, %v664
        %949 = vadd.xlane.f32.xlu0 %v948
        %v950 = vpop.xlane.xlu0 %949
        %v951 = vadd.f32 %v665, %v666
        %v952 = vadd.f32 %v951, %v667
        %v953 = vadd.f32 %v952, %v668
        %954 = vadd.xlane.f32.xlu0 %v953
        %v955 = vpop.xlane.xlu0 %954
        %v956 = vadd.f32 %v669, %v670
        %v957 = vadd.f32 %v956, %v671
        %v958 = vadd.f32 %v957, %v672
        %959 = vadd.xlane.f32.xlu0 %v958
        %v960 = vpop.xlane.xlu0 %959
        %v961 = vadd.f32 %v673, %v674
        %v962 = vadd.f32 %v961, %v675
        %v963 = vadd.f32 %v962, %v676
        %964 = vadd.xlane.f32.xlu0 %v963
        %v965 = vpop.xlane.xlu0 %964
        %v966 = vadd.f32 %v677, %v678
        %v967 = vadd.f32 %v966, %v679
        %v968 = vadd.f32 %v967, %v680
        %969 = vadd.xlane.f32.xlu0 %v968
        %v970 = vpop.xlane.xlu0 %969
        %v971 = vadd.f32 %v681, %v682
        %v972 = vadd.f32 %v971, %v683
        %v973 = vadd.f32 %v972, %v684
        %974 = vadd.xlane.f32.xlu0 %v973
        %v975 = vpop.xlane.xlu0 %974
        %v976 = vadd.f32 %v685, %v686
        %v977 = vadd.f32 %v976, %v687
        %v978 = vadd.f32 %v977, %v688
        %979 = vadd.xlane.f32.xlu0 %v978
        %v980 = vpop.xlane.xlu0 %979
        %v981 = vadd.f32 %v689, %v690
        %v982 = vadd.f32 %v981, %v691
        %v983 = vadd.f32 %v982, %v692
        %984 = vadd.xlane.f32.xlu0 %v983
        %v985 = vpop.xlane.xlu0 %984
        %v986 = vadd.f32 %v693, %v694
        %v987 = vadd.f32 %v986, %v695
        %v988 = vadd.f32 %v987, %v696
        %989 = vadd.xlane.f32.xlu0 %v988
        %v990 = vpop.xlane.xlu0 %989
        %v991 = vadd.f32 %v697, %v698
        %v992 = vadd.f32 %v991, %v699
        %v993 = vadd.f32 %v992, %v700
        %994 = vadd.xlane.f32.xlu0 %v993
        %v995 = vpop.xlane.xlu0 %994
        %v996 = vadd.f32 %v701, %v702
        %v997 = vadd.f32 %v996, %v703
        %v998 = vadd.f32 %v997, %v704
        %999 = vadd.xlane.f32.xlu0 %v998
        %v1000 = vpop.xlane.xlu0 %999
        %v1001 = vadd.f32 %v705, %v706
        %v1002 = vadd.f32 %v1001, %v707
        %v1003 = vadd.f32 %v1002, %v708
        %1004 = vadd.xlane.f32.xlu0 %v1003
        %v1005 = vpop.xlane.xlu0 %1004
        %v1006 = vadd.f32 %v709, %v710
        %v1007 = vadd.f32 %v1006, %v711
        %v1008 = vadd.f32 %v1007, %v712
        %1009 = vadd.xlane.f32.xlu0 %v1008
        %v1010 = vpop.xlane.xlu0 %1009
        %v1011 = vadd.f32 %v713, %v714
        %v1012 = vadd.f32 %v1011, %v715
        %v1013 = vadd.f32 %v1012, %v716
        %1014 = vadd.xlane.f32.xlu0 %v1013
        %v1015 = vpop.xlane.xlu0 %1014
        %v1016 = vadd.f32 %v717, %v718
        %v1017 = vadd.f32 %v1016, %v719
        %v1018 = vadd.f32 %v1017, %v720
        %1019 = vadd.xlane.f32.xlu0 %v1018
        %v1020 = vpop.xlane.xlu0 %1019
        %v1021 = vadd.f32 %v721, %v722
        %v1022 = vadd.f32 %v1021, %v723
        %v1023 = vadd.f32 %v1022, %v724
        %1024 = vadd.xlane.f32.xlu0 %v1023
        %v1025 = vpop.xlane.xlu0 %1024
        %v1026 = vadd.f32 %v725, %v726
        %v1027 = vadd.f32 %v1026, %v727
        %v1028 = vadd.f32 %v1027, %v728
        %1029 = vadd.xlane.f32.xlu0 %v1028
        %v1030 = vpop.xlane.xlu0 %1029
        %v1031 = vadd.f32 %v729, %v730
        %v1032 = vadd.f32 %v1031, %v731
        %v1033 = vadd.f32 %v1032, %v732
        %1034 = vadd.xlane.f32.xlu0 %v1033
        %v1035 = vpop.xlane.xlu0 %1034
        %v1036 = vadd.f32 %v733, %v734
        %v1037 = vadd.f32 %v1036, %v735
        %v1038 = vadd.f32 %v1037, %v736
        %1039 = vadd.xlane.f32.xlu0 %v1038
        %v1040 = vpop.xlane.xlu0 %1039
        %v1041 = vadd.f32 %v737, %v738
        %v1042 = vadd.f32 %v1041, %v739
        %v1043 = vadd.f32 %v1042, %v740
        %1044 = vadd.xlane.f32.xlu0 %v1043
        %v1045 = vpop.xlane.xlu0 %1044
        %v1046 = vadd.f32 %v741, %v742
        %v1047 = vadd.f32 %v1046, %v743
        %v1048 = vadd.f32 %v1047, %v744
        %1049 = vadd.xlane.f32.xlu0 %v1048
        %v1050 = vpop.xlane.xlu0 %1049
        %v1051 = vadd.f32 %v745, %v746
        %v1052 = vadd.f32 %v1051, %v747
        %v1053 = vadd.f32 %v1052, %v748
        %1054 = vadd.xlane.f32.xlu0 %v1053
        %v1055 = vpop.xlane.xlu0 %1054
        %v1056 = vadd.f32 %v749, %v750
        %v1057 = vadd.f32 %v1056, %v751
        %v1058 = vadd.f32 %v1057, %v752
        %1059 = vadd.xlane.f32.xlu0 %v1058
        %v1060 = vpop.xlane.xlu0 %1059
        %v1061 = vadd.f32 %v753, %v754
        %v1062 = vadd.f32 %v1061, %v755
        %v1063 = vadd.f32 %v1062, %v756
        %1064 = vadd.xlane.f32.xlu0 %v1063
        %v1065 = vpop.xlane.xlu0 %1064
        %v1066 = vadd.f32 %v757, %v758
        %v1067 = vadd.f32 %v1066, %v759
        %v1068 = vadd.f32 %v1067, %v760
        %1069 = vadd.xlane.f32.xlu0 %v1068
        %v1070 = vpop.xlane.xlu0 %1069
        %v1071 = vadd.f32 %v761, %v762
        %v1072 = vadd.f32 %v1071, %v763
        %v1073 = vadd.f32 %v1072, %v764
        %1074 = vadd.xlane.f32.xlu0 %v1073
        %v1075 = vpop.xlane.xlu0 %1074
        %v1076 = vadd.f32 %v765, %v766
        %v1077 = vadd.f32 %v1076, %v767
        %v1078 = vadd.f32 %v1077, %v768
        %1079 = vadd.xlane.f32.xlu0 %v1078
        %v1080 = vpop.xlane.xlu0 %1079
        %v1081 = vadd.f32 %v769, %v770
        %v1082 = vadd.f32 %v1081, %v771
        %v1083 = vadd.f32 %v1082, %v772
        %1084 = vadd.xlane.f32.xlu0 %v1083
        %v1085 = vpop.xlane.xlu0 %1084
        %v1086 = vadd.f32 %v773, %v774
        %v1087 = vadd.f32 %v1086, %v775
        %v1088 = vadd.f32 %v1087, %v776
        %1089 = vadd.xlane.f32.xlu0 %v1088
        %v1090 = vpop.xlane.xlu0 %1089
        %v1091 = vadd.f32 %v777, %v778
        %v1092 = vadd.f32 %v1091, %v779
        %v1093 = vadd.f32 %v1092, %v780
        %1094 = vadd.xlane.f32.xlu0 %v1093
        %v1095 = vpop.xlane.xlu0 %1094
        %v1096 = vadd.f32 %v781, %v782
        %v1097 = vadd.f32 %v1096, %v783
        %v1098 = vadd.f32 %v1097, %v784
        %1099 = vadd.xlane.f32.xlu0 %v1098
        %v1100 = vpop.xlane.xlu0 %1099
        %v1101 = vadd.f32 %v785, %v786
        %v1102 = vadd.f32 %v1101, %v787
        %v1103 = vadd.f32 %v1102, %v788
        %1104 = vadd.xlane.f32.xlu0 %v1103
        %v1105 = vpop.xlane.xlu0 %1104
        %v1106 = vadd.f32 %v789, %v790
        %v1107 = vadd.f32 %v1106, %v791
        %v1108 = vadd.f32 %v1107, %v792
        %1109 = vadd.xlane.f32.xlu0 %v1108
        %v1110 = vpop.xlane.xlu0 %1109
        %v1111 = vadd.f32 %v793, %v794
        %v1112 = vadd.f32 %v1111, %v795
        %v1113 = vadd.f32 %v1112, %v796
        %1114 = vadd.xlane.f32.xlu0 %v1113
        %v1115 = vpop.xlane.xlu0 %1114
        %v1116 = vadd.f32 %v797, %v798
        %v1117 = vadd.f32 %v1116, %v799
        %v1118 = vadd.f32 %v1117, %v800
        %1119 = vadd.xlane.f32.xlu0 %v1118
        %v1120 = vpop.xlane.xlu0 %1119
        %v1122 = vlaneseq
        %v1123 = vshrl.u32 %v1122, 7
        %v1124 = vsub.s32 0, %v1123
        %v1125 = vrot.slane %v523, %v1124
        %v1126 = vlaneseq
        %v1127 = vshrl.u32 %v1126, 7
        %v1128 = vsub.s32 1, %v1127
        %v1129 = vrot.slane %v523, %v1128
        %v1130 = vlaneseq
        %v1131 = vshrl.u32 %v1130, 7
        %v1132 = vsub.s32 2, %v1131
        %v1133 = vrot.slane %v523, %v1132
        %v1134 = vlaneseq
        %v1135 = vshrl.u32 %v1134, 7
        %v1136 = vsub.s32 3, %v1135
        %v1137 = vrot.slane %v523, %v1136
        %v1142 = vmul.f32 %v266, %v1125
        %v1143 = vmul.f32 %v267, %v1129
        %v1144 = vmul.f32 %v268, %v1133
        %v1145 = vmul.f32 %v269, %v1137
        %v1146 = vmul.f32 %v270, %v1125
        %v1147 = vmul.f32 %v271, %v1129
        %v1148 = vmul.f32 %v272, %v1133
        %v1149 = vmul.f32 %v273, %v1137
        %v1150 = vmul.f32 %v274, %v1125
        %v1151 = vmul.f32 %v275, %v1129
        %v1152 = vmul.f32 %v276, %v1133
        %v1153 = vmul.f32 %v277, %v1137
        %v1154 = vmul.f32 %v278, %v1125
        %v1155 = vmul.f32 %v279, %v1129
        %v1156 = vmul.f32 %v280, %v1133
        %v1157 = vmul.f32 %v281, %v1137
        %v1158 = vmul.f32 %v282, %v1125
        %v1159 = vmul.f32 %v283, %v1129
        %v1160 = vmul.f32 %v284, %v1133
        %v1161 = vmul.f32 %v285, %v1137
        %v1162 = vmul.f32 %v286, %v1125
        %v1163 = vmul.f32 %v287, %v1129
        %v1164 = vmul.f32 %v288, %v1133
        %v1165 = vmul.f32 %v289, %v1137
        %v1166 = vmul.f32 %v290, %v1125
        %v1167 = vmul.f32 %v291, %v1129
        %v1168 = vmul.f32 %v292, %v1133
        %v1169 = vmul.f32 %v293, %v1137
        %v1170 = vmul.f32 %v294, %v1125
        %v1171 = vmul.f32 %v295, %v1129
        %v1172 = vmul.f32 %v296, %v1133
        %v1173 = vmul.f32 %v297, %v1137
        %v1174 = vmul.f32 %v298, %v1125
        %v1175 = vmul.f32 %v299, %v1129
        %v1176 = vmul.f32 %v300, %v1133
        %v1177 = vmul.f32 %v301, %v1137
        %v1178 = vmul.f32 %v302, %v1125
        %v1179 = vmul.f32 %v303, %v1129
        %v1180 = vmul.f32 %v304, %v1133
        %v1181 = vmul.f32 %v305, %v1137
        %v1182 = vmul.f32 %v306, %v1125
        %v1183 = vmul.f32 %v307, %v1129
        %v1184 = vmul.f32 %v308, %v1133
        %v1185 = vmul.f32 %v309, %v1137
        %v1186 = vmul.f32 %v310, %v1125
        %v1187 = vmul.f32 %v311, %v1129
        %v1188 = vmul.f32 %v312, %v1133
        %v1189 = vmul.f32 %v313, %v1137
        %v1190 = vmul.f32 %v314, %v1125
        %v1191 = vmul.f32 %v315, %v1129
        %v1192 = vmul.f32 %v316, %v1133
        %v1193 = vmul.f32 %v317, %v1137
        %v1194 = vmul.f32 %v318, %v1125
        %v1195 = vmul.f32 %v319, %v1129
        %v1196 = vmul.f32 %v320, %v1133
        %v1197 = vmul.f32 %v321, %v1137
        %v1198 = vmul.f32 %v322, %v1125
        %v1199 = vmul.f32 %v323, %v1129
        %v1200 = vmul.f32 %v324, %v1133
        %v1201 = vmul.f32 %v325, %v1137
        %v1202 = vmul.f32 %v326, %v1125
        %v1203 = vmul.f32 %v327, %v1129
        %v1204 = vmul.f32 %v328, %v1133
        %v1205 = vmul.f32 %v329, %v1137
        %v1206 = vmul.f32 %v330, %v1125
        %v1207 = vmul.f32 %v331, %v1129
        %v1208 = vmul.f32 %v332, %v1133
        %v1209 = vmul.f32 %v333, %v1137
        %v1210 = vmul.f32 %v334, %v1125
        %v1211 = vmul.f32 %v335, %v1129
        %v1212 = vmul.f32 %v336, %v1133
        %v1213 = vmul.f32 %v337, %v1137
        %v1214 = vmul.f32 %v338, %v1125
        %v1215 = vmul.f32 %v339, %v1129
        %v1216 = vmul.f32 %v340, %v1133
        %v1217 = vmul.f32 %v341, %v1137
        %v1218 = vmul.f32 %v342, %v1125
        %v1219 = vmul.f32 %v343, %v1129
        %v1220 = vmul.f32 %v344, %v1133
        %v1221 = vmul.f32 %v345, %v1137
        %v1222 = vmul.f32 %v346, %v1125
        %v1223 = vmul.f32 %v347, %v1129
        %v1224 = vmul.f32 %v348, %v1133
        %v1225 = vmul.f32 %v349, %v1137
        %v1226 = vmul.f32 %v350, %v1125
        %v1227 = vmul.f32 %v351, %v1129
        %v1228 = vmul.f32 %v352, %v1133
        %v1229 = vmul.f32 %v353, %v1137
        %v1230 = vmul.f32 %v354, %v1125
        %v1231 = vmul.f32 %v355, %v1129
        %v1232 = vmul.f32 %v356, %v1133
        %v1233 = vmul.f32 %v357, %v1137
        %v1234 = vmul.f32 %v358, %v1125
        %v1235 = vmul.f32 %v359, %v1129
        %v1236 = vmul.f32 %v360, %v1133
        %v1237 = vmul.f32 %v361, %v1137
        %v1238 = vmul.f32 %v362, %v1125
        %v1239 = vmul.f32 %v363, %v1129
        %v1240 = vmul.f32 %v364, %v1133
        %v1241 = vmul.f32 %v365, %v1137
        %v1242 = vmul.f32 %v366, %v1125
        %v1243 = vmul.f32 %v367, %v1129
        %v1244 = vmul.f32 %v368, %v1133
        %v1245 = vmul.f32 %v369, %v1137
        %v1246 = vmul.f32 %v370, %v1125
        %v1247 = vmul.f32 %v371, %v1129
        %v1248 = vmul.f32 %v372, %v1133
        %v1249 = vmul.f32 %v373, %v1137
        %v1250 = vmul.f32 %v374, %v1125
        %v1251 = vmul.f32 %v375, %v1129
        %v1252 = vmul.f32 %v376, %v1133
        %v1253 = vmul.f32 %v377, %v1137
        %v1254 = vmul.f32 %v378, %v1125
        %v1255 = vmul.f32 %v379, %v1129
        %v1256 = vmul.f32 %v380, %v1133
        %v1257 = vmul.f32 %v381, %v1137
        %v1258 = vmul.f32 %v382, %v1125
        %v1259 = vmul.f32 %v383, %v1129
        %v1260 = vmul.f32 %v384, %v1133
        %v1261 = vmul.f32 %v385, %v1137
        %v1262 = vmul.f32 %v386, %v1125
        %v1263 = vmul.f32 %v387, %v1129
        %v1264 = vmul.f32 %v388, %v1133
        %v1265 = vmul.f32 %v389, %v1137
        %v1266 = vmul.f32 %v390, %v1125
        %v1267 = vmul.f32 %v391, %v1129
        %v1268 = vmul.f32 %v392, %v1133
        %v1269 = vmul.f32 %v393, %v1137
        %v1270 = vmul.f32 %v394, %v1125
        %v1271 = vmul.f32 %v395, %v1129
        %v1272 = vmul.f32 %v396, %v1133
        %v1273 = vmul.f32 %v397, %v1137
        %v1274 = vmul.f32 %v398, %v1125
        %v1275 = vmul.f32 %v399, %v1129
        %v1276 = vmul.f32 %v400, %v1133
        %v1277 = vmul.f32 %v401, %v1137
        %v1278 = vmul.f32 %v402, %v1125
        %v1279 = vmul.f32 %v403, %v1129
        %v1280 = vmul.f32 %v404, %v1133
        %v1281 = vmul.f32 %v405, %v1137
        %v1282 = vmul.f32 %v406, %v1125
        %v1283 = vmul.f32 %v407, %v1129
        %v1284 = vmul.f32 %v408, %v1133
        %v1285 = vmul.f32 %v409, %v1137
        %v1286 = vmul.f32 %v410, %v1125
        %v1287 = vmul.f32 %v411, %v1129
        %v1288 = vmul.f32 %v412, %v1133
        %v1289 = vmul.f32 %v413, %v1137
        %v1290 = vmul.f32 %v414, %v1125
        %v1291 = vmul.f32 %v415, %v1129
        %v1292 = vmul.f32 %v416, %v1133
        %v1293 = vmul.f32 %v417, %v1137
        %v1294 = vmul.f32 %v418, %v1125
        %v1295 = vmul.f32 %v419, %v1129
        %v1296 = vmul.f32 %v420, %v1133
        %v1297 = vmul.f32 %v421, %v1137
        %v1298 = vmul.f32 %v422, %v1125
        %v1299 = vmul.f32 %v423, %v1129
        %v1300 = vmul.f32 %v424, %v1133
        %v1301 = vmul.f32 %v425, %v1137
        %v1302 = vmul.f32 %v426, %v1125
        %v1303 = vmul.f32 %v427, %v1129
        %v1304 = vmul.f32 %v428, %v1133
        %v1305 = vmul.f32 %v429, %v1137
        %v1306 = vmul.f32 %v430, %v1125
        %v1307 = vmul.f32 %v431, %v1129
        %v1308 = vmul.f32 %v432, %v1133
        %v1309 = vmul.f32 %v433, %v1137
        %v1310 = vmul.f32 %v434, %v1125
        %v1311 = vmul.f32 %v435, %v1129
        %v1312 = vmul.f32 %v436, %v1133
        %v1313 = vmul.f32 %v437, %v1137
        %v1314 = vmul.f32 %v438, %v1125
        %v1315 = vmul.f32 %v439, %v1129
        %v1316 = vmul.f32 %v440, %v1133
        %v1317 = vmul.f32 %v441, %v1137
        %v1318 = vmul.f32 %v442, %v1125
        %v1319 = vmul.f32 %v443, %v1129
        %v1320 = vmul.f32 %v444, %v1133
        %v1321 = vmul.f32 %v445, %v1137
        %v1322 = vmul.f32 %v446, %v1125
        %v1323 = vmul.f32 %v447, %v1129
        %v1324 = vmul.f32 %v448, %v1133
        %v1325 = vmul.f32 %v449, %v1137
        %v1326 = vmul.f32 %v450, %v1125
        %v1327 = vmul.f32 %v451, %v1129
        %v1328 = vmul.f32 %v452, %v1133
        %v1329 = vmul.f32 %v453, %v1137
        %v1330 = vmul.f32 %v454, %v1125
        %v1331 = vmul.f32 %v455, %v1129
        %v1332 = vmul.f32 %v456, %v1133
        %v1333 = vmul.f32 %v457, %v1137
        %v1334 = vmul.f32 %v458, %v1125
        %v1335 = vmul.f32 %v459, %v1129
        %v1336 = vmul.f32 %v460, %v1133
        %v1337 = vmul.f32 %v461, %v1137
        %v1338 = vmul.f32 %v462, %v1125
        %v1339 = vmul.f32 %v463, %v1129
        %v1340 = vmul.f32 %v464, %v1133
        %v1341 = vmul.f32 %v465, %v1137
        %v1342 = vmul.f32 %v466, %v1125
        %v1343 = vmul.f32 %v467, %v1129
        %v1344 = vmul.f32 %v468, %v1133
        %v1345 = vmul.f32 %v469, %v1137
        %v1346 = vmul.f32 %v470, %v1125
        %v1347 = vmul.f32 %v471, %v1129
        %v1348 = vmul.f32 %v472, %v1133
        %v1349 = vmul.f32 %v473, %v1137
        %v1350 = vmul.f32 %v474, %v1125
        %v1351 = vmul.f32 %v475, %v1129
        %v1352 = vmul.f32 %v476, %v1133
        %v1353 = vmul.f32 %v477, %v1137
        %v1354 = vmul.f32 %v478, %v1125
        %v1355 = vmul.f32 %v479, %v1129
        %v1356 = vmul.f32 %v480, %v1133
        %v1357 = vmul.f32 %v481, %v1137
        %v1358 = vmul.f32 %v482, %v1125
        %v1359 = vmul.f32 %v483, %v1129
        %v1360 = vmul.f32 %v484, %v1133
        %v1361 = vmul.f32 %v485, %v1137
        %v1362 = vmul.f32 %v486, %v1125
        %v1363 = vmul.f32 %v487, %v1129
        %v1364 = vmul.f32 %v488, %v1133
        %v1365 = vmul.f32 %v489, %v1137
        %v1366 = vmul.f32 %v490, %v1125
        %v1367 = vmul.f32 %v491, %v1129
        %v1368 = vmul.f32 %v492, %v1133
        %v1369 = vmul.f32 %v493, %v1137
        %v1370 = vmul.f32 %v494, %v1125
        %v1371 = vmul.f32 %v495, %v1129
        %v1372 = vmul.f32 %v496, %v1133
        %v1373 = vmul.f32 %v497, %v1137
        %v1374 = vmul.f32 %v498, %v1125
        %v1375 = vmul.f32 %v499, %v1129
        %v1376 = vmul.f32 %v500, %v1133
        %v1377 = vmul.f32 %v501, %v1137
        %v1378 = vmul.f32 %v502, %v1125
        %v1379 = vmul.f32 %v503, %v1129
        %v1380 = vmul.f32 %v504, %v1133
        %v1381 = vmul.f32 %v505, %v1137
        %v1382 = vmul.f32 %v506, %v1125
        %v1383 = vmul.f32 %v507, %v1129
        %v1384 = vmul.f32 %v508, %v1133
        %v1385 = vmul.f32 %v509, %v1137
        %v1386 = vmul.f32 %v510, %v1125
        %v1387 = vmul.f32 %v511, %v1129
        %v1388 = vmul.f32 %v512, %v1133
        %v1389 = vmul.f32 %v513, %v1137
        %v1390 = vmul.f32 %v514, %v1125
        %v1391 = vmul.f32 %v515, %v1129
        %v1392 = vmul.f32 %v516, %v1133
        %v1393 = vmul.f32 %v517, %v1137
        %v1394 = vmul.f32 %v518, %v1125
        %v1395 = vmul.f32 %v519, %v1129
        %v1396 = vmul.f32 %v520, %v1133
        %v1397 = vmul.f32 %v521, %v1137
        %v1398 = vadd.f32 %v1142, %v1143
        %v1399 = vadd.f32 %v1398, %v1144
        %v1400 = vadd.f32 %v1399, %v1145
        %1401 = vadd.xlane.f32.xlu0 %v1400
        %v1402 = vpop.xlane.xlu0 %1401
        %v1403 = vadd.f32 %v1146, %v1147
        %v1404 = vadd.f32 %v1403, %v1148
        %v1405 = vadd.f32 %v1404, %v1149
        %1406 = vadd.xlane.f32.xlu0 %v1405
        %v1407 = vpop.xlane.xlu0 %1406
        %v1408 = vadd.f32 %v1150, %v1151
        %v1409 = vadd.f32 %v1408, %v1152
        %v1410 = vadd.f32 %v1409, %v1153
        %1411 = vadd.xlane.f32.xlu0 %v1410
        %v1412 = vpop.xlane.xlu0 %1411
        %v1413 = vadd.f32 %v1154, %v1155
        %v1414 = vadd.f32 %v1413, %v1156
        %v1415 = vadd.f32 %v1414, %v1157
        %1416 = vadd.xlane.f32.xlu0 %v1415
        %v1417 = vpop.xlane.xlu0 %1416
        %v1418 = vadd.f32 %v1158, %v1159
        %v1419 = vadd.f32 %v1418, %v1160
        %v1420 = vadd.f32 %v1419, %v1161
        %1421 = vadd.xlane.f32.xlu0 %v1420
        %v1422 = vpop.xlane.xlu0 %1421
        %v1423 = vadd.f32 %v1162, %v1163
        %v1424 = vadd.f32 %v1423, %v1164
        %v1425 = vadd.f32 %v1424, %v1165
        %1426 = vadd.xlane.f32.xlu0 %v1425
        %v1427 = vpop.xlane.xlu0 %1426
        %v1428 = vadd.f32 %v1166, %v1167
        %v1429 = vadd.f32 %v1428, %v1168
        %v1430 = vadd.f32 %v1429, %v1169
        %1431 = vadd.xlane.f32.xlu0 %v1430
        %v1432 = vpop.xlane.xlu0 %1431
        %v1433 = vadd.f32 %v1170, %v1171
        %v1434 = vadd.f32 %v1433, %v1172
        %v1435 = vadd.f32 %v1434, %v1173
        %1436 = vadd.xlane.f32.xlu0 %v1435
        %v1437 = vpop.xlane.xlu0 %1436
        %v1438 = vadd.f32 %v1174, %v1175
        %v1439 = vadd.f32 %v1438, %v1176
        %v1440 = vadd.f32 %v1439, %v1177
        %1441 = vadd.xlane.f32.xlu0 %v1440
        %v1442 = vpop.xlane.xlu0 %1441
        %v1443 = vadd.f32 %v1178, %v1179
        %v1444 = vadd.f32 %v1443, %v1180
        %v1445 = vadd.f32 %v1444, %v1181
        %1446 = vadd.xlane.f32.xlu0 %v1445
        %v1447 = vpop.xlane.xlu0 %1446
        %v1448 = vadd.f32 %v1182, %v1183
        %v1449 = vadd.f32 %v1448, %v1184
        %v1450 = vadd.f32 %v1449, %v1185
        %1451 = vadd.xlane.f32.xlu0 %v1450
        %v1452 = vpop.xlane.xlu0 %1451
        %v1453 = vadd.f32 %v1186, %v1187
        %v1454 = vadd.f32 %v1453, %v1188
        %v1455 = vadd.f32 %v1454, %v1189
        %1456 = vadd.xlane.f32.xlu0 %v1455
        %v1457 = vpop.xlane.xlu0 %1456
        %v1458 = vadd.f32 %v1190, %v1191
        %v1459 = vadd.f32 %v1458, %v1192
        %v1460 = vadd.f32 %v1459, %v1193
        %1461 = vadd.xlane.f32.xlu0 %v1460
        %v1462 = vpop.xlane.xlu0 %1461
        %v1463 = vadd.f32 %v1194, %v1195
        %v1464 = vadd.f32 %v1463, %v1196
        %v1465 = vadd.f32 %v1464, %v1197
        %1466 = vadd.xlane.f32.xlu0 %v1465
        %v1467 = vpop.xlane.xlu0 %1466
        %v1468 = vadd.f32 %v1198, %v1199
        %v1469 = vadd.f32 %v1468, %v1200
        %v1470 = vadd.f32 %v1469, %v1201
        %1471 = vadd.xlane.f32.xlu0 %v1470
        %v1472 = vpop.xlane.xlu0 %1471
        %v1473 = vadd.f32 %v1202, %v1203
        %v1474 = vadd.f32 %v1473, %v1204
        %v1475 = vadd.f32 %v1474, %v1205
        %1476 = vadd.xlane.f32.xlu0 %v1475
        %v1477 = vpop.xlane.xlu0 %1476
        %v1478 = vadd.f32 %v1206, %v1207
        %v1479 = vadd.f32 %v1478, %v1208
        %v1480 = vadd.f32 %v1479, %v1209
        %1481 = vadd.xlane.f32.xlu0 %v1480
        %v1482 = vpop.xlane.xlu0 %1481
        %v1483 = vadd.f32 %v1210, %v1211
        %v1484 = vadd.f32 %v1483, %v1212
        %v1485 = vadd.f32 %v1484, %v1213
        %1486 = vadd.xlane.f32.xlu0 %v1485
        %v1487 = vpop.xlane.xlu0 %1486
        %v1488 = vadd.f32 %v1214, %v1215
        %v1489 = vadd.f32 %v1488, %v1216
        %v1490 = vadd.f32 %v1489, %v1217
        %1491 = vadd.xlane.f32.xlu0 %v1490
        %v1492 = vpop.xlane.xlu0 %1491
        %v1493 = vadd.f32 %v1218, %v1219
        %v1494 = vadd.f32 %v1493, %v1220
        %v1495 = vadd.f32 %v1494, %v1221
        %1496 = vadd.xlane.f32.xlu0 %v1495
        %v1497 = vpop.xlane.xlu0 %1496
        %v1498 = vadd.f32 %v1222, %v1223
        %v1499 = vadd.f32 %v1498, %v1224
        %v1500 = vadd.f32 %v1499, %v1225
        %1501 = vadd.xlane.f32.xlu0 %v1500
        %v1502 = vpop.xlane.xlu0 %1501
        %v1503 = vadd.f32 %v1226, %v1227
        %v1504 = vadd.f32 %v1503, %v1228
        %v1505 = vadd.f32 %v1504, %v1229
        %1506 = vadd.xlane.f32.xlu0 %v1505
        %v1507 = vpop.xlane.xlu0 %1506
        %v1508 = vadd.f32 %v1230, %v1231
        %v1509 = vadd.f32 %v1508, %v1232
        %v1510 = vadd.f32 %v1509, %v1233
        %1511 = vadd.xlane.f32.xlu0 %v1510
        %v1512 = vpop.xlane.xlu0 %1511
        %v1513 = vadd.f32 %v1234, %v1235
        %v1514 = vadd.f32 %v1513, %v1236
        %v1515 = vadd.f32 %v1514, %v1237
        %1516 = vadd.xlane.f32.xlu0 %v1515
        %v1517 = vpop.xlane.xlu0 %1516
        %v1518 = vadd.f32 %v1238, %v1239
        %v1519 = vadd.f32 %v1518, %v1240
        %v1520 = vadd.f32 %v1519, %v1241
        %1521 = vadd.xlane.f32.xlu0 %v1520
        %v1522 = vpop.xlane.xlu0 %1521
        %v1523 = vadd.f32 %v1242, %v1243
        %v1524 = vadd.f32 %v1523, %v1244
        %v1525 = vadd.f32 %v1524, %v1245
        %1526 = vadd.xlane.f32.xlu0 %v1525
        %v1527 = vpop.xlane.xlu0 %1526
        %v1528 = vadd.f32 %v1246, %v1247
        %v1529 = vadd.f32 %v1528, %v1248
        %v1530 = vadd.f32 %v1529, %v1249
        %1531 = vadd.xlane.f32.xlu0 %v1530
        %v1532 = vpop.xlane.xlu0 %1531
        %v1533 = vadd.f32 %v1250, %v1251
        %v1534 = vadd.f32 %v1533, %v1252
        %v1535 = vadd.f32 %v1534, %v1253
        %1536 = vadd.xlane.f32.xlu0 %v1535
        %v1537 = vpop.xlane.xlu0 %1536
        %v1538 = vadd.f32 %v1254, %v1255
        %v1539 = vadd.f32 %v1538, %v1256
        %v1540 = vadd.f32 %v1539, %v1257
        %1541 = vadd.xlane.f32.xlu0 %v1540
        %v1542 = vpop.xlane.xlu0 %1541
        %v1543 = vadd.f32 %v1258, %v1259
        %v1544 = vadd.f32 %v1543, %v1260
        %v1545 = vadd.f32 %v1544, %v1261
        %1546 = vadd.xlane.f32.xlu0 %v1545
        %v1547 = vpop.xlane.xlu0 %1546
        %v1548 = vadd.f32 %v1262, %v1263
        %v1549 = vadd.f32 %v1548, %v1264
        %v1550 = vadd.f32 %v1549, %v1265
        %1551 = vadd.xlane.f32.xlu0 %v1550
        %v1552 = vpop.xlane.xlu0 %1551
        %v1553 = vadd.f32 %v1266, %v1267
        %v1554 = vadd.f32 %v1553, %v1268
        %v1555 = vadd.f32 %v1554, %v1269
        %1556 = vadd.xlane.f32.xlu0 %v1555
        %v1557 = vpop.xlane.xlu0 %1556
        %v1558 = vadd.f32 %v1270, %v1271
        %v1559 = vadd.f32 %v1558, %v1272
        %v1560 = vadd.f32 %v1559, %v1273
        %1561 = vadd.xlane.f32.xlu0 %v1560
        %v1562 = vpop.xlane.xlu0 %1561
        %v1563 = vadd.f32 %v1274, %v1275
        %v1564 = vadd.f32 %v1563, %v1276
        %v1565 = vadd.f32 %v1564, %v1277
        %1566 = vadd.xlane.f32.xlu0 %v1565
        %v1567 = vpop.xlane.xlu0 %1566
        %v1568 = vadd.f32 %v1278, %v1279
        %v1569 = vadd.f32 %v1568, %v1280
        %v1570 = vadd.f32 %v1569, %v1281
        %1571 = vadd.xlane.f32.xlu0 %v1570
        %v1572 = vpop.xlane.xlu0 %1571
        %v1573 = vadd.f32 %v1282, %v1283
        %v1574 = vadd.f32 %v1573, %v1284
        %v1575 = vadd.f32 %v1574, %v1285
        %1576 = vadd.xlane.f32.xlu0 %v1575
        %v1577 = vpop.xlane.xlu0 %1576
        %v1578 = vadd.f32 %v1286, %v1287
        %v1579 = vadd.f32 %v1578, %v1288
        %v1580 = vadd.f32 %v1579, %v1289
        %1581 = vadd.xlane.f32.xlu0 %v1580
        %v1582 = vpop.xlane.xlu0 %1581
        %v1583 = vadd.f32 %v1290, %v1291
        %v1584 = vadd.f32 %v1583, %v1292
        %v1585 = vadd.f32 %v1584, %v1293
        %1586 = vadd.xlane.f32.xlu0 %v1585
        %v1587 = vpop.xlane.xlu0 %1586
        %v1588 = vadd.f32 %v1294, %v1295
        %v1589 = vadd.f32 %v1588, %v1296
        %v1590 = vadd.f32 %v1589, %v1297
        %1591 = vadd.xlane.f32.xlu0 %v1590
        %v1592 = vpop.xlane.xlu0 %1591
        %v1593 = vadd.f32 %v1298, %v1299
        %v1594 = vadd.f32 %v1593, %v1300
        %v1595 = vadd.f32 %v1594, %v1301
        %1596 = vadd.xlane.f32.xlu0 %v1595
        %v1597 = vpop.xlane.xlu0 %1596
        %v1598 = vadd.f32 %v1302, %v1303
        %v1599 = vadd.f32 %v1598, %v1304
        %v1600 = vadd.f32 %v1599, %v1305
        %1601 = vadd.xlane.f32.xlu0 %v1600
        %v1602 = vpop.xlane.xlu0 %1601
        %v1603 = vadd.f32 %v1306, %v1307
        %v1604 = vadd.f32 %v1603, %v1308
        %v1605 = vadd.f32 %v1604, %v1309
        %1606 = vadd.xlane.f32.xlu0 %v1605
        %v1607 = vpop.xlane.xlu0 %1606
        %v1608 = vadd.f32 %v1310, %v1311
        %v1609 = vadd.f32 %v1608, %v1312
        %v1610 = vadd.f32 %v1609, %v1313
        %1611 = vadd.xlane.f32.xlu0 %v1610
        %v1612 = vpop.xlane.xlu0 %1611
        %v1613 = vadd.f32 %v1314, %v1315
        %v1614 = vadd.f32 %v1613, %v1316
        %v1615 = vadd.f32 %v1614, %v1317
        %1616 = vadd.xlane.f32.xlu0 %v1615
        %v1617 = vpop.xlane.xlu0 %1616
        %v1618 = vadd.f32 %v1318, %v1319
        %v1619 = vadd.f32 %v1618, %v1320
        %v1620 = vadd.f32 %v1619, %v1321
        %1621 = vadd.xlane.f32.xlu0 %v1620
        %v1622 = vpop.xlane.xlu0 %1621
        %v1623 = vadd.f32 %v1322, %v1323
        %v1624 = vadd.f32 %v1623, %v1324
        %v1625 = vadd.f32 %v1624, %v1325
        %1626 = vadd.xlane.f32.xlu0 %v1625
        %v1627 = vpop.xlane.xlu0 %1626
        %v1628 = vadd.f32 %v1326, %v1327
        %v1629 = vadd.f32 %v1628, %v1328
        %v1630 = vadd.f32 %v1629, %v1329
        %1631 = vadd.xlane.f32.xlu0 %v1630
        %v1632 = vpop.xlane.xlu0 %1631
        %v1633 = vadd.f32 %v1330, %v1331
        %v1634 = vadd.f32 %v1633, %v1332
        %v1635 = vadd.f32 %v1634, %v1333
        %1636 = vadd.xlane.f32.xlu0 %v1635
        %v1637 = vpop.xlane.xlu0 %1636
        %v1638 = vadd.f32 %v1334, %v1335
        %v1639 = vadd.f32 %v1638, %v1336
        %v1640 = vadd.f32 %v1639, %v1337
        %1641 = vadd.xlane.f32.xlu0 %v1640
        %v1642 = vpop.xlane.xlu0 %1641
        %v1643 = vadd.f32 %v1338, %v1339
        %v1644 = vadd.f32 %v1643, %v1340
        %v1645 = vadd.f32 %v1644, %v1341
        %1646 = vadd.xlane.f32.xlu0 %v1645
        %v1647 = vpop.xlane.xlu0 %1646
        %v1648 = vadd.f32 %v1342, %v1343
        %v1649 = vadd.f32 %v1648, %v1344
        %v1650 = vadd.f32 %v1649, %v1345
        %1651 = vadd.xlane.f32.xlu0 %v1650
        %v1652 = vpop.xlane.xlu0 %1651
        %v1653 = vadd.f32 %v1346, %v1347
        %v1654 = vadd.f32 %v1653, %v1348
        %v1655 = vadd.f32 %v1654, %v1349
        %1656 = vadd.xlane.f32.xlu0 %v1655
        %v1657 = vpop.xlane.xlu0 %1656
        %v1658 = vadd.f32 %v1350, %v1351
        %v1659 = vadd.f32 %v1658, %v1352
        %v1660 = vadd.f32 %v1659, %v1353
        %1661 = vadd.xlane.f32.xlu0 %v1660
        %v1662 = vpop.xlane.xlu0 %1661
        %v1663 = vadd.f32 %v1354, %v1355
        %v1664 = vadd.f32 %v1663, %v1356
        %v1665 = vadd.f32 %v1664, %v1357
        %1666 = vadd.xlane.f32.xlu0 %v1665
        %v1667 = vpop.xlane.xlu0 %1666
        %v1668 = vadd.f32 %v1358, %v1359
        %v1669 = vadd.f32 %v1668, %v1360
        %v1670 = vadd.f32 %v1669, %v1361
        %1671 = vadd.xlane.f32.xlu0 %v1670
        %v1672 = vpop.xlane.xlu0 %1671
        %v1673 = vadd.f32 %v1362, %v1363
        %v1674 = vadd.f32 %v1673, %v1364
        %v1675 = vadd.f32 %v1674, %v1365
        %1676 = vadd.xlane.f32.xlu0 %v1675
        %v1677 = vpop.xlane.xlu0 %1676
        %v1678 = vadd.f32 %v1366, %v1367
        %v1679 = vadd.f32 %v1678, %v1368
        %v1680 = vadd.f32 %v1679, %v1369
        %1681 = vadd.xlane.f32.xlu0 %v1680
        %v1682 = vpop.xlane.xlu0 %1681
        %v1683 = vadd.f32 %v1370, %v1371
        %v1684 = vadd.f32 %v1683, %v1372
        %v1685 = vadd.f32 %v1684, %v1373
        %1686 = vadd.xlane.f32.xlu0 %v1685
        %v1687 = vpop.xlane.xlu0 %1686
        %v1688 = vadd.f32 %v1374, %v1375
        %v1689 = vadd.f32 %v1688, %v1376
        %v1690 = vadd.f32 %v1689, %v1377
        %1691 = vadd.xlane.f32.xlu0 %v1690
        %v1692 = vpop.xlane.xlu0 %1691
        %v1693 = vadd.f32 %v1378, %v1379
        %v1694 = vadd.f32 %v1693, %v1380
        %v1695 = vadd.f32 %v1694, %v1381
        %1696 = vadd.xlane.f32.xlu0 %v1695
        %v1697 = vpop.xlane.xlu0 %1696
        %v1698 = vadd.f32 %v1382, %v1383
        %v1699 = vadd.f32 %v1698, %v1384
        %v1700 = vadd.f32 %v1699, %v1385
        %1701 = vadd.xlane.f32.xlu0 %v1700
        %v1702 = vpop.xlane.xlu0 %1701
        %v1703 = vadd.f32 %v1386, %v1387
        %v1704 = vadd.f32 %v1703, %v1388
        %v1705 = vadd.f32 %v1704, %v1389
        %1706 = vadd.xlane.f32.xlu0 %v1705
        %v1707 = vpop.xlane.xlu0 %1706
        %v1708 = vadd.f32 %v1390, %v1391
        %v1709 = vadd.f32 %v1708, %v1392
        %v1710 = vadd.f32 %v1709, %v1393
        %1711 = vadd.xlane.f32.xlu0 %v1710
        %v1712 = vpop.xlane.xlu0 %1711
        %v1713 = vadd.f32 %v1394, %v1395
        %v1714 = vadd.f32 %v1713, %v1396
        %v1715 = vadd.f32 %v1714, %v1397
        %1716 = vadd.xlane.f32.xlu0 %v1715
        %v1717 = vpop.xlane.xlu0 %1716
        %v1718 = vld [vmem:[#allocation2] sm:$0x1]
        %v1720 = vlaneseq
        %v1721 = vshrl.u32 %v1720, 7
        %v1722 = vsub.s32 0, %v1721
        %v1723 = vrot.slane %v1718, %v1722
        %1724 = vset.pattern.permute.xlu0 0
        %1725 = vperm.xlu0 %1724, %v1723
        %v1726 = vpop.permute.xlu0 %1725
        %v1728 = vadd.f32 %v1402, %v1726
        %v1729 = vadd.f32 %v1407, %v1726
        %v1730 = vadd.f32 %v1412, %v1726
        %v1731 = vadd.f32 %v1417, %v1726
        %v1732 = vadd.f32 %v1422, %v1726
        %v1733 = vadd.f32 %v1427, %v1726
        %v1734 = vadd.f32 %v1432, %v1726
        %v1735 = vadd.f32 %v1437, %v1726
        %v1736 = vadd.f32 %v1442, %v1726
        %v1737 = vadd.f32 %v1447, %v1726
        %v1738 = vadd.f32 %v1452, %v1726
        %v1739 = vadd.f32 %v1457, %v1726
        %v1740 = vadd.f32 %v1462, %v1726
        %v1741 = vadd.f32 %v1467, %v1726
        %v1742 = vadd.f32 %v1472, %v1726
        %v1743 = vadd.f32 %v1477, %v1726
        %v1744 = vadd.f32 %v1482, %v1726
        %v1745 = vadd.f32 %v1487, %v1726
        %v1746 = vadd.f32 %v1492, %v1726
        %v1747 = vadd.f32 %v1497, %v1726
        %v1748 = vadd.f32 %v1502, %v1726
        %v1749 = vadd.f32 %v1507, %v1726
        %v1750 = vadd.f32 %v1512, %v1726
        %v1751 = vadd.f32 %v1517, %v1726
        %v1752 = vadd.f32 %v1522, %v1726
        %v1753 = vadd.f32 %v1527, %v1726
        %v1754 = vadd.f32 %v1532, %v1726
        %v1755 = vadd.f32 %v1537, %v1726
        %v1756 = vadd.f32 %v1542, %v1726
        %v1757 = vadd.f32 %v1547, %v1726
        %v1758 = vadd.f32 %v1552, %v1726
        %v1759 = vadd.f32 %v1557, %v1726
        %v1760 = vadd.f32 %v1562, %v1726
        %v1761 = vadd.f32 %v1567, %v1726
        %v1762 = vadd.f32 %v1572, %v1726
        %v1763 = vadd.f32 %v1577, %v1726
        %v1764 = vadd.f32 %v1582, %v1726
        %v1765 = vadd.f32 %v1587, %v1726
        %v1766 = vadd.f32 %v1592, %v1726
        %v1767 = vadd.f32 %v1597, %v1726
        %v1768 = vadd.f32 %v1602, %v1726
        %v1769 = vadd.f32 %v1607, %v1726
        %v1770 = vadd.f32 %v1612, %v1726
        %v1771 = vadd.f32 %v1617, %v1726
        %v1772 = vadd.f32 %v1622, %v1726
        %v1773 = vadd.f32 %v1627, %v1726
        %v1774 = vadd.f32 %v1632, %v1726
        %v1775 = vadd.f32 %v1637, %v1726
        %v1776 = vadd.f32 %v1642, %v1726
        %v1777 = vadd.f32 %v1647, %v1726
        %v1778 = vadd.f32 %v1652, %v1726
        %v1779 = vadd.f32 %v1657, %v1726
        %v1780 = vadd.f32 %v1662, %v1726
        %v1781 = vadd.f32 %v1667, %v1726
        %v1782 = vadd.f32 %v1672, %v1726
        %v1783 = vadd.f32 %v1677, %v1726
        %v1784 = vadd.f32 %v1682, %v1726
        %v1785 = vadd.f32 %v1687, %v1726
        %v1786 = vadd.f32 %v1692, %v1726
        %v1787 = vadd.f32 %v1697, %v1726
        %v1788 = vadd.f32 %v1702, %v1726
        %v1789 = vadd.f32 %v1707, %v1726
        %v1790 = vadd.f32 %v1712, %v1726
        %v1791 = vadd.f32 %v1717, %v1726
        %v1856 = vlaneseq
        %v1857 = vand.u32 %v1856, 127
        %v1858 = vlaneseq
        %v1859 = vshrl.u32 %v1858, 7
        %v1860 = vsub.s32 %v1857, %v1859
        %v1861 = vrot.slane %v805, %v1860
        %v1862 = vadd.s32 %v1857, 4294967288
        %v1863 = vlaneseq
        %v1864 = vshrl.u32 %v1863, 7
        %v1865 = vsub.s32 %v1862, %v1864
        %v1866 = vrot.slane %v810, %v1865
        %vm1867 = vcmask 130112
        %v1868 = vsel %vm1867, %v1866, %v1861
        %v1869 = vadd.s32 %v1857, 4294967280
        %v1870 = vlaneseq
        %v1871 = vshrl.u32 %v1870, 7
        %v1872 = vsub.s32 %v1869, %v1871
        %v1873 = vrot.slane %v815, %v1872
        %vm1874 = vcmask 195712
        %v1875 = vsel %vm1874, %v1873, %v1868
        %v1876 = vadd.s32 %v1857, 4294967272
        %v1877 = vlaneseq
        %v1878 = vshrl.u32 %v1877, 7
        %v1879 = vsub.s32 %v1876, %v1878
        %v1880 = vrot.slane %v820, %v1879
        %vm1881 = vcmask 261312
        %v1882 = vsel %vm1881, %v1880, %v1875
        %v1883 = vadd.s32 %v1857, 4294967264
        %v1884 = vlaneseq
        %v1885 = vshrl.u32 %v1884, 7
        %v1886 = vsub.s32 %v1883, %v1885
        %v1887 = vrot.slane %v825, %v1886
        %vm1888 = vcmask 326912
        %v1889 = vsel %vm1888, %v1887, %v1882
        %v1890 = vadd.s32 %v1857, 4294967256
        %v1891 = vlaneseq
        %v1892 = vshrl.u32 %v1891, 7
        %v1893 = vsub.s32 %v1890, %v1892
        %v1894 = vrot.slane %v830, %v1893
        %vm1895 = vcmask 392512
        %v1896 = vsel %vm1895, %v1894, %v1889
        %v1897 = vadd.s32 %v1857, 4294967248
        %v1898 = vlaneseq
        %v1899 = vshrl.u32 %v1898, 7
        %v1900 = vsub.s32 %v1897, %v1899
        %v1901 = vrot.slane %v835, %v1900
        %vm1902 = vcmask 458112
        %v1903 = vsel %vm1902, %v1901, %v1896
        %v1904 = vadd.s32 %v1857, 4294967240
        %v1905 = vlaneseq
        %v1906 = vshrl.u32 %v1905, 7
        %v1907 = vsub.s32 %v1904, %v1906
        %v1908 = vrot.slane %v840, %v1907
        %vm1909 = vcmask 523712
        %v1910 = vsel %vm1909, %v1908, %v1903
        %v1911 = vadd.s32 %v1857, 4294967232
        %v1912 = vlaneseq
        %v1913 = vshrl.u32 %v1912, 7
        %v1914 = vsub.s32 %v1911, %v1913
        %v1915 = vrot.slane %v845, %v1914
        %vm1916 = vcmask 589312
        %v1917 = vsel %vm1916, %v1915, %v1910
        %v1918 = vadd.s32 %v1857, 4294967224
        %v1919 = vlaneseq
        %v1920 = vshrl.u32 %v1919, 7
        %v1921 = vsub.s32 %v1918, %v1920
        %v1922 = vrot.slane %v850, %v1921
        %vm1923 = vcmask 654912
        %v1924 = vsel %vm1923, %v1922, %v1917
        %v1925 = vadd.s32 %v1857, 4294967216
        %v1926 = vlaneseq
        %v1927 = vshrl.u32 %v1926, 7
        %v1928 = vsub.s32 %v1925, %v1927
        %v1929 = vrot.slane %v855, %v1928
        %vm1930 = vcmask 720512
        %v1931 = vsel %vm1930, %v1929, %v1924
        %v1932 = vadd.s32 %v1857, 4294967208
        %v1933 = vlaneseq
        %v1934 = vshrl.u32 %v1933, 7
        %v1935 = vsub.s32 %v1932, %v1934
        %v1936 = vrot.slane %v860, %v1935
        %vm1937 = vcmask 786112
        %v1938 = vsel %vm1937, %v1936, %v1931
        %v1939 = vadd.s32 %v1857, 4294967200
        %v1940 = vlaneseq
        %v1941 = vshrl.u32 %v1940, 7
        %v1942 = vsub.s32 %v1939, %v1941
        %v1943 = vrot.slane %v865, %v1942
        %vm1944 = vcmask 851712
        %v1945 = vsel %vm1944, %v1943, %v1938
        %v1946 = vadd.s32 %v1857, 4294967192
        %v1947 = vlaneseq
        %v1948 = vshrl.u32 %v1947, 7
        %v1949 = vsub.s32 %v1946, %v1948
        %v1950 = vrot.slane %v870, %v1949
        %vm1951 = vcmask 917312
        %v1952 = vsel %vm1951, %v1950, %v1945
        %v1953 = vadd.s32 %v1857, 4294967184
        %v1954 = vlaneseq
        %v1955 = vshrl.u32 %v1954, 7
        %v1956 = vsub.s32 %v1953, %v1955
        %v1957 = vrot.slane %v875, %v1956
        %vm1958 = vcmask 982912
        %v1959 = vsel %vm1958, %v1957, %v1952
        %v1960 = vadd.s32 %v1857, 4294967176
        %v1961 = vlaneseq
        %v1962 = vshrl.u32 %v1961, 7
        %v1963 = vsub.s32 %v1960, %v1962
        %v1964 = vrot.slane %v880, %v1963
        %vm1965 = vcmask 1048512
        %v1966 = vsel %vm1965, %v1964, %v1959
        %v1967 = vlaneseq
        %v1968 = vshrl.u32 %v1967, 7
        %v1969 = vsub.s32 %v1857, %v1968
        %v1970 = vrot.slane %v885, %v1969
        %v1971 = vlaneseq
        %v1972 = vshrl.u32 %v1971, 7
        %v1973 = vsub.s32 %v1862, %v1972
        %v1974 = vrot.slane %v890, %v1973
        %v1975 = vsel %vm1867, %v1974, %v1970
        %v1976 = vlaneseq
        %v1977 = vshrl.u32 %v1976, 7
        %v1978 = vsub.s32 %v1869, %v1977
        %v1979 = vrot.slane %v895, %v1978
        %v1980 = vsel %vm1874, %v1979, %v1975
        %v1981 = vlaneseq
        %v1982 = vshrl.u32 %v1981, 7
        %v1983 = vsub.s32 %v1876, %v1982
        %v1984 = vrot.slane %v900, %v1983
        %v1985 = vsel %vm1881, %v1984, %v1980
        %v1986 = vlaneseq
        %v1987 = vshrl.u32 %v1986, 7
        %v1988 = vsub.s32 %v1883, %v1987
        %v1989 = vrot.slane %v905, %v1988
        %v1990 = vsel %vm1888, %v1989, %v1985
        %v1991 = vlaneseq
        %v1992 = vshrl.u32 %v1991, 7
        %v1993 = vsub.s32 %v1890, %v1992
        %v1994 = vrot.slane %v910, %v1993
        %v1995 = vsel %vm1895, %v1994, %v1990
        %v1996 = vlaneseq
        %v1997 = vshrl.u32 %v1996, 7
        %v1998 = vsub.s32 %v1897, %v1997
        %v1999 = vrot.slane %v915, %v1998
        %v2000 = vsel %vm1902, %v1999, %v1995
        %v2001 = vlaneseq
        %v2002 = vshrl.u32 %v2001, 7
        %v2003 = vsub.s32 %v1904, %v2002
        %v2004 = vrot.slane %v920, %v2003
        %v2005 = vsel %vm1909, %v2004, %v2000
        %v2006 = vlaneseq
        %v2007 = vshrl.u32 %v2006, 7
        %v2008 = vsub.s32 %v1911, %v2007
        %v2009 = vrot.slane %v925, %v2008
        %v2010 = vsel %vm1916, %v2009, %v2005
        %v2011 = vlaneseq
        %v2012 = vshrl.u32 %v2011, 7
        %v2013 = vsub.s32 %v1918, %v2012
        %v2014 = vrot.slane %v930, %v2013
        %v2015 = vsel %vm1923, %v2014, %v2010
        %v2016 = vlaneseq
        %v2017 = vshrl.u32 %v2016, 7
        %v2018 = vsub.s32 %v1925, %v2017
        %v2019 = vrot.slane %v935, %v2018
        %v2020 = vsel %vm1930, %v2019, %v2015
        %v2021 = vlaneseq
        %v2022 = vshrl.u32 %v2021, 7
        %v2023 = vsub.s32 %v1932, %v2022
        %v2024 = vrot.slane %v940, %v2023
        %v2025 = vsel %vm1937, %v2024, %v2020
        %v2026 = vlaneseq
        %v2027 = vshrl.u32 %v2026, 7
        %v2028 = vsub.s32 %v1939, %v2027
        %v2029 = vrot.slane %v945, %v2028
        %v2030 = vsel %vm1944, %v2029, %v2025
        %v2031 = vlaneseq
        %v2032 = vshrl.u32 %v2031, 7
        %v2033 = vsub.s32 %v1946, %v2032
        %v2034 = vrot.slane %v950, %v2033
        %v2035 = vsel %vm1951, %v2034, %v2030
        %v2036 = vlaneseq
        %v2037 = vshrl.u32 %v2036, 7
        %v2038 = vsub.s32 %v1953, %v2037
        %v2039 = vrot.slane %v955, %v2038
        %v2040 = vsel %vm1958, %v2039, %v2035
        %v2041 = vlaneseq
        %v2042 = vshrl.u32 %v2041, 7
        %v2043 = vsub.s32 %v1960, %v2042
        %v2044 = vrot.slane %v960, %v2043
        %v2045 = vsel %vm1965, %v2044, %v2040
        %v2046 = vlaneseq
        %v2047 = vshrl.u32 %v2046, 7
        %v2048 = vsub.s32 %v1857, %v2047
        %v2049 = vrot.slane %v965, %v2048
        %v2050 = vlaneseq
        %v2051 = vshrl.u32 %v2050, 7
        %v2052 = vsub.s32 %v1862, %v2051
        %v2053 = vrot.slane %v970, %v2052
        %v2054 = vsel %vm1867, %v2053, %v2049
        %v2055 = vlaneseq
        %v2056 = vshrl.u32 %v2055, 7
        %v2057 = vsub.s32 %v1869, %v2056
        %v2058 = vrot.slane %v975, %v2057
        %v2059 = vsel %vm1874, %v2058, %v2054
        %v2060 = vlaneseq
        %v2061 = vshrl.u32 %v2060, 7
        %v2062 = vsub.s32 %v1876, %v2061
        %v2063 = vrot.slane %v980, %v2062
        %v2064 = vsel %vm1881, %v2063, %v2059
        %v2065 = vlaneseq
        %v2066 = vshrl.u32 %v2065, 7
        %v2067 = vsub.s32 %v1883, %v2066
        %v2068 = vrot.slane %v985, %v2067
        %v2069 = vsel %vm1888, %v2068, %v2064
        %v2070 = vlaneseq
        %v2071 = vshrl.u32 %v2070, 7
        %v2072 = vsub.s32 %v1890, %v2071
        %v2073 = vrot.slane %v990, %v2072
        %v2074 = vsel %vm1895, %v2073, %v2069
        %v2075 = vlaneseq
        %v2076 = vshrl.u32 %v2075, 7
        %v2077 = vsub.s32 %v1897, %v2076
        %v2078 = vrot.slane %v995, %v2077
        %v2079 = vsel %vm1902, %v2078, %v2074
        %v2080 = vlaneseq
        %v2081 = vshrl.u32 %v2080, 7
        %v2082 = vsub.s32 %v1904, %v2081
        %v2083 = vrot.slane %v1000, %v2082
        %v2084 = vsel %vm1909, %v2083, %v2079
        %v2085 = vlaneseq
        %v2086 = vshrl.u32 %v2085, 7
        %v2087 = vsub.s32 %v1911, %v2086
        %v2088 = vrot.slane %v1005, %v2087
        %v2089 = vsel %vm1916, %v2088, %v2084
        %v2090 = vlaneseq
        %v2091 = vshrl.u32 %v2090, 7
        %v2092 = vsub.s32 %v1918, %v2091
        %v2093 = vrot.slane %v1010, %v2092
        %v2094 = vsel %vm1923, %v2093, %v2089
        %v2095 = vlaneseq
        %v2096 = vshrl.u32 %v2095, 7
        %v2097 = vsub.s32 %v1925, %v2096
        %v2098 = vrot.slane %v1015, %v2097
        %v2099 = vsel %vm1930, %v2098, %v2094
        %v2100 = vlaneseq
        %v2101 = vshrl.u32 %v2100, 7
        %v2102 = vsub.s32 %v1932, %v2101
        %v2103 = vrot.slane %v1020, %v2102
        %v2104 = vsel %vm1937, %v2103, %v2099
        %v2105 = vlaneseq
        %v2106 = vshrl.u32 %v2105, 7
        %v2107 = vsub.s32 %v1939, %v2106
        %v2108 = vrot.slane %v1025, %v2107
        %v2109 = vsel %vm1944, %v2108, %v2104
        %v2110 = vlaneseq
        %v2111 = vshrl.u32 %v2110, 7
        %v2112 = vsub.s32 %v1946, %v2111
        %v2113 = vrot.slane %v1030, %v2112
        %v2114 = vsel %vm1951, %v2113, %v2109
        %v2115 = vlaneseq
        %v2116 = vshrl.u32 %v2115, 7
        %v2117 = vsub.s32 %v1953, %v2116
        %v2118 = vrot.slane %v1035, %v2117
        %v2119 = vsel %vm1958, %v2118, %v2114
        %v2120 = vlaneseq
        %v2121 = vshrl.u32 %v2120, 7
        %v2122 = vsub.s32 %v1960, %v2121
        %v2123 = vrot.slane %v1040, %v2122
        %v2124 = vsel %vm1965, %v2123, %v2119
        %v2125 = vlaneseq
        %v2126 = vshrl.u32 %v2125, 7
        %v2127 = vsub.s32 %v1857, %v2126
        %v2128 = vrot.slane %v1045, %v2127
        %v2129 = vlaneseq
        %v2130 = vshrl.u32 %v2129, 7
        %v2131 = vsub.s32 %v1862, %v2130
        %v2132 = vrot.slane %v1050, %v2131
        %v2133 = vsel %vm1867, %v2132, %v2128
        %v2134 = vlaneseq
        %v2135 = vshrl.u32 %v2134, 7
        %v2136 = vsub.s32 %v1869, %v2135
        %v2137 = vrot.slane %v1055, %v2136
        %v2138 = vsel %vm1874, %v2137, %v2133
        %v2139 = vlaneseq
        %v2140 = vshrl.u32 %v2139, 7
        %v2141 = vsub.s32 %v1876, %v2140
        %v2142 = vrot.slane %v1060, %v2141
        %v2143 = vsel %vm1881, %v2142, %v2138
        %v2144 = vlaneseq
        %v2145 = vshrl.u32 %v2144, 7
        %v2146 = vsub.s32 %v1883, %v2145
        %v2147 = vrot.slane %v1065, %v2146
        %v2148 = vsel %vm1888, %v2147, %v2143
        %v2149 = vlaneseq
        %v2150 = vshrl.u32 %v2149, 7
        %v2151 = vsub.s32 %v1890, %v2150
        %v2152 = vrot.slane %v1070, %v2151
        %v2153 = vsel %vm1895, %v2152, %v2148
        %v2154 = vlaneseq
        %v2155 = vshrl.u32 %v2154, 7
        %v2156 = vsub.s32 %v1897, %v2155
        %v2157 = vrot.slane %v1075, %v2156
        %v2158 = vsel %vm1902, %v2157, %v2153
        %v2159 = vlaneseq
        %v2160 = vshrl.u32 %v2159, 7
        %v2161 = vsub.s32 %v1904, %v2160
        %v2162 = vrot.slane %v1080, %v2161
        %v2163 = vsel %vm1909, %v2162, %v2158
        %v2164 = vlaneseq
        %v2165 = vshrl.u32 %v2164, 7
        %v2166 = vsub.s32 %v1911, %v2165
        %v2167 = vrot.slane %v1085, %v2166
        %v2168 = vsel %vm1916, %v2167, %v2163
        %v2169 = vlaneseq
        %v2170 = vshrl.u32 %v2169, 7
        %v2171 = vsub.s32 %v1918, %v2170
        %v2172 = vrot.slane %v1090, %v2171
        %v2173 = vsel %vm1923, %v2172, %v2168
        %v2174 = vlaneseq
        %v2175 = vshrl.u32 %v2174, 7
        %v2176 = vsub.s32 %v1925, %v2175
        %v2177 = vrot.slane %v1095, %v2176
        %v2178 = vsel %vm1930, %v2177, %v2173
        %v2179 = vlaneseq
        %v2180 = vshrl.u32 %v2179, 7
        %v2181 = vsub.s32 %v1932, %v2180
        %v2182 = vrot.slane %v1100, %v2181
        %v2183 = vsel %vm1937, %v2182, %v2178
        %v2184 = vlaneseq
        %v2185 = vshrl.u32 %v2184, 7
        %v2186 = vsub.s32 %v1939, %v2185
        %v2187 = vrot.slane %v1105, %v2186
        %v2188 = vsel %vm1944, %v2187, %v2183
        %v2189 = vlaneseq
        %v2190 = vshrl.u32 %v2189, 7
        %v2191 = vsub.s32 %v1946, %v2190
        %v2192 = vrot.slane %v1110, %v2191
        %v2193 = vsel %vm1951, %v2192, %v2188
        %v2194 = vlaneseq
        %v2195 = vshrl.u32 %v2194, 7
        %v2196 = vsub.s32 %v1953, %v2195
        %v2197 = vrot.slane %v1115, %v2196
        %v2198 = vsel %vm1958, %v2197, %v2193
        %v2199 = vlaneseq
        %v2200 = vshrl.u32 %v2199, 7
        %v2201 = vsub.s32 %v1960, %v2200
        %v2202 = vrot.slane %v1120, %v2201
        %v2203 = vsel %vm1965, %v2202, %v2198
        %vm2204 = vcmask 1041409
        %v2205 = vsel %vm2204, %v2045, %v1966
        %vm2206 = vcmask 1042434
        %v2207 = vsel %vm2206, %v2124, %v2205
        %vm2208 = vcmask 1043459
        %v2209 = vsel %vm2208, %v2203, %v2207
        %vm2211 = vcmask 1043456
        %v2212 = vsel %vm2211, %v2209, -inf
        %2213 = vmax.xlane.f32.xlu0 %v2212
        %v2214 = vpop.xlane.xlu0 %2213
        %v2216 = vlaneseq
        %v2217 = vshrl.u32 %v2216, 7
        %v2218 = vsub.s32 0, %v2217
        %v2219 = vrot.slane %v2214, %v2218
        %v2220 = vlaneseq
        %v2221 = vshrl.u32 %v2220, 7
        %v2222 = vsub.s32 1, %v2221
        %v2223 = vrot.slane %v2214, %v2222
        %v2224 = vlaneseq
        %v2225 = vshrl.u32 %v2224, 7
        %v2226 = vsub.s32 2, %v2225
        %v2227 = vrot.slane %v2214, %v2226
        %v2228 = vlaneseq
        %v2229 = vshrl.u32 %v2228, 7
        %v2230 = vsub.s32 3, %v2229
        %v2231 = vrot.slane %v2214, %v2230
        %v2236 = vsub.f32 %v805, %v2219
        %v2237 = vsub.f32 %v810, %v2219
        %v2238 = vsub.f32 %v815, %v2219
        %v2239 = vsub.f32 %v820, %v2219
        %v2240 = vsub.f32 %v825, %v2219
        %v2241 = vsub.f32 %v830, %v2219
        %v2242 = vsub.f32 %v835, %v2219
        %v2243 = vsub.f32 %v840, %v2219
        %v2244 = vsub.f32 %v845, %v2219
        %v2245 = vsub.f32 %v850, %v2219
        %v2246 = vsub.f32 %v855, %v2219
        %v2247 = vsub.f32 %v860, %v2219
        %v2248 = vsub.f32 %v865, %v2219
        %v2249 = vsub.f32 %v870, %v2219
        %v2250 = vsub.f32 %v875, %v2219
        %v2251 = vsub.f32 %v880, %v2219
        %v2252 = vsub.f32 %v885, %v2223
        %v2253 = vsub.f32 %v890, %v2223
        %v2254 = vsub.f32 %v895, %v2223
        %v2255 = vsub.f32 %v900, %v2223
        %v2256 = vsub.f32 %v905, %v2223
        %v2257 = vsub.f32 %v910, %v2223
        %v2258 = vsub.f32 %v915, %v2223
        %v2259 = vsub.f32 %v920, %v2223
        %v2260 = vsub.f32 %v925, %v2223
        %v2261 = vsub.f32 %v930, %v2223
        %v2262 = vsub.f32 %v935, %v2223
        %v2263 = vsub.f32 %v940, %v2223
        %v2264 = vsub.f32 %v945, %v2223
        %v2265 = vsub.f32 %v950, %v2223
        %v2266 = vsub.f32 %v955, %v2223
        %v2267 = vsub.f32 %v960, %v2223
        %v2268 = vsub.f32 %v965, %v2227
        %v2269 = vsub.f32 %v970, %v2227
        %v2270 = vsub.f32 %v975, %v2227
        %v2271 = vsub.f32 %v980, %v2227
        %v2272 = vsub.f32 %v985, %v2227
        %v2273 = vsub.f32 %v990, %v2227
        %v2274 = vsub.f32 %v995, %v2227
        %v2275 = vsub.f32 %v1000, %v2227
        %v2276 = vsub.f32 %v1005, %v2227
        %v2277 = vsub.f32 %v1010, %v2227
        %v2278 = vsub.f32 %v1015, %v2227
        %v2279 = vsub.f32 %v1020, %v2227
        %v2280 = vsub.f32 %v1025, %v2227
        %v2281 = vsub.f32 %v1030, %v2227
        %v2282 = vsub.f32 %v1035, %v2227
        %v2283 = vsub.f32 %v1040, %v2227
        %v2284 = vsub.f32 %v1045, %v2231
        %v2285 = vsub.f32 %v1050, %v2231
        %v2286 = vsub.f32 %v1055, %v2231
        %v2287 = vsub.f32 %v1060, %v2231
        %v2288 = vsub.f32 %v1065, %v2231
        %v2289 = vsub.f32 %v1070, %v2231
        %v2290 = vsub.f32 %v1075, %v2231
        %v2291 = vsub.f32 %v1080, %v2231
        %v2292 = vsub.f32 %v1085, %v2231
        %v2293 = vsub.f32 %v1090, %v2231
        %v2294 = vsub.f32 %v1095, %v2231
        %v2295 = vsub.f32 %v1100, %v2231
        %v2296 = vsub.f32 %v1105, %v2231
        %v2297 = vsub.f32 %v1110, %v2231
        %v2298 = vsub.f32 %v1115, %v2231
        %v2299 = vsub.f32 %v1120, %v2231
        %v2300 = vmul.f32 %v2236, 1.442695
        %v2301 = vpow.pop %v2300
        %v2302 = vmul.f32 %v2237, 1.442695
        %v2303 = vpow.pop %v2302
        %v2304 = vmul.f32 %v2238, 1.442695
        %v2305 = vpow.pop %v2304
        %v2306 = vmul.f32 %v2239, 1.442695
        %v2307 = vpow.pop %v2306
        %v2308 = vmul.f32 %v2240, 1.442695
        %v2309 = vpow.pop %v2308
        %v2310 = vmul.f32 %v2241, 1.442695
        %v2311 = vpow.pop %v2310
        %v2312 = vmul.f32 %v2242, 1.442695
        %v2313 = vpow.pop %v2312
        %v2314 = vmul.f32 %v2243, 1.442695
        %v2315 = vpow.pop %v2314
        %v2316 = vmul.f32 %v2244, 1.442695
        %v2317 = vpow.pop %v2316
        %v2318 = vmul.f32 %v2245, 1.442695
        %v2319 = vpow.pop %v2318
        %v2320 = vmul.f32 %v2246, 1.442695
        %v2321 = vpow.pop %v2320
        %v2322 = vmul.f32 %v2247, 1.442695
        %v2323 = vpow.pop %v2322
        %v2324 = vmul.f32 %v2248, 1.442695
        %v2325 = vpow.pop %v2324
        %v2326 = vmul.f32 %v2249, 1.442695
        %v2327 = vpow.pop %v2326
        %v2328 = vmul.f32 %v2250, 1.442695
        %v2329 = vpow.pop %v2328
        %v2330 = vmul.f32 %v2251, 1.442695
        %v2331 = vpow.pop %v2330
        %v2332 = vmul.f32 %v2252, 1.442695
        %v2333 = vpow.pop %v2332
        %v2334 = vmul.f32 %v2253, 1.442695
        %v2335 = vpow.pop %v2334
        %v2336 = vmul.f32 %v2254, 1.442695
        %v2337 = vpow.pop %v2336
        %v2338 = vmul.f32 %v2255, 1.442695
        %v2339 = vpow.pop %v2338
        %v2340 = vmul.f32 %v2256, 1.442695
        %v2341 = vpow.pop %v2340
        %v2342 = vmul.f32 %v2257, 1.442695
        %v2343 = vpow.pop %v2342
        %v2344 = vmul.f32 %v2258, 1.442695
        %v2345 = vpow.pop %v2344
        %v2346 = vmul.f32 %v2259, 1.442695
        %v2347 = vpow.pop %v2346
        %v2348 = vmul.f32 %v2260, 1.442695
        %v2349 = vpow.pop %v2348
        %v2350 = vmul.f32 %v2261, 1.442695
        %v2351 = vpow.pop %v2350
        %v2352 = vmul.f32 %v2262, 1.442695
        %v2353 = vpow.pop %v2352
        %v2354 = vmul.f32 %v2263, 1.442695
        %v2355 = vpow.pop %v2354
        %v2356 = vmul.f32 %v2264, 1.442695
        %v2357 = vpow.pop %v2356
        %v2358 = vmul.f32 %v2265, 1.442695
        %v2359 = vpow.pop %v2358
        %v2360 = vmul.f32 %v2266, 1.442695
        %v2361 = vpow.pop %v2360
        %v2362 = vmul.f32 %v2267, 1.442695
        %v2363 = vpow.pop %v2362
        %v2364 = vmul.f32 %v2268, 1.442695
        %v2365 = vpow.pop %v2364
        %v2366 = vmul.f32 %v2269, 1.442695
        %v2367 = vpow.pop %v2366
        %v2368 = vmul.f32 %v2270, 1.442695
        %v2369 = vpow.pop %v2368
        %v2370 = vmul.f32 %v2271, 1.442695
        %v2371 = vpow.pop %v2370
        %v2372 = vmul.f32 %v2272, 1.442695
        %v2373 = vpow.pop %v2372
        %v2374 = vmul.f32 %v2273, 1.442695
        %v2375 = vpow.pop %v2374
        %v2376 = vmul.f32 %v2274, 1.442695
        %v2377 = vpow.pop %v2376
        %v2378 = vmul.f32 %v2275, 1.442695
        %v2379 = vpow.pop %v2378
        %v2380 = vmul.f32 %v2276, 1.442695
        %v2381 = vpow.pop %v2380
        %v2382 = vmul.f32 %v2277, 1.442695
        %v2383 = vpow.pop %v2382
        %v2384 = vmul.f32 %v2278, 1.442695
        %v2385 = vpow.pop %v2384
        %v2386 = vmul.f32 %v2279, 1.442695
        %v2387 = vpow.pop %v2386
        %v2388 = vmul.f32 %v2280, 1.442695
        %v2389 = vpow.pop %v2388
        %v2390 = vmul.f32 %v2281, 1.442695
        %v2391 = vpow.pop %v2390
        %v2392 = vmul.f32 %v2282, 1.442695
        %v2393 = vpow.pop %v2392
        %v2394 = vmul.f32 %v2283, 1.442695
        %v2395 = vpow.pop %v2394
        %v2396 = vmul.f32 %v2284, 1.442695
        %v2397 = vpow.pop %v2396
        %v2398 = vmul.f32 %v2285, 1.442695
        %v2399 = vpow.pop %v2398
        %v2400 = vmul.f32 %v2286, 1.442695
        %v2401 = vpow.pop %v2400
        %v2402 = vmul.f32 %v2287, 1.442695
        %v2403 = vpow.pop %v2402
        %v2404 = vmul.f32 %v2288, 1.442695
        %v2405 = vpow.pop %v2404
        %v2406 = vmul.f32 %v2289, 1.442695
        %v2407 = vpow.pop %v2406
        %v2408 = vmul.f32 %v2290, 1.442695
        %v2409 = vpow.pop %v2408
        %v2410 = vmul.f32 %v2291, 1.442695
        %v2411 = vpow.pop %v2410
        %v2412 = vmul.f32 %v2292, 1.442695
        %v2413 = vpow.pop %v2412
        %v2414 = vmul.f32 %v2293, 1.442695
        %v2415 = vpow.pop %v2414
        %v2416 = vmul.f32 %v2294, 1.442695
        %v2417 = vpow.pop %v2416
        %v2418 = vmul.f32 %v2295, 1.442695
        %v2419 = vpow.pop %v2418
        %v2420 = vmul.f32 %v2296, 1.442695
        %v2421 = vpow.pop %v2420
        %v2422 = vmul.f32 %v2297, 1.442695
        %v2423 = vpow.pop %v2422
        %v2424 = vmul.f32 %v2298, 1.442695
        %v2425 = vpow.pop %v2424
        %v2426 = vmul.f32 %v2299, 1.442695
        %v2427 = vpow.pop %v2426
        %2492 = vset.pattern.permute.xlu0 0
        %2493 = vperm.xlu0 %2492, %v2301
        %v2494 = vpop.permute.xlu0 %2493
        %2495 = vset.pattern.permute.xlu0 0
        %2496 = vperm.xlu0 %2495, %v2303
        %v2497 = vpop.permute.xlu0 %2496
        %2498 = vset.pattern.permute.xlu0 0
        %2499 = vperm.xlu0 %2498, %v2305
        %v2500 = vpop.permute.xlu0 %2499
        %2501 = vset.pattern.permute.xlu0 0
        %2502 = vperm.xlu0 %2501, %v2307
        %v2503 = vpop.permute.xlu0 %2502
        %2504 = vset.pattern.permute.xlu0 0
        %2505 = vperm.xlu0 %2504, %v2309
        %v2506 = vpop.permute.xlu0 %2505
        %2507 = vset.pattern.permute.xlu0 0
        %2508 = vperm.xlu0 %2507, %v2311
        %v2509 = vpop.permute.xlu0 %2508
        %2510 = vset.pattern.permute.xlu0 0
        %2511 = vperm.xlu0 %2510, %v2313
        %v2512 = vpop.permute.xlu0 %2511
        %2513 = vset.pattern.permute.xlu0 0
        %2514 = vperm.xlu0 %2513, %v2315
        %v2515 = vpop.permute.xlu0 %2514
        %2516 = vset.pattern.permute.xlu0 0
        %2517 = vperm.xlu0 %2516, %v2317
        %v2518 = vpop.permute.xlu0 %2517
        %2519 = vset.pattern.permute.xlu0 0
        %2520 = vperm.xlu0 %2519, %v2319
        %v2521 = vpop.permute.xlu0 %2520
        %2522 = vset.pattern.permute.xlu0 0
        %2523 = vperm.xlu0 %2522, %v2321
        %v2524 = vpop.permute.xlu0 %2523
        %2525 = vset.pattern.permute.xlu0 0
        %2526 = vperm.xlu0 %2525, %v2323
        %v2527 = vpop.permute.xlu0 %2526
        %2528 = vset.pattern.permute.xlu0 0
        %2529 = vperm.xlu0 %2528, %v2325
        %v2530 = vpop.permute.xlu0 %2529
        %2531 = vset.pattern.permute.xlu0 0
        %2532 = vperm.xlu0 %2531, %v2327
        %v2533 = vpop.permute.xlu0 %2532
        %2534 = vset.pattern.permute.xlu0 0
        %2535 = vperm.xlu0 %2534, %v2329
        %v2536 = vpop.permute.xlu0 %2535
        %2537 = vset.pattern.permute.xlu0 0
        %2538 = vperm.xlu0 %2537, %v2331
        %v2539 = vpop.permute.xlu0 %2538
        %2540 = vset.pattern.permute.xlu0 0
        %2541 = vperm.xlu0 %2540, %v2333
        %v2542 = vpop.permute.xlu0 %2541
        %2543 = vset.pattern.permute.xlu0 0
        %2544 = vperm.xlu0 %2543, %v2335
        %v2545 = vpop.permute.xlu0 %2544
        %2546 = vset.pattern.permute.xlu0 0
        %2547 = vperm.xlu0 %2546, %v2337
        %v2548 = vpop.permute.xlu0 %2547
        %2549 = vset.pattern.permute.xlu0 0
        %2550 = vperm.xlu0 %2549, %v2339
        %v2551 = vpop.permute.xlu0 %2550
        %2552 = vset.pattern.permute.xlu0 0
        %2553 = vperm.xlu0 %2552, %v2341
        %v2554 = vpop.permute.xlu0 %2553
        %2555 = vset.pattern.permute.xlu0 0
        %2556 = vperm.xlu0 %2555, %v2343
        %v2557 = vpop.permute.xlu0 %2556
        %2558 = vset.pattern.permute.xlu0 0
        %2559 = vperm.xlu0 %2558, %v2345
        %v2560 = vpop.permute.xlu0 %2559
        %2561 = vset.pattern.permute.xlu0 0
        %2562 = vperm.xlu0 %2561, %v2347
        %v2563 = vpop.permute.xlu0 %2562
        %2564 = vset.pattern.permute.xlu0 0
        %2565 = vperm.xlu0 %2564, %v2349
        %v2566 = vpop.permute.xlu0 %2565
        %2567 = vset.pattern.permute.xlu0 0
        %2568 = vperm.xlu0 %2567, %v2351
        %v2569 = vpop.permute.xlu0 %2568
        %2570 = vset.pattern.permute.xlu0 0
        %2571 = vperm.xlu0 %2570, %v2353
        %v2572 = vpop.permute.xlu0 %2571
        %2573 = vset.pattern.permute.xlu0 0
        %2574 = vperm.xlu0 %2573, %v2355
        %v2575 = vpop.permute.xlu0 %2574
        %2576 = vset.pattern.permute.xlu0 0
        %2577 = vperm.xlu0 %2576, %v2357
        %v2578 = vpop.permute.xlu0 %2577
        %2579 = vset.pattern.permute.xlu0 0
        %2580 = vperm.xlu0 %2579, %v2359
        %v2581 = vpop.permute.xlu0 %2580
        %2582 = vset.pattern.permute.xlu0 0
        %2583 = vperm.xlu0 %2582, %v2361
        %v2584 = vpop.permute.xlu0 %2583
        %2585 = vset.pattern.permute.xlu0 0
        %2586 = vperm.xlu0 %2585, %v2363
        %v2587 = vpop.permute.xlu0 %2586
        %2588 = vset.pattern.permute.xlu0 0
        %2589 = vperm.xlu0 %2588, %v2365
        %v2590 = vpop.permute.xlu0 %2589
        %2591 = vset.pattern.permute.xlu0 0
        %2592 = vperm.xlu0 %2591, %v2367
        %v2593 = vpop.permute.xlu0 %2592
        %2594 = vset.pattern.permute.xlu0 0
        %2595 = vperm.xlu0 %2594, %v2369
        %v2596 = vpop.permute.xlu0 %2595
        %2597 = vset.pattern.permute.xlu0 0
        %2598 = vperm.xlu0 %2597, %v2371
        %v2599 = vpop.permute.xlu0 %2598
        %2600 = vset.pattern.permute.xlu0 0
        %2601 = vperm.xlu0 %2600, %v2373
        %v2602 = vpop.permute.xlu0 %2601
        %2603 = vset.pattern.permute.xlu0 0
        %2604 = vperm.xlu0 %2603, %v2375
        %v2605 = vpop.permute.xlu0 %2604
        %2606 = vset.pattern.permute.xlu0 0
        %2607 = vperm.xlu0 %2606, %v2377
        %v2608 = vpop.permute.xlu0 %2607
        %2609 = vset.pattern.permute.xlu0 0
        %2610 = vperm.xlu0 %2609, %v2379
        %v2611 = vpop.permute.xlu0 %2610
        %2612 = vset.pattern.permute.xlu0 0
        %2613 = vperm.xlu0 %2612, %v2381
        %v2614 = vpop.permute.xlu0 %2613
        %2615 = vset.pattern.permute.xlu0 0
        %2616 = vperm.xlu0 %2615, %v2383
        %v2617 = vpop.permute.xlu0 %2616
        %2618 = vset.pattern.permute.xlu0 0
        %2619 = vperm.xlu0 %2618, %v2385
        %v2620 = vpop.permute.xlu0 %2619
        %2621 = vset.pattern.permute.xlu0 0
        %2622 = vperm.xlu0 %2621, %v2387
        %v2623 = vpop.permute.xlu0 %2622
        %2624 = vset.pattern.permute.xlu0 0
        %2625 = vperm.xlu0 %2624, %v2389
        %v2626 = vpop.permute.xlu0 %2625
        %2627 = vset.pattern.permute.xlu0 0
        %2628 = vperm.xlu0 %2627, %v2391
        %v2629 = vpop.permute.xlu0 %2628
        %2630 = vset.pattern.permute.xlu0 0
        %2631 = vperm.xlu0 %2630, %v2393
        %v2632 = vpop.permute.xlu0 %2631
        %2633 = vset.pattern.permute.xlu0 0
        %2634 = vperm.xlu0 %2633, %v2395
        %v2635 = vpop.permute.xlu0 %2634
        %2636 = vset.pattern.permute.xlu0 0
        %2637 = vperm.xlu0 %2636, %v2397
        %v2638 = vpop.permute.xlu0 %2637
        %2639 = vset.pattern.permute.xlu0 0
        %2640 = vperm.xlu0 %2639, %v2399
        %v2641 = vpop.permute.xlu0 %2640
        %2642 = vset.pattern.permute.xlu0 0
        %2643 = vperm.xlu0 %2642, %v2401
        %v2644 = vpop.permute.xlu0 %2643
        %2645 = vset.pattern.permute.xlu0 0
        %2646 = vperm.xlu0 %2645, %v2403
        %v2647 = vpop.permute.xlu0 %2646
        %2648 = vset.pattern.permute.xlu0 0
        %2649 = vperm.xlu0 %2648, %v2405
        %v2650 = vpop.permute.xlu0 %2649
        %2651 = vset.pattern.permute.xlu0 0
        %2652 = vperm.xlu0 %2651, %v2407
        %v2653 = vpop.permute.xlu0 %2652
        %2654 = vset.pattern.permute.xlu0 0
        %2655 = vperm.xlu0 %2654, %v2409
        %v2656 = vpop.permute.xlu0 %2655
        %2657 = vset.pattern.permute.xlu0 0
        %2658 = vperm.xlu0 %2657, %v2411
        %v2659 = vpop.permute.xlu0 %2658
        %2660 = vset.pattern.permute.xlu0 0
        %2661 = vperm.xlu0 %2660, %v2413
        %v2662 = vpop.permute.xlu0 %2661
        %2663 = vset.pattern.permute.xlu0 0
        %2664 = vperm.xlu0 %2663, %v2415
        %v2665 = vpop.permute.xlu0 %2664
        %2666 = vset.pattern.permute.xlu0 0
        %2667 = vperm.xlu0 %2666, %v2417
        %v2668 = vpop.permute.xlu0 %2667
        %2669 = vset.pattern.permute.xlu0 0
        %2670 = vperm.xlu0 %2669, %v2419
        %v2671 = vpop.permute.xlu0 %2670
        %2672 = vset.pattern.permute.xlu0 0
        %2673 = vperm.xlu0 %2672, %v2421
        %v2674 = vpop.permute.xlu0 %2673
        %2675 = vset.pattern.permute.xlu0 0
        %2676 = vperm.xlu0 %2675, %v2423
        %v2677 = vpop.permute.xlu0 %2676
        %2678 = vset.pattern.permute.xlu0 0
        %2679 = vperm.xlu0 %2678, %v2425
        %v2680 = vpop.permute.xlu0 %2679
        %2681 = vset.pattern.permute.xlu0 0
        %2682 = vperm.xlu0 %2681, %v2427
        %v2683 = vpop.permute.xlu0 %2682
        %v2684 = vlaneseq
        %v2685 = vshrl.u32 %v2684, 7
        %v2686 = vsub.s32 %v1857, %v2685
        %v2687 = vrot.slane %v2494, %v2686
        %v2688 = vlaneseq
        %v2689 = vshrl.u32 %v2688, 7
        %v2690 = vsub.s32 %v1862, %v2689
        %v2691 = vrot.slane %v2497, %v2690
        %v2692 = vsel %vm1867, %v2691, %v2687
        %v2693 = vlaneseq
        %v2694 = vshrl.u32 %v2693, 7
        %v2695 = vsub.s32 %v1869, %v2694
        %v2696 = vrot.slane %v2500, %v2695
        %v2697 = vsel %vm1874, %v2696, %v2692
        %v2698 = vlaneseq
        %v2699 = vshrl.u32 %v2698, 7
        %v2700 = vsub.s32 %v1876, %v2699
        %v2701 = vrot.slane %v2503, %v2700
        %v2702 = vsel %vm1881, %v2701, %v2697
        %v2703 = vlaneseq
        %v2704 = vshrl.u32 %v2703, 7
        %v2705 = vsub.s32 %v1883, %v2704
        %v2706 = vrot.slane %v2506, %v2705
        %v2707 = vsel %vm1888, %v2706, %v2702
        %v2708 = vlaneseq
        %v2709 = vshrl.u32 %v2708, 7
        %v2710 = vsub.s32 %v1890, %v2709
        %v2711 = vrot.slane %v2509, %v2710
        %v2712 = vsel %vm1895, %v2711, %v2707
        %v2713 = vlaneseq
        %v2714 = vshrl.u32 %v2713, 7
        %v2715 = vsub.s32 %v1897, %v2714
        %v2716 = vrot.slane %v2512, %v2715
        %v2717 = vsel %vm1902, %v2716, %v2712
        %v2718 = vlaneseq
        %v2719 = vshrl.u32 %v2718, 7
        %v2720 = vsub.s32 %v1904, %v2719
        %v2721 = vrot.slane %v2515, %v2720
        %v2722 = vsel %vm1909, %v2721, %v2717
        %v2723 = vlaneseq
        %v2724 = vshrl.u32 %v2723, 7
        %v2725 = vsub.s32 %v1911, %v2724
        %v2726 = vrot.slane %v2518, %v2725
        %v2727 = vsel %vm1916, %v2726, %v2722
        %v2728 = vlaneseq
        %v2729 = vshrl.u32 %v2728, 7
        %v2730 = vsub.s32 %v1918, %v2729
        %v2731 = vrot.slane %v2521, %v2730
        %v2732 = vsel %vm1923, %v2731, %v2727
        %v2733 = vlaneseq
        %v2734 = vshrl.u32 %v2733, 7
        %v2735 = vsub.s32 %v1925, %v2734
        %v2736 = vrot.slane %v2524, %v2735
        %v2737 = vsel %vm1930, %v2736, %v2732
        %v2738 = vlaneseq
        %v2739 = vshrl.u32 %v2738, 7
        %v2740 = vsub.s32 %v1932, %v2739
        %v2741 = vrot.slane %v2527, %v2740
        %v2742 = vsel %vm1937, %v2741, %v2737
        %v2743 = vlaneseq
        %v2744 = vshrl.u32 %v2743, 7
        %v2745 = vsub.s32 %v1939, %v2744
        %v2746 = vrot.slane %v2530, %v2745
        %v2747 = vsel %vm1944, %v2746, %v2742
        %v2748 = vlaneseq
        %v2749 = vshrl.u32 %v2748, 7
        %v2750 = vsub.s32 %v1946, %v2749
        %v2751 = vrot.slane %v2533, %v2750
        %v2752 = vsel %vm1951, %v2751, %v2747
        %v2753 = vlaneseq
        %v2754 = vshrl.u32 %v2753, 7
        %v2755 = vsub.s32 %v1953, %v2754
        %v2756 = vrot.slane %v2536, %v2755
        %v2757 = vsel %vm1958, %v2756, %v2752
        %v2758 = vlaneseq
        %v2759 = vshrl.u32 %v2758, 7
        %v2760 = vsub.s32 %v1960, %v2759
        %v2761 = vrot.slane %v2539, %v2760
        %v2762 = vsel %vm1965, %v2761, %v2757
        %v2763 = vlaneseq
        %v2764 = vshrl.u32 %v2763, 7
        %v2765 = vsub.s32 %v1857, %v2764
        %v2766 = vrot.slane %v2542, %v2765
        %v2767 = vlaneseq
        %v2768 = vshrl.u32 %v2767, 7
        %v2769 = vsub.s32 %v1862, %v2768
        %v2770 = vrot.slane %v2545, %v2769
        %v2771 = vsel %vm1867, %v2770, %v2766
        %v2772 = vlaneseq
        %v2773 = vshrl.u32 %v2772, 7
        %v2774 = vsub.s32 %v1869, %v2773
        %v2775 = vrot.slane %v2548, %v2774
        %v2776 = vsel %vm1874, %v2775, %v2771
        %v2777 = vlaneseq
        %v2778 = vshrl.u32 %v2777, 7
        %v2779 = vsub.s32 %v1876, %v2778
        %v2780 = vrot.slane %v2551, %v2779
        %v2781 = vsel %vm1881, %v2780, %v2776
        %v2782 = vlaneseq
        %v2783 = vshrl.u32 %v2782, 7
        %v2784 = vsub.s32 %v1883, %v2783
        %v2785 = vrot.slane %v2554, %v2784
        %v2786 = vsel %vm1888, %v2785, %v2781
        %v2787 = vlaneseq
        %v2788 = vshrl.u32 %v2787, 7
        %v2789 = vsub.s32 %v1890, %v2788
        %v2790 = vrot.slane %v2557, %v2789
        %v2791 = vsel %vm1895, %v2790, %v2786
        %v2792 = vlaneseq
        %v2793 = vshrl.u32 %v2792, 7
        %v2794 = vsub.s32 %v1897, %v2793
        %v2795 = vrot.slane %v2560, %v2794
        %v2796 = vsel %vm1902, %v2795, %v2791
        %v2797 = vlaneseq
        %v2798 = vshrl.u32 %v2797, 7
        %v2799 = vsub.s32 %v1904, %v2798
        %v2800 = vrot.slane %v2563, %v2799
        %v2801 = vsel %vm1909, %v2800, %v2796
        %v2802 = vlaneseq
        %v2803 = vshrl.u32 %v2802, 7
        %v2804 = vsub.s32 %v1911, %v2803
        %v2805 = vrot.slane %v2566, %v2804
        %v2806 = vsel %vm1916, %v2805, %v2801
        %v2807 = vlaneseq
        %v2808 = vshrl.u32 %v2807, 7
        %v2809 = vsub.s32 %v1918, %v2808
        %v2810 = vrot.slane %v2569, %v2809
        %v2811 = vsel %vm1923, %v2810, %v2806
        %v2812 = vlaneseq
        %v2813 = vshrl.u32 %v2812, 7
        %v2814 = vsub.s32 %v1925, %v2813
        %v2815 = vrot.slane %v2572, %v2814
        %v2816 = vsel %vm1930, %v2815, %v2811
        %v2817 = vlaneseq
        %v2818 = vshrl.u32 %v2817, 7
        %v2819 = vsub.s32 %v1932, %v2818
        %v2820 = vrot.slane %v2575, %v2819
        %v2821 = vsel %vm1937, %v2820, %v2816
        %v2822 = vlaneseq
        %v2823 = vshrl.u32 %v2822, 7
        %v2824 = vsub.s32 %v1939, %v2823
        %v2825 = vrot.slane %v2578, %v2824
        %v2826 = vsel %vm1944, %v2825, %v2821
        %v2827 = vlaneseq
        %v2828 = vshrl.u32 %v2827, 7
        %v2829 = vsub.s32 %v1946, %v2828
        %v2830 = vrot.slane %v2581, %v2829
        %v2831 = vsel %vm1951, %v2830, %v2826
        %v2832 = vlaneseq
        %v2833 = vshrl.u32 %v2832, 7
        %v2834 = vsub.s32 %v1953, %v2833
        %v2835 = vrot.slane %v2584, %v2834
        %v2836 = vsel %vm1958, %v2835, %v2831
        %v2837 = vlaneseq
        %v2838 = vshrl.u32 %v2837, 7
        %v2839 = vsub.s32 %v1960, %v2838
        %v2840 = vrot.slane %v2587, %v2839
        %v2841 = vsel %vm1965, %v2840, %v2836
        %v2842 = vlaneseq
        %v2843 = vshrl.u32 %v2842, 7
        %v2844 = vsub.s32 %v1857, %v2843
        %v2845 = vrot.slane %v2590, %v2844
        %v2846 = vlaneseq
        %v2847 = vshrl.u32 %v2846, 7
        %v2848 = vsub.s32 %v1862, %v2847
        %v2849 = vrot.slane %v2593, %v2848
        %v2850 = vsel %vm1867, %v2849, %v2845
        %v2851 = vlaneseq
        %v2852 = vshrl.u32 %v2851, 7
        %v2853 = vsub.s32 %v1869, %v2852
        %v2854 = vrot.slane %v2596, %v2853
        %v2855 = vsel %vm1874, %v2854, %v2850
        %v2856 = vlaneseq
        %v2857 = vshrl.u32 %v2856, 7
        %v2858 = vsub.s32 %v1876, %v2857
        %v2859 = vrot.slane %v2599, %v2858
        %v2860 = vsel %vm1881, %v2859, %v2855
        %v2861 = vlaneseq
        %v2862 = vshrl.u32 %v2861, 7
        %v2863 = vsub.s32 %v1883, %v2862
        %v2864 = vrot.slane %v2602, %v2863
        %v2865 = vsel %vm1888, %v2864, %v2860
        %v2866 = vlaneseq
        %v2867 = vshrl.u32 %v2866, 7
        %v2868 = vsub.s32 %v1890, %v2867
        %v2869 = vrot.slane %v2605, %v2868
        %v2870 = vsel %vm1895, %v2869, %v2865
        %v2871 = vlaneseq
        %v2872 = vshrl.u32 %v2871, 7
        %v2873 = vsub.s32 %v1897, %v2872
        %v2874 = vrot.slane %v2608, %v2873
        %v2875 = vsel %vm1902, %v2874, %v2870
        %v2876 = vlaneseq
        %v2877 = vshrl.u32 %v2876, 7
        %v2878 = vsub.s32 %v1904, %v2877
        %v2879 = vrot.slane %v2611, %v2878
        %v2880 = vsel %vm1909, %v2879, %v2875
        %v2881 = vlaneseq
        %v2882 = vshrl.u32 %v2881, 7
        %v2883 = vsub.s32 %v1911, %v2882
        %v2884 = vrot.slane %v2614, %v2883
        %v2885 = vsel %vm1916, %v2884, %v2880
        %v2886 = vlaneseq
        %v2887 = vshrl.u32 %v2886, 7
        %v2888 = vsub.s32 %v1918, %v2887
        %v2889 = vrot.slane %v2617, %v2888
        %v2890 = vsel %vm1923, %v2889, %v2885
        %v2891 = vlaneseq
        %v2892 = vshrl.u32 %v2891, 7
        %v2893 = vsub.s32 %v1925, %v2892
        %v2894 = vrot.slane %v2620, %v2893
        %v2895 = vsel %vm1930, %v2894, %v2890
        %v2896 = vlaneseq
        %v2897 = vshrl.u32 %v2896, 7
        %v2898 = vsub.s32 %v1932, %v2897
        %v2899 = vrot.slane %v2623, %v2898
        %v2900 = vsel %vm1937, %v2899, %v2895
        %v2901 = vlaneseq
        %v2902 = vshrl.u32 %v2901, 7
        %v2903 = vsub.s32 %v1939, %v2902
        %v2904 = vrot.slane %v2626, %v2903
        %v2905 = vsel %vm1944, %v2904, %v2900
        %v2906 = vlaneseq
        %v2907 = vshrl.u32 %v2906, 7
        %v2908 = vsub.s32 %v1946, %v2907
        %v2909 = vrot.slane %v2629, %v2908
        %v2910 = vsel %vm1951, %v2909, %v2905
        %v2911 = vlaneseq
        %v2912 = vshrl.u32 %v2911, 7
        %v2913 = vsub.s32 %v1953, %v2912
        %v2914 = vrot.slane %v2632, %v2913
        %v2915 = vsel %vm1958, %v2914, %v2910
        %v2916 = vlaneseq
        %v2917 = vshrl.u32 %v2916, 7
        %v2918 = vsub.s32 %v1960, %v2917
        %v2919 = vrot.slane %v2635, %v2918
        %v2920 = vsel %vm1965, %v2919, %v2915
        %v2921 = vlaneseq
        %v2922 = vshrl.u32 %v2921, 7
        %v2923 = vsub.s32 %v1857, %v2922
        %v2924 = vrot.slane %v2638, %v2923
        %v2925 = vlaneseq
        %v2926 = vshrl.u32 %v2925, 7
        %v2927 = vsub.s32 %v1862, %v2926
        %v2928 = vrot.slane %v2641, %v2927
        %v2929 = vsel %vm1867, %v2928, %v2924
        %v2930 = vlaneseq
        %v2931 = vshrl.u32 %v2930, 7
        %v2932 = vsub.s32 %v1869, %v2931
        %v2933 = vrot.slane %v2644, %v2932
        %v2934 = vsel %vm1874, %v2933, %v2929
        %v2935 = vlaneseq
        %v2936 = vshrl.u32 %v2935, 7
        %v2937 = vsub.s32 %v1876, %v2936
        %v2938 = vrot.slane %v2647, %v2937
        %v2939 = vsel %vm1881, %v2938, %v2934
        %v2940 = vlaneseq
        %v2941 = vshrl.u32 %v2940, 7
        %v2942 = vsub.s32 %v1883, %v2941
        %v2943 = vrot.slane %v2650, %v2942
        %v2944 = vsel %vm1888, %v2943, %v2939
        %v2945 = vlaneseq
        %v2946 = vshrl.u32 %v2945, 7
        %v2947 = vsub.s32 %v1890, %v2946
        %v2948 = vrot.slane %v2653, %v2947
        %v2949 = vsel %vm1895, %v2948, %v2944
        %v2950 = vlaneseq
        %v2951 = vshrl.u32 %v2950, 7
        %v2952 = vsub.s32 %v1897, %v2951
        %v2953 = vrot.slane %v2656, %v2952
        %v2954 = vsel %vm1902, %v2953, %v2949
        %v2955 = vlaneseq
        %v2956 = vshrl.u32 %v2955, 7
        %v2957 = vsub.s32 %v1904, %v2956
        %v2958 = vrot.slane %v2659, %v2957
        %v2959 = vsel %vm1909, %v2958, %v2954
        %v2960 = vlaneseq
        %v2961 = vshrl.u32 %v2960, 7
        %v2962 = vsub.s32 %v1911, %v2961
        %v2963 = vrot.slane %v2662, %v2962
        %v2964 = vsel %vm1916, %v2963, %v2959
        %v2965 = vlaneseq
        %v2966 = vshrl.u32 %v2965, 7
        %v2967 = vsub.s32 %v1918, %v2966
        %v2968 = vrot.slane %v2665, %v2967
        %v2969 = vsel %vm1923, %v2968, %v2964
        %v2970 = vlaneseq
        %v2971 = vshrl.u32 %v2970, 7
        %v2972 = vsub.s32 %v1925, %v2971
        %v2973 = vrot.slane %v2668, %v2972
        %v2974 = vsel %vm1930, %v2973, %v2969
        %v2975 = vlaneseq
        %v2976 = vshrl.u32 %v2975, 7
        %v2977 = vsub.s32 %v1932, %v2976
        %v2978 = vrot.slane %v2671, %v2977
        %v2979 = vsel %vm1937, %v2978, %v2974
        %v2980 = vlaneseq
        %v2981 = vshrl.u32 %v2980, 7
        %v2982 = vsub.s32 %v1939, %v2981
        %v2983 = vrot.slane %v2674, %v2982
        %v2984 = vsel %vm1944, %v2983, %v2979
        %v2985 = vlaneseq
        %v2986 = vshrl.u32 %v2985, 7
        %v2987 = vsub.s32 %v1946, %v2986
        %v2988 = vrot.slane %v2677, %v2987
        %v2989 = vsel %vm1951, %v2988, %v2984
        %v2990 = vlaneseq
        %v2991 = vshrl.u32 %v2990, 7
        %v2992 = vsub.s32 %v1953, %v2991
        %v2993 = vrot.slane %v2680, %v2992
        %v2994 = vsel %vm1958, %v2993, %v2989
        %v2995 = vlaneseq
        %v2996 = vshrl.u32 %v2995, 7
        %v2997 = vsub.s32 %v1960, %v2996
        %v2998 = vrot.slane %v2683, %v2997
        %v2999 = vsel %vm1965, %v2998, %v2994
        %v3000 = vsel %vm2204, %v2841, %v2762
        %v3001 = vsel %vm2206, %v2920, %v3000
        %v3002 = vsel %vm2208, %v2999, %v3001
        %v3004 = vsel %vm2211, %v3002, 0.0
        %3005 = vadd.xlane.f32.xlu0 %v3004
        %v3006 = vpop.xlane.xlu0 %3005
        %v3008 = vlaneseq
        %v3009 = vshrl.u32 %v3008, 7
        %v3010 = vsub.s32 0, %v3009
        %v3011 = vrot.slane %v3006, %v3010
        %v3012 = vlaneseq
        %v3013 = vshrl.u32 %v3012, 7
        %v3014 = vsub.s32 1, %v3013
        %v3015 = vrot.slane %v3006, %v3014
        %v3016 = vlaneseq
        %v3017 = vshrl.u32 %v3016, 7
        %v3018 = vsub.s32 2, %v3017
        %v3019 = vrot.slane %v3006, %v3018
        %v3020 = vlaneseq
        %v3021 = vshrl.u32 %v3020, 7
        %v3022 = vsub.s32 3, %v3021
        %v3023 = vrot.slane %v3006, %v3022
        %v3028 = vrcp.pop %v3011
        %v3029 = vmul.f32 %v2301, %v3028
        %v3030 = vmul.f32 %v2303, %v3028
        %v3031 = vmul.f32 %v2305, %v3028
        %v3032 = vmul.f32 %v2307, %v3028
        %v3033 = vmul.f32 %v2309, %v3028
        %v3034 = vmul.f32 %v2311, %v3028
        %v3035 = vmul.f32 %v2313, %v3028
        %v3036 = vmul.f32 %v2315, %v3028
        %v3037 = vmul.f32 %v2317, %v3028
        %v3038 = vmul.f32 %v2319, %v3028
        %v3039 = vmul.f32 %v2321, %v3028
        %v3040 = vmul.f32 %v2323, %v3028
        %v3041 = vmul.f32 %v2325, %v3028
        %v3042 = vmul.f32 %v2327, %v3028
        %v3043 = vmul.f32 %v2329, %v3028
        %v3044 = vmul.f32 %v2331, %v3028
        %v3045 = vrcp.pop %v3015
        %v3046 = vmul.f32 %v2333, %v3045
        %v3047 = vmul.f32 %v2335, %v3045
        %v3048 = vmul.f32 %v2337, %v3045
        %v3049 = vmul.f32 %v2339, %v3045
        %v3050 = vmul.f32 %v2341, %v3045
        %v3051 = vmul.f32 %v2343, %v3045
        %v3052 = vmul.f32 %v2345, %v3045
        %v3053 = vmul.f32 %v2347, %v3045
        %v3054 = vmul.f32 %v2349, %v3045
        %v3055 = vmul.f32 %v2351, %v3045
        %v3056 = vmul.f32 %v2353, %v3045
        %v3057 = vmul.f32 %v2355, %v3045
        %v3058 = vmul.f32 %v2357, %v3045
        %v3059 = vmul.f32 %v2359, %v3045
        %v3060 = vmul.f32 %v2361, %v3045
        %v3061 = vmul.f32 %v2363, %v3045
        %v3062 = vrcp.pop %v3019
        %v3063 = vmul.f32 %v2365, %v3062
        %v3064 = vmul.f32 %v2367, %v3062
        %v3065 = vmul.f32 %v2369, %v3062
        %v3066 = vmul.f32 %v2371, %v3062
        %v3067 = vmul.f32 %v2373, %v3062
        %v3068 = vmul.f32 %v2375, %v3062
        %v3069 = vmul.f32 %v2377, %v3062
        %v3070 = vmul.f32 %v2379, %v3062
        %v3071 = vmul.f32 %v2381, %v3062
        %v3072 = vmul.f32 %v2383, %v3062
        %v3073 = vmul.f32 %v2385, %v3062
        %v3074 = vmul.f32 %v2387, %v3062
        %v3075 = vmul.f32 %v2389, %v3062
        %v3076 = vmul.f32 %v2391, %v3062
        %v3077 = vmul.f32 %v2393, %v3062
        %v3078 = vmul.f32 %v2395, %v3062
        %v3079 = vrcp.pop %v3023
        %v3080 = vmul.f32 %v2397, %v3079
        %v3081 = vmul.f32 %v2399, %v3079
        %v3082 = vmul.f32 %v2401, %v3079
        %v3083 = vmul.f32 %v2403, %v3079
        %v3084 = vmul.f32 %v2405, %v3079
        %v3085 = vmul.f32 %v2407, %v3079
        %v3086 = vmul.f32 %v2409, %v3079
        %v3087 = vmul.f32 %v2411, %v3079
        %v3088 = vmul.f32 %v2413, %v3079
        %v3089 = vmul.f32 %v2415, %v3079
        %v3090 = vmul.f32 %v2417, %v3079
        %v3091 = vmul.f32 %v2419, %v3079
        %v3092 = vmul.f32 %v2421, %v3079
        %v3093 = vmul.f32 %v2423, %v3079
        %v3094 = vmul.f32 %v2425, %v3079
        %v3095 = vmul.f32 %v2427, %v3079
        %v3096 = vmul.f32 %v3029, %v1728
        %v3097 = vmul.f32 %v3030, %v1729
        %v3098 = vmul.f32 %v3031, %v1730
        %v3099 = vmul.f32 %v3032, %v1731
        %v3100 = vmul.f32 %v3033, %v1732
        %v3101 = vmul.f32 %v3034, %v1733
        %v3102 = vmul.f32 %v3035, %v1734
        %v3103 = vmul.f32 %v3036, %v1735
        %v3104 = vmul.f32 %v3037, %v1736
        %v3105 = vmul.f32 %v3038, %v1737
        %v3106 = vmul.f32 %v3039, %v1738
        %v3107 = vmul.f32 %v3040, %v1739
        %v3108 = vmul.f32 %v3041, %v1740
        %v3109 = vmul.f32 %v3042, %v1741
        %v3110 = vmul.f32 %v3043, %v1742
        %v3111 = vmul.f32 %v3044, %v1743
        %v3112 = vmul.f32 %v3046, %v1744
        %v3113 = vmul.f32 %v3047, %v1745
        %v3114 = vmul.f32 %v3048, %v1746
        %v3115 = vmul.f32 %v3049, %v1747
        %v3116 = vmul.f32 %v3050, %v1748
        %v3117 = vmul.f32 %v3051, %v1749
        %v3118 = vmul.f32 %v3052, %v1750
        %v3119 = vmul.f32 %v3053, %v1751
        %v3120 = vmul.f32 %v3054, %v1752
        %v3121 = vmul.f32 %v3055, %v1753
        %v3122 = vmul.f32 %v3056, %v1754
        %v3123 = vmul.f32 %v3057, %v1755
        %v3124 = vmul.f32 %v3058, %v1756
        %v3125 = vmul.f32 %v3059, %v1757
        %v3126 = vmul.f32 %v3060, %v1758
        %v3127 = vmul.f32 %v3061, %v1759
        %v3128 = vmul.f32 %v3063, %v1760
        %v3129 = vmul.f32 %v3064, %v1761
        %v3130 = vmul.f32 %v3065, %v1762
        %v3131 = vmul.f32 %v3066, %v1763
        %v3132 = vmul.f32 %v3067, %v1764
        %v3133 = vmul.f32 %v3068, %v1765
        %v3134 = vmul.f32 %v3069, %v1766
        %v3135 = vmul.f32 %v3070, %v1767
        %v3136 = vmul.f32 %v3071, %v1768
        %v3137 = vmul.f32 %v3072, %v1769
        %v3138 = vmul.f32 %v3073, %v1770
        %v3139 = vmul.f32 %v3074, %v1771
        %v3140 = vmul.f32 %v3075, %v1772
        %v3141 = vmul.f32 %v3076, %v1773
        %v3142 = vmul.f32 %v3077, %v1774
        %v3143 = vmul.f32 %v3078, %v1775
        %v3144 = vmul.f32 %v3080, %v1776
        %v3145 = vmul.f32 %v3081, %v1777
        %v3146 = vmul.f32 %v3082, %v1778
        %v3147 = vmul.f32 %v3083, %v1779
        %v3148 = vmul.f32 %v3084, %v1780
        %v3149 = vmul.f32 %v3085, %v1781
        %v3150 = vmul.f32 %v3086, %v1782
        %v3151 = vmul.f32 %v3087, %v1783
        %v3152 = vmul.f32 %v3088, %v1784
        %v3153 = vmul.f32 %v3089, %v1785
        %v3154 = vmul.f32 %v3090, %v1786
        %v3155 = vmul.f32 %v3091, %v1787
        %v3156 = vmul.f32 %v3092, %v1788
        %v3157 = vmul.f32 %v3093, %v1789
        %v3158 = vmul.f32 %v3094, %v1790
        %v3159 = vmul.f32 %v3095, %v1791
        %3224 = vset.pattern.permute.xlu0 0
        %3225 = vperm.xlu0 %3224, %v3096
        %v3226 = vpop.permute.xlu0 %3225
        %3227 = vset.pattern.permute.xlu0 0
        %3228 = vperm.xlu0 %3227, %v3097
        %v3229 = vpop.permute.xlu0 %3228
        %3230 = vset.pattern.permute.xlu0 0
        %3231 = vperm.xlu0 %3230, %v3098
        %v3232 = vpop.permute.xlu0 %3231
        %3233 = vset.pattern.permute.xlu0 0
        %3234 = vperm.xlu0 %3233, %v3099
        %v3235 = vpop.permute.xlu0 %3234
        %3236 = vset.pattern.permute.xlu0 0
        %3237 = vperm.xlu0 %3236, %v3100
        %v3238 = vpop.permute.xlu0 %3237
        %3239 = vset.pattern.permute.xlu0 0
        %3240 = vperm.xlu0 %3239, %v3101
        %v3241 = vpop.permute.xlu0 %3240
        %3242 = vset.pattern.permute.xlu0 0
        %3243 = vperm.xlu0 %3242, %v3102
        %v3244 = vpop.permute.xlu0 %3243
        %3245 = vset.pattern.permute.xlu0 0
        %3246 = vperm.xlu0 %3245, %v3103
        %v3247 = vpop.permute.xlu0 %3246
        %3248 = vset.pattern.permute.xlu0 0
        %3249 = vperm.xlu0 %3248, %v3104
        %v3250 = vpop.permute.xlu0 %3249
        %3251 = vset.pattern.permute.xlu0 0
        %3252 = vperm.xlu0 %3251, %v3105
        %v3253 = vpop.permute.xlu0 %3252
        %3254 = vset.pattern.permute.xlu0 0
        %3255 = vperm.xlu0 %3254, %v3106
        %v3256 = vpop.permute.xlu0 %3255
        %3257 = vset.pattern.permute.xlu0 0
        %3258 = vperm.xlu0 %3257, %v3107
        %v3259 = vpop.permute.xlu0 %3258
        %3260 = vset.pattern.permute.xlu0 0
        %3261 = vperm.xlu0 %3260, %v3108
        %v3262 = vpop.permute.xlu0 %3261
        %3263 = vset.pattern.permute.xlu0 0
        %3264 = vperm.xlu0 %3263, %v3109
        %v3265 = vpop.permute.xlu0 %3264
        %3266 = vset.pattern.permute.xlu0 0
        %3267 = vperm.xlu0 %3266, %v3110
        %v3268 = vpop.permute.xlu0 %3267
        %3269 = vset.pattern.permute.xlu0 0
        %3270 = vperm.xlu0 %3269, %v3111
        %v3271 = vpop.permute.xlu0 %3270
        %3272 = vset.pattern.permute.xlu0 0
        %3273 = vperm.xlu0 %3272, %v3112
        %v3274 = vpop.permute.xlu0 %3273
        %3275 = vset.pattern.permute.xlu0 0
        %3276 = vperm.xlu0 %3275, %v3113
        %v3277 = vpop.permute.xlu0 %3276
        %3278 = vset.pattern.permute.xlu0 0
        %3279 = vperm.xlu0 %3278, %v3114
        %v3280 = vpop.permute.xlu0 %3279
        %3281 = vset.pattern.permute.xlu0 0
        %3282 = vperm.xlu0 %3281, %v3115
        %v3283 = vpop.permute.xlu0 %3282
        %3284 = vset.pattern.permute.xlu0 0
        %3285 = vperm.xlu0 %3284, %v3116
        %v3286 = vpop.permute.xlu0 %3285
        %3287 = vset.pattern.permute.xlu0 0
        %3288 = vperm.xlu0 %3287, %v3117
        %v3289 = vpop.permute.xlu0 %3288
        %3290 = vset.pattern.permute.xlu0 0
        %3291 = vperm.xlu0 %3290, %v3118
        %v3292 = vpop.permute.xlu0 %3291
        %3293 = vset.pattern.permute.xlu0 0
        %3294 = vperm.xlu0 %3293, %v3119
        %v3295 = vpop.permute.xlu0 %3294
        %3296 = vset.pattern.permute.xlu0 0
        %3297 = vperm.xlu0 %3296, %v3120
        %v3298 = vpop.permute.xlu0 %3297
        %3299 = vset.pattern.permute.xlu0 0
        %3300 = vperm.xlu0 %3299, %v3121
        %v3301 = vpop.permute.xlu0 %3300
        %3302 = vset.pattern.permute.xlu0 0
        %3303 = vperm.xlu0 %3302, %v3122
        %v3304 = vpop.permute.xlu0 %3303
        %3305 = vset.pattern.permute.xlu0 0
        %3306 = vperm.xlu0 %3305, %v3123
        %v3307 = vpop.permute.xlu0 %3306
        %3308 = vset.pattern.permute.xlu0 0
        %3309 = vperm.xlu0 %3308, %v3124
        %v3310 = vpop.permute.xlu0 %3309
        %3311 = vset.pattern.permute.xlu0 0
        %3312 = vperm.xlu0 %3311, %v3125
        %v3313 = vpop.permute.xlu0 %3312
        %3314 = vset.pattern.permute.xlu0 0
        %3315 = vperm.xlu0 %3314, %v3126
        %v3316 = vpop.permute.xlu0 %3315
        %3317 = vset.pattern.permute.xlu0 0
        %3318 = vperm.xlu0 %3317, %v3127
        %v3319 = vpop.permute.xlu0 %3318
        %3320 = vset.pattern.permute.xlu0 0
        %3321 = vperm.xlu0 %3320, %v3128
        %v3322 = vpop.permute.xlu0 %3321
        %3323 = vset.pattern.permute.xlu0 0
        %3324 = vperm.xlu0 %3323, %v3129
        %v3325 = vpop.permute.xlu0 %3324
        %3326 = vset.pattern.permute.xlu0 0
        %3327 = vperm.xlu0 %3326, %v3130
        %v3328 = vpop.permute.xlu0 %3327
        %3329 = vset.pattern.permute.xlu0 0
        %3330 = vperm.xlu0 %3329, %v3131
        %v3331 = vpop.permute.xlu0 %3330
        %3332 = vset.pattern.permute.xlu0 0
        %3333 = vperm.xlu0 %3332, %v3132
        %v3334 = vpop.permute.xlu0 %3333
        %3335 = vset.pattern.permute.xlu0 0
        %3336 = vperm.xlu0 %3335, %v3133
        %v3337 = vpop.permute.xlu0 %3336
        %3338 = vset.pattern.permute.xlu0 0
        %3339 = vperm.xlu0 %3338, %v3134
        %v3340 = vpop.permute.xlu0 %3339
        %3341 = vset.pattern.permute.xlu0 0
        %3342 = vperm.xlu0 %3341, %v3135
        %v3343 = vpop.permute.xlu0 %3342
        %3344 = vset.pattern.permute.xlu0 0
        %3345 = vperm.xlu0 %3344, %v3136
        %v3346 = vpop.permute.xlu0 %3345
        %3347 = vset.pattern.permute.xlu0 0
        %3348 = vperm.xlu0 %3347, %v3137
        %v3349 = vpop.permute.xlu0 %3348
        %3350 = vset.pattern.permute.xlu0 0
        %3351 = vperm.xlu0 %3350, %v3138
        %v3352 = vpop.permute.xlu0 %3351
        %3353 = vset.pattern.permute.xlu0 0
        %3354 = vperm.xlu0 %3353, %v3139
        %v3355 = vpop.permute.xlu0 %3354
        %3356 = vset.pattern.permute.xlu0 0
        %3357 = vperm.xlu0 %3356, %v3140
        %v3358 = vpop.permute.xlu0 %3357
        %3359 = vset.pattern.permute.xlu0 0
        %3360 = vperm.xlu0 %3359, %v3141
        %v3361 = vpop.permute.xlu0 %3360
        %3362 = vset.pattern.permute.xlu0 0
        %3363 = vperm.xlu0 %3362, %v3142
        %v3364 = vpop.permute.xlu0 %3363
        %3365 = vset.pattern.permute.xlu0 0
        %3366 = vperm.xlu0 %3365, %v3143
        %v3367 = vpop.permute.xlu0 %3366
        %3368 = vset.pattern.permute.xlu0 0
        %3369 = vperm.xlu0 %3368, %v3144
        %v3370 = vpop.permute.xlu0 %3369
        %3371 = vset.pattern.permute.xlu0 0
        %3372 = vperm.xlu0 %3371, %v3145
        %v3373 = vpop.permute.xlu0 %3372
        %3374 = vset.pattern.permute.xlu0 0
        %3375 = vperm.xlu0 %3374, %v3146
        %v3376 = vpop.permute.xlu0 %3375
        %3377 = vset.pattern.permute.xlu0 0
        %3378 = vperm.xlu0 %3377, %v3147
        %v3379 = vpop.permute.xlu0 %3378
        %3380 = vset.pattern.permute.xlu0 0
        %3381 = vperm.xlu0 %3380, %v3148
        %v3382 = vpop.permute.xlu0 %3381
        %3383 = vset.pattern.permute.xlu0 0
        %3384 = vperm.xlu0 %3383, %v3149
        %v3385 = vpop.permute.xlu0 %3384
        %3386 = vset.pattern.permute.xlu0 0
        %3387 = vperm.xlu0 %3386, %v3150
        %v3388 = vpop.permute.xlu0 %3387
        %3389 = vset.pattern.permute.xlu0 0
        %3390 = vperm.xlu0 %3389, %v3151
        %v3391 = vpop.permute.xlu0 %3390
        %3392 = vset.pattern.permute.xlu0 0
        %3393 = vperm.xlu0 %3392, %v3152
        %v3394 = vpop.permute.xlu0 %3393
        %3395 = vset.pattern.permute.xlu0 0
        %3396 = vperm.xlu0 %3395, %v3153
        %v3397 = vpop.permute.xlu0 %3396
        %3398 = vset.pattern.permute.xlu0 0
        %3399 = vperm.xlu0 %3398, %v3154
        %v3400 = vpop.permute.xlu0 %3399
        %3401 = vset.pattern.permute.xlu0 0
        %3402 = vperm.xlu0 %3401, %v3155
        %v3403 = vpop.permute.xlu0 %3402
        %3404 = vset.pattern.permute.xlu0 0
        %3405 = vperm.xlu0 %3404, %v3156
        %v3406 = vpop.permute.xlu0 %3405
        %3407 = vset.pattern.permute.xlu0 0
        %3408 = vperm.xlu0 %3407, %v3157
        %v3409 = vpop.permute.xlu0 %3408
        %3410 = vset.pattern.permute.xlu0 0
        %3411 = vperm.xlu0 %3410, %v3158
        %v3412 = vpop.permute.xlu0 %3411
        %3413 = vset.pattern.permute.xlu0 0
        %3414 = vperm.xlu0 %3413, %v3159
        %v3415 = vpop.permute.xlu0 %3414
        %v3416 = vlaneseq
        %v3417 = vshrl.u32 %v3416, 7
        %v3418 = vsub.s32 %v1857, %v3417
        %v3419 = vrot.slane %v3226, %v3418
        %v3420 = vlaneseq
        %v3421 = vshrl.u32 %v3420, 7
        %v3422 = vsub.s32 %v1862, %v3421
        %v3423 = vrot.slane %v3229, %v3422
        %v3424 = vsel %vm1867, %v3423, %v3419
        %v3425 = vlaneseq
        %v3426 = vshrl.u32 %v3425, 7
        %v3427 = vsub.s32 %v1869, %v3426
        %v3428 = vrot.slane %v3232, %v3427
        %v3429 = vsel %vm1874, %v3428, %v3424
        %v3430 = vlaneseq
        %v3431 = vshrl.u32 %v3430, 7
        %v3432 = vsub.s32 %v1876, %v3431
        %v3433 = vrot.slane %v3235, %v3432
        %v3434 = vsel %vm1881, %v3433, %v3429
        %v3435 = vlaneseq
        %v3436 = vshrl.u32 %v3435, 7
        %v3437 = vsub.s32 %v1883, %v3436
        %v3438 = vrot.slane %v3238, %v3437
        %v3439 = vsel %vm1888, %v3438, %v3434
        %v3440 = vlaneseq
        %v3441 = vshrl.u32 %v3440, 7
        %v3442 = vsub.s32 %v1890, %v3441
        %v3443 = vrot.slane %v3241, %v3442
        %v3444 = vsel %vm1895, %v3443, %v3439
        %v3445 = vlaneseq
        %v3446 = vshrl.u32 %v3445, 7
        %v3447 = vsub.s32 %v1897, %v3446
        %v3448 = vrot.slane %v3244, %v3447
        %v3449 = vsel %vm1902, %v3448, %v3444
        %v3450 = vlaneseq
        %v3451 = vshrl.u32 %v3450, 7
        %v3452 = vsub.s32 %v1904, %v3451
        %v3453 = vrot.slane %v3247, %v3452
        %v3454 = vsel %vm1909, %v3453, %v3449
        %v3455 = vlaneseq
        %v3456 = vshrl.u32 %v3455, 7
        %v3457 = vsub.s32 %v1911, %v3456
        %v3458 = vrot.slane %v3250, %v3457
        %v3459 = vsel %vm1916, %v3458, %v3454
        %v3460 = vlaneseq
        %v3461 = vshrl.u32 %v3460, 7
        %v3462 = vsub.s32 %v1918, %v3461
        %v3463 = vrot.slane %v3253, %v3462
        %v3464 = vsel %vm1923, %v3463, %v3459
        %v3465 = vlaneseq
        %v3466 = vshrl.u32 %v3465, 7
        %v3467 = vsub.s32 %v1925, %v3466
        %v3468 = vrot.slane %v3256, %v3467
        %v3469 = vsel %vm1930, %v3468, %v3464
        %v3470 = vlaneseq
        %v3471 = vshrl.u32 %v3470, 7
        %v3472 = vsub.s32 %v1932, %v3471
        %v3473 = vrot.slane %v3259, %v3472
        %v3474 = vsel %vm1937, %v3473, %v3469
        %v3475 = vlaneseq
        %v3476 = vshrl.u32 %v3475, 7
        %v3477 = vsub.s32 %v1939, %v3476
        %v3478 = vrot.slane %v3262, %v3477
        %v3479 = vsel %vm1944, %v3478, %v3474
        %v3480 = vlaneseq
        %v3481 = vshrl.u32 %v3480, 7
        %v3482 = vsub.s32 %v1946, %v3481
        %v3483 = vrot.slane %v3265, %v3482
        %v3484 = vsel %vm1951, %v3483, %v3479
        %v3485 = vlaneseq
        %v3486 = vshrl.u32 %v3485, 7
        %v3487 = vsub.s32 %v1953, %v3486
        %v3488 = vrot.slane %v3268, %v3487
        %v3489 = vsel %vm1958, %v3488, %v3484
        %v3490 = vlaneseq
        %v3491 = vshrl.u32 %v3490, 7
        %v3492 = vsub.s32 %v1960, %v3491
        %v3493 = vrot.slane %v3271, %v3492
        %v3494 = vsel %vm1965, %v3493, %v3489
        %v3495 = vlaneseq
        %v3496 = vshrl.u32 %v3495, 7
        %v3497 = vsub.s32 %v1857, %v3496
        %v3498 = vrot.slane %v3274, %v3497
        %v3499 = vlaneseq
        %v3500 = vshrl.u32 %v3499, 7
        %v3501 = vsub.s32 %v1862, %v3500
        %v3502 = vrot.slane %v3277, %v3501
        %v3503 = vsel %vm1867, %v3502, %v3498
        %v3504 = vlaneseq
        %v3505 = vshrl.u32 %v3504, 7
        %v3506 = vsub.s32 %v1869, %v3505
        %v3507 = vrot.slane %v3280, %v3506
        %v3508 = vsel %vm1874, %v3507, %v3503
        %v3509 = vlaneseq
        %v3510 = vshrl.u32 %v3509, 7
        %v3511 = vsub.s32 %v1876, %v3510
        %v3512 = vrot.slane %v3283, %v3511
        %v3513 = vsel %vm1881, %v3512, %v3508
        %v3514 = vlaneseq
        %v3515 = vshrl.u32 %v3514, 7
        %v3516 = vsub.s32 %v1883, %v3515
        %v3517 = vrot.slane %v3286, %v3516
        %v3518 = vsel %vm1888, %v3517, %v3513
        %v3519 = vlaneseq
        %v3520 = vshrl.u32 %v3519, 7
        %v3521 = vsub.s32 %v1890, %v3520
        %v3522 = vrot.slane %v3289, %v3521
        %v3523 = vsel %vm1895, %v3522, %v3518
        %v3524 = vlaneseq
        %v3525 = vshrl.u32 %v3524, 7
        %v3526 = vsub.s32 %v1897, %v3525
        %v3527 = vrot.slane %v3292, %v3526
        %v3528 = vsel %vm1902, %v3527, %v3523
        %v3529 = vlaneseq
        %v3530 = vshrl.u32 %v3529, 7
        %v3531 = vsub.s32 %v1904, %v3530
        %v3532 = vrot.slane %v3295, %v3531
        %v3533 = vsel %vm1909, %v3532, %v3528
        %v3534 = vlaneseq
        %v3535 = vshrl.u32 %v3534, 7
        %v3536 = vsub.s32 %v1911, %v3535
        %v3537 = vrot.slane %v3298, %v3536
        %v3538 = vsel %vm1916, %v3537, %v3533
        %v3539 = vlaneseq
        %v3540 = vshrl.u32 %v3539, 7
        %v3541 = vsub.s32 %v1918, %v3540
        %v3542 = vrot.slane %v3301, %v3541
        %v3543 = vsel %vm1923, %v3542, %v3538
        %v3544 = vlaneseq
        %v3545 = vshrl.u32 %v3544, 7
        %v3546 = vsub.s32 %v1925, %v3545
        %v3547 = vrot.slane %v3304, %v3546
        %v3548 = vsel %vm1930, %v3547, %v3543
        %v3549 = vlaneseq
        %v3550 = vshrl.u32 %v3549, 7
        %v3551 = vsub.s32 %v1932, %v3550
        %v3552 = vrot.slane %v3307, %v3551
        %v3553 = vsel %vm1937, %v3552, %v3548
        %v3554 = vlaneseq
        %v3555 = vshrl.u32 %v3554, 7
        %v3556 = vsub.s32 %v1939, %v3555
        %v3557 = vrot.slane %v3310, %v3556
        %v3558 = vsel %vm1944, %v3557, %v3553
        %v3559 = vlaneseq
        %v3560 = vshrl.u32 %v3559, 7
        %v3561 = vsub.s32 %v1946, %v3560
        %v3562 = vrot.slane %v3313, %v3561
        %v3563 = vsel %vm1951, %v3562, %v3558
        %v3564 = vlaneseq
        %v3565 = vshrl.u32 %v3564, 7
        %v3566 = vsub.s32 %v1953, %v3565
        %v3567 = vrot.slane %v3316, %v3566
        %v3568 = vsel %vm1958, %v3567, %v3563
        %v3569 = vlaneseq
        %v3570 = vshrl.u32 %v3569, 7
        %v3571 = vsub.s32 %v1960, %v3570
        %v3572 = vrot.slane %v3319, %v3571
        %v3573 = vsel %vm1965, %v3572, %v3568
        %v3574 = vlaneseq
        %v3575 = vshrl.u32 %v3574, 7
        %v3576 = vsub.s32 %v1857, %v3575
        %v3577 = vrot.slane %v3322, %v3576
        %v3578 = vlaneseq
        %v3579 = vshrl.u32 %v3578, 7
        %v3580 = vsub.s32 %v1862, %v3579
        %v3581 = vrot.slane %v3325, %v3580
        %v3582 = vsel %vm1867, %v3581, %v3577
        %v3583 = vlaneseq
        %v3584 = vshrl.u32 %v3583, 7
        %v3585 = vsub.s32 %v1869, %v3584
        %v3586 = vrot.slane %v3328, %v3585
        %v3587 = vsel %vm1874, %v3586, %v3582
        %v3588 = vlaneseq
        %v3589 = vshrl.u32 %v3588, 7
        %v3590 = vsub.s32 %v1876, %v3589
        %v3591 = vrot.slane %v3331, %v3590
        %v3592 = vsel %vm1881, %v3591, %v3587
        %v3593 = vlaneseq
        %v3594 = vshrl.u32 %v3593, 7
        %v3595 = vsub.s32 %v1883, %v3594
        %v3596 = vrot.slane %v3334, %v3595
        %v3597 = vsel %vm1888, %v3596, %v3592
        %v3598 = vlaneseq
        %v3599 = vshrl.u32 %v3598, 7
        %v3600 = vsub.s32 %v1890, %v3599
        %v3601 = vrot.slane %v3337, %v3600
        %v3602 = vsel %vm1895, %v3601, %v3597
        %v3603 = vlaneseq
        %v3604 = vshrl.u32 %v3603, 7
        %v3605 = vsub.s32 %v1897, %v3604
        %v3606 = vrot.slane %v3340, %v3605
        %v3607 = vsel %vm1902, %v3606, %v3602
        %v3608 = vlaneseq
        %v3609 = vshrl.u32 %v3608, 7
        %v3610 = vsub.s32 %v1904, %v3609
        %v3611 = vrot.slane %v3343, %v3610
        %v3612 = vsel %vm1909, %v3611, %v3607
        %v3613 = vlaneseq
        %v3614 = vshrl.u32 %v3613, 7
        %v3615 = vsub.s32 %v1911, %v3614
        %v3616 = vrot.slane %v3346, %v3615
        %v3617 = vsel %vm1916, %v3616, %v3612
        %v3618 = vlaneseq
        %v3619 = vshrl.u32 %v3618, 7
        %v3620 = vsub.s32 %v1918, %v3619
        %v3621 = vrot.slane %v3349, %v3620
        %v3622 = vsel %vm1923, %v3621, %v3617
        %v3623 = vlaneseq
        %v3624 = vshrl.u32 %v3623, 7
        %v3625 = vsub.s32 %v1925, %v3624
        %v3626 = vrot.slane %v3352, %v3625
        %v3627 = vsel %vm1930, %v3626, %v3622
        %v3628 = vlaneseq
        %v3629 = vshrl.u32 %v3628, 7
        %v3630 = vsub.s32 %v1932, %v3629
        %v3631 = vrot.slane %v3355, %v3630
        %v3632 = vsel %vm1937, %v3631, %v3627
        %v3633 = vlaneseq
        %v3634 = vshrl.u32 %v3633, 7
        %v3635 = vsub.s32 %v1939, %v3634
        %v3636 = vrot.slane %v3358, %v3635
        %v3637 = vsel %vm1944, %v3636, %v3632
        %v3638 = vlaneseq
        %v3639 = vshrl.u32 %v3638, 7
        %v3640 = vsub.s32 %v1946, %v3639
        %v3641 = vrot.slane %v3361, %v3640
        %v3642 = vsel %vm1951, %v3641, %v3637
        %v3643 = vlaneseq
        %v3644 = vshrl.u32 %v3643, 7
        %v3645 = vsub.s32 %v1953, %v3644
        %v3646 = vrot.slane %v3364, %v3645
        %v3647 = vsel %vm1958, %v3646, %v3642
        %v3648 = vlaneseq
        %v3649 = vshrl.u32 %v3648, 7
        %v3650 = vsub.s32 %v1960, %v3649
        %v3651 = vrot.slane %v3367, %v3650
        %v3652 = vsel %vm1965, %v3651, %v3647
        %v3653 = vlaneseq
        %v3654 = vshrl.u32 %v3653, 7
        %v3655 = vsub.s32 %v1857, %v3654
        %v3656 = vrot.slane %v3370, %v3655
        %v3657 = vlaneseq
        %v3658 = vshrl.u32 %v3657, 7
        %v3659 = vsub.s32 %v1862, %v3658
        %v3660 = vrot.slane %v3373, %v3659
        %v3661 = vsel %vm1867, %v3660, %v3656
        %v3662 = vlaneseq
        %v3663 = vshrl.u32 %v3662, 7
        %v3664 = vsub.s32 %v1869, %v3663
        %v3665 = vrot.slane %v3376, %v3664
        %v3666 = vsel %vm1874, %v3665, %v3661
        %v3667 = vlaneseq
        %v3668 = vshrl.u32 %v3667, 7
        %v3669 = vsub.s32 %v1876, %v3668
        %v3670 = vrot.slane %v3379, %v3669
        %v3671 = vsel %vm1881, %v3670, %v3666
        %v3672 = vlaneseq
        %v3673 = vshrl.u32 %v3672, 7
        %v3674 = vsub.s32 %v1883, %v3673
        %v3675 = vrot.slane %v3382, %v3674
        %v3676 = vsel %vm1888, %v3675, %v3671
        %v3677 = vlaneseq
        %v3678 = vshrl.u32 %v3677, 7
        %v3679 = vsub.s32 %v1890, %v3678
        %v3680 = vrot.slane %v3385, %v3679
        %v3681 = vsel %vm1895, %v3680, %v3676
        %v3682 = vlaneseq
        %v3683 = vshrl.u32 %v3682, 7
        %v3684 = vsub.s32 %v1897, %v3683
        %v3685 = vrot.slane %v3388, %v3684
        %v3686 = vsel %vm1902, %v3685, %v3681
        %v3687 = vlaneseq
        %v3688 = vshrl.u32 %v3687, 7
        %v3689 = vsub.s32 %v1904, %v3688
        %v3690 = vrot.slane %v3391, %v3689
        %v3691 = vsel %vm1909, %v3690, %v3686
        %v3692 = vlaneseq
        %v3693 = vshrl.u32 %v3692, 7
        %v3694 = vsub.s32 %v1911, %v3693
        %v3695 = vrot.slane %v3394, %v3694
        %v3696 = vsel %vm1916, %v3695, %v3691
        %v3697 = vlaneseq
        %v3698 = vshrl.u32 %v3697, 7
        %v3699 = vsub.s32 %v1918, %v3698
        %v3700 = vrot.slane %v3397, %v3699
        %v3701 = vsel %vm1923, %v3700, %v3696
        %v3702 = vlaneseq
        %v3703 = vshrl.u32 %v3702, 7
        %v3704 = vsub.s32 %v1925, %v3703
        %v3705 = vrot.slane %v3400, %v3704
        %v3706 = vsel %vm1930, %v3705, %v3701
        %v3707 = vlaneseq
        %v3708 = vshrl.u32 %v3707, 7
        %v3709 = vsub.s32 %v1932, %v3708
        %v3710 = vrot.slane %v3403, %v3709
        %v3711 = vsel %vm1937, %v3710, %v3706
        %v3712 = vlaneseq
        %v3713 = vshrl.u32 %v3712, 7
        %v3714 = vsub.s32 %v1939, %v3713
        %v3715 = vrot.slane %v3406, %v3714
        %v3716 = vsel %vm1944, %v3715, %v3711
        %v3717 = vlaneseq
        %v3718 = vshrl.u32 %v3717, 7
        %v3719 = vsub.s32 %v1946, %v3718
        %v3720 = vrot.slane %v3409, %v3719
        %v3721 = vsel %vm1951, %v3720, %v3716
        %v3722 = vlaneseq
        %v3723 = vshrl.u32 %v3722, 7
        %v3724 = vsub.s32 %v1953, %v3723
        %v3725 = vrot.slane %v3412, %v3724
        %v3726 = vsel %vm1958, %v3725, %v3721
        %v3727 = vlaneseq
        %v3728 = vshrl.u32 %v3727, 7
        %v3729 = vsub.s32 %v1960, %v3728
        %v3730 = vrot.slane %v3415, %v3729
        %v3731 = vsel %vm1965, %v3730, %v3726
        %v3732 = vsel %vm2204, %v3573, %v3494
        %v3733 = vsel %vm2206, %v3652, %v3732
        %v3734 = vsel %vm2208, %v3731, %v3733
        %3736 = vst [vmem:[%s265] sm:$0xf] %v3734
        %s3737 = sand.u32 %s126, 1
        %s3738 = scalar_lea.sflag [#allocation5], %s3737
        %s3739 = sand.u32 %s126, 1
        %s3740 = smul.addr %s3739, 4
        %s3741 = scalar_lea.vmem [#allocation9], %s3740
        // Predicated region
        $region49: #{tpu_custom_call.1} parent=35 // pred_check
          %p3742 = pneg %p136
        $region50: #{tpu_custom_call.1} parent=35 // pred_check_branch
          %3744 = sbr.rel (%p3742) target = $region52
        $region51: #{tpu_custom_call.1} parent=35 // pred_region
          %s3746 = ssub.s32 64, 64
          %3747 = vsyncadd %s3738, %s3746
          %s3748 = smul.addr %s24, 64
          %s3749 = scalar_lea.hbm %s4, %s3748
          %s3751 = sshll.u32 %s3741, 4
          %s3752 = int_to_ptr.vmem [resolvable:$true] %s3751
          %3754 = dma.vmem_to_hbm [thread:$0]  %s3752, 64, %s3749, %s3738
        $region52: #{tpu_custom_call.1} parent=35 // pred_fallthru
          _
      $region36: #{tpu_custom_call.1} parent=5 // pred_fallthru
        _
      %p3755 = scmp.le.s32.totalorder 2, %s19
      // Predicated region
      $region53: #{tpu_custom_call.1} parent=5 // pred_check
        %p3756 = pneg %p3755
      $region54: #{tpu_custom_call.1} parent=5 // pred_check_branch
        %3758 = sbr.rel (%p3756) target = $region56
      $region55: #{tpu_custom_call.1} parent=5 // pred_region
        %s3759 = ssub.s32 %s19, 2
        // Predicated region
        $region57: #{tpu_custom_call.1} parent=55 // pred_check
          %p3760 = pneg %p142
        $region58: #{tpu_custom_call.1} parent=55 // pred_check_branch
          %3762 = sbr.rel (%p3760) target = $region60
        $region59: #{tpu_custom_call.1} parent=55 // pred_region
          %s3763 = sand.u32 %s127, 1
          %s3764 = scalar_lea.sflag [#allocation5], %s3763
          %s3765 = sand.u32 %s127, 1
          %s3766 = smul.addr %s3765, 4
          %s3767 = scalar_lea.vmem [#allocation9], %s3766
          %3768 = dma.done %s3764, 64
        $region60: #{tpu_custom_call.1} parent=55 // pred_fallthru
          _
      $region56: #{tpu_custom_call.1} parent=5 // pred_fallthru
        _
    $region6: #{tpu_custom_call.1} parent=1 // loop_footer
      %s23 = sadd.s32 1, %s19
    $region7: #{tpu_custom_call.1} parent=1 // loop_footer_branch
      %18 = sbr.rel target = $region3
    $region8: #{tpu_custom_call.1} parent=1 // loop_exit
      _
    %3769 = vsyncpa [#allocation4], 1
    %s3770 = scalar_lea.sflag [#allocation4], 1
    %3771 = vsyncpa %s3770, 1
    %3772 = vsyncpa [#allocation7], 1
    %3773 = vsyncpa [#allocation5], 1
    %s3774 = scalar_lea.sflag [#allocation5], 1
    %3775 = vsyncpa %s3774, 1

</llo_original>
